<compile_context>
chip_gen: v5e
topology: v5e:2x2
jax: 0.10.0
libtpu: 0.0.40
codegen_flags: <defaults>
</compile_context>

<pallas_src>
import math

import jax
import jax.numpy as jnp
from jax import lax
from jax.experimental import pallas as pl
from jax.experimental.pallas import tpu as pltpu

C = 64            # cell channel width (fixed by the reference: Linear(64, .))
NUM_BLOCKS = 3
NUM_CLASSES = 100
NC_PAD = 128      # classes padded to a full 128-lane store; sliced in wrapper


# ---------------------------------------------------------------------------
# Per-cell compute (called from the fused kernel; `cell` is a static int).
# act_ref: (Bt, H+2, W+2, C) zero-padded f32 activations in VMEM scratch.
# Returns the cell output as (Bt*HW, C) f32.
# ---------------------------------------------------------------------------
def _cell_body(act_ref, cell,
               w_ref, convw_ref, convb_ref,
               wqkv_ref, bqkv_ref, wo_ref, bo_ref):
    Bt = act_ref.shape[0]
    H = act_ref.shape[1] - 2
    W = act_ref.shape[2] - 2
    HW = H * W
    M = Bt * HW

    # 9 shifted taps of the 3x3 neighborhood, row-major (dh, dw); cast to bf16
    # at slice time so no f32 concat intermediate / long-lived f32 taps exist.
    def tap(dh, dw):
        return act_ref[:, dh:dh + H, dw:dw + W, :].astype(jnp.bfloat16).reshape(M, C)

    patches = jnp.concatenate([tap(dh, dw) for dh in range(3) for dw in range(3)],
                              axis=-1)                              # (M, 9C) bf16

    # --- ConvBlock + PoolBlock in ONE lane-dense deep-K matmul (K = 576, N = 128)
    # convw_ref[cell] columns [0:C)  = 3x3 conv weights
    #                 columns [C:2C) = (softmax(alpha)[2] / 9) * identity per tap
    cp = jnp.dot(patches, convw_ref[cell],
                 preferred_element_type=jnp.float32)                # (M, 2C)
    conv_out = jnp.maximum(cp[:, :C] + convb_ref[cell], 0.0)        # (M, C)
    pool_w = cp[:, C:]          # already weighted by softmax(alpha)[2] / 9

    # --- TransformerBlock: single-head self-attention over the HW tokens
    tok = act_ref[:, 1:H + 1, 1:W + 1, :].astype(jnp.bfloat16).reshape(M, C)
    qkv = jnp.dot(tok, wqkv_ref[cell],
                  preferred_element_type=jnp.float32) + bqkv_ref[cell]   # (M, 3C)
    q3 = qkv[:, :C].reshape(Bt, HW, C).astype(jnp.bfloat16)
    k3 = qkv[:, C:2 * C].reshape(Bt, HW, C).astype(jnp.bfloat16)
    v3 = qkv[:, 2 * C:].reshape(Bt, HW, C).astype(jnp.bfloat16)
    # scores: contract the feature dim, batch over Bt (no explicit k^T copy)
    s = lax.dot_general(q3, k3, (((2,), (2,)), ((0,), (0,))),
                        preferred_element_type=jnp.float32)         # (Bt, HW, HW)
    s = s * (1.0 / math.sqrt(C))
    s = s - jnp.max(s, axis=-1, keepdims=True)
    p = jnp.exp(s)
    p = p * pl.reciprocal(jnp.sum(p, axis=-1, keepdims=True), approx=True)
    attn = lax.dot_general(p.astype(jnp.bfloat16), v3,
                           (((2,), (1,)), ((0,), (0,))),
                           preferred_element_type=jnp.float32)      # (Bt, HW, C)
    trans_out = (jnp.dot(attn.reshape(M, C).astype(jnp.bfloat16), wo_ref[cell],
                         preferred_element_type=jnp.float32)
                 + bo_ref[cell])                                    # (M, C)

    # --- DARTS mixture (pool weight already folded into the matmul)
    return w_ref[cell, 0] * conv_out + w_ref[cell, 1] * trans_out + pool_w


# ---------------------------------------------------------------------------
# Fused network kernel: 3 cells + AdaptiveAvgPool2d(1) + Linear(64, classes).
# One grid step = one batch element.
# ---------------------------------------------------------------------------
def darts_fused_kernel(w_ref,                        # SMEM (3, 3) softmax(alpha)
                       x_ref,                        # (1, H, W, C) f32 (this batch elem)
                       convw_ref, convb_ref,         # (3, 9C, 2C) bf16, (3, 1, C) f32
                       wqkv_ref, bqkv_ref,           # (3, C, 3C) bf16, (3, 1, 3C) f32
                       wo_ref, bo_ref,               # (3, C, C) bf16, (3, 1, C) f32
                       fcw_ref, fcb_ref,             # (C, NC_PAD) bf16, (1, NC_PAD) f32
                       o_ref,                        # (1, 1, NC_PAD) f32
                       act_ref):                     # VMEM scratch (1, H+2, W+2, C) f32
    Bt, H, W, _ = x_ref.shape
    HW = H * W

    # Zero only the 1-pixel border (done every step: scratch may be a separate
    # per-core instance when the batch grid is sharded across TensorCores).
    act_ref[:, 0:1, :, :] = jnp.zeros((Bt, 1, W + 2, C), jnp.float32)
    act_ref[:, H + 1:H + 2, :, :] = jnp.zeros((Bt, 1, W + 2, C), jnp.float32)
    act_ref[:, :, 0:1, :] = jnp.zeros((Bt, H + 2, 1, C), jnp.float32)
    act_ref[:, :, W + 1:W + 2, :] = jnp.zeros((Bt, H + 2, 1, C), jnp.float32)

    # Cell 0 reads x through the same padded-scratch path as cells 1-2.
    act_ref[:, 1:H + 1, 1:W + 1, :] = x_ref[...]

    y = None
    for cell in range(NUM_BLOCKS):                   # static unrolled loop
        y = _cell_body(act_ref, cell,
                       w_ref, convw_ref, convb_ref,
                       wqkv_ref, bqkv_ref, wo_ref, bo_ref)
        if cell < NUM_BLOCKS - 1:
            act_ref[:, 1:H + 1, 1:W + 1, :] = y.reshape(Bt, H, W, C)

    # --- Head: AdaptiveAvgPool2d(1) + flatten + Linear(64, num_classes)
    pooled = jnp.mean(y.reshape(Bt, HW, C), axis=1)                 # (Bt, C) f32
    logits = jnp.dot(pooled.astype(jnp.bfloat16), fcw_ref[...],
                     preferred_element_type=jnp.float32) + fcb_ref[...]
    o_ref[...] = logits.reshape(Bt, 1, NC_PAD).astype(o_ref.dtype)


# ---------------------------------------------------------------------------
# Wrapper: pack params, batch grid, single pallas_call.
# ---------------------------------------------------------------------------
def darts_network(x_nchw, params):
    x = jnp.transpose(x_nchw, (0, 2, 3, 1)).astype(jnp.float32)     # NHWC
    B, H, W, Cin = x.shape
    assert Cin == C, (
        "DARTS mixture (64-ch conv/attention + channel-preserving pool) is only "
        "shape-consistent when in_channels == 64")

    cells = params["cells"]
    w_mix = jax.nn.softmax(jnp.stack([p["alpha"] for p in cells]), axis=-1)  # (3, 3)

    # conv weights + weighted-pool averaging matrix packed into one (9C, 2C) slab
    pool_eye = jnp.tile(jnp.eye(C, dtype=jnp.float32), (9, 1))               # (9C, C)
    convw = jnp.stack([
        jnp.concatenate([p["conv_w"].reshape(9 * C, C),
                         (w_mix[i, 2] / 9.0) * pool_eye], axis=-1)
        for i, p in enumerate(cells)]).astype(jnp.bfloat16)                  # (3, 9C, 2C)
    convb = jnp.stack([p["conv_b"] for p in cells])                          # (3, 1, C)
    wqkv = jnp.stack([jnp.concatenate([p["wq"], p["wk"], p["wv"]], axis=-1)
                      for p in cells]).astype(jnp.bfloat16)                  # (3, C, 3C)
    bqkv = jnp.stack([jnp.concatenate([p["bq"], p["bk"], p["bv"]], axis=-1)
                      for p in cells])                                       # (3, 1, 3C)
    wo = jnp.stack([p["wo"] for p in cells]).astype(jnp.bfloat16)            # (3, C, C)
    bo = jnp.stack([p["bo"] for p in cells])                                 # (3, 1, C)
    fcw = jnp.zeros((C, NC_PAD), jnp.bfloat16).at[:, :NUM_CLASSES].set(
        params["fc_w"].astype(jnp.bfloat16))
    fcb = jnp.zeros((1, NC_PAD), jnp.float32).at[:, :NUM_CLASSES].set(params["fc_b"])

    cmap3 = lambda b: (0, 0, 0)   # weights: constant block -> stay resident
    cmap2 = lambda b: (0, 0)

    logits_pad = pl.pallas_call(
        darts_fused_kernel,
        out_shape=jax.ShapeDtypeStruct((B, 1, NC_PAD), jnp.float32),
        grid=(B,),
        in_specs=[
            pl.BlockSpec(memory_space=pltpu.MemorySpace.SMEM),               # mixture wts
            pl.BlockSpec((1, H, W, C), lambda b: (b, 0, 0, 0)),              # x (per batch)
            pl.BlockSpec((NUM_BLOCKS, 9 * C, 2 * C), cmap3),                 # convw+pool
            pl.BlockSpec((NUM_BLOCKS, 1, C), cmap3),                         # convb
            pl.BlockSpec((NUM_BLOCKS, C, 3 * C), cmap3),                     # wqkv
            pl.BlockSpec((NUM_BLOCKS, 1, 3 * C), cmap3),                     # bqkv
            pl.BlockSpec((NUM_BLOCKS, C, C), cmap3),                         # wo
            pl.BlockSpec((NUM_BLOCKS, 1, C), cmap3),                         # bo
            pl.BlockSpec((C, NC_PAD), cmap2),                                # fc_w
            pl.BlockSpec((1, NC_PAD), cmap2),                                # fc_b
        ],
        out_specs=pl.BlockSpec((1, 1, NC_PAD), lambda b: (b, 0, 0)),
        scratch_shapes=[pltpu.VMEM((1, H + 2, W + 2, C), jnp.float32)],
        compiler_params=pltpu.CompilerParams(
            dimension_semantics=("parallel",)),       # batch sharded across TCs (v7x)
    )(w_mix, x, convw, convb, wqkv, bqkv, wo, bo, fcw, fcb)

    return logits_pad[:, 0, :NUM_CLASSES]


# ---------------------------------------------------------------------------
# Parameter init (deterministic, synthetic).
# ---------------------------------------------------------------------------
def init_cell_params(key, cin):
    ks = jax.random.split(key, 5)
    s = 0.1
    return dict(
        alpha=jnp.zeros((3,), jnp.float32),   # matches nn.Parameter(torch.zeros(3))
        conv_w=s * jax.random.normal(ks[0], (9, cin, C), jnp.float32),
        conv_b=jnp.zeros((1, C), jnp.float32),
        wq=s * jax.random.normal(ks[1], (cin, C), jnp.float32),
        bq=jnp.zeros((1, C), jnp.float32),
        wk=s * jax.random.normal(ks[2], (cin, C), jnp.float32),
        bk=jnp.zeros((1, C), jnp.float32),
        wv=s * jax.random.normal(ks[3], (cin, C), jnp.float32),
        bv=jnp.zeros((1, C), jnp.float32),
        wo=s * jax.random.normal(ks[4], (C, C), jnp.float32),
        bo=jnp.zeros((1, C), jnp.float32),
    )


def init_network_params(key, in_channels, num_classes):
    keys = jax.random.split(key, NUM_BLOCKS + 1)
    cells = [init_cell_params(keys[i], in_channels if i == 0 else C)
             for i in range(NUM_BLOCKS)]
    fc_w = 0.1 * jax.random.normal(keys[-1], (C, num_classes), jnp.float32)
    fc_b = jnp.zeros((1, num_classes), jnp.float32)
    return dict(cells=cells, fc_w=fc_w, fc_b=fc_b)


# ---------------------------------------------------------------------------
# Pure-JAX reference (f32) for a correctness sanity check.
# ---------------------------------------------------------------------------
def reference_forward(x_nchw, params):
    x = jnp.transpose(x_nchw, (0, 2, 3, 1)).astype(jnp.float32)
    for p in params["cells"]:
        B, H, W, Cin = x.shape
        xp = jnp.pad(x, ((0, 0), (1, 1), (1, 1), (0, 0)))
        taps = [xp[:, dh:dh + H, dw:dw + W, :] for dh in range(3) for dw in range(3)]
        conv = sum(jnp.einsum('bhwc,cd->bhwd', taps[k], p["conv_w"][k]) for k in range(9))
        conv = jnp.maximum(conv + p["conv_b"][0], 0.0)
        tok = x.reshape(B, H * W, Cin)
        q = tok @ p["wq"] + p["bq"]
        k_ = tok @ p["wk"] + p["bk"]
        v = tok @ p["wv"] + p["bv"]
        s = jnp.einsum('bqd,bkd->bqk', q, k_) / math.sqrt(C)
        a = jax.nn.softmax(s, axis=-1)
        trans = (jnp.einsum('bqk,bkd->bqd', a, v) @ p["wo"] + p["bo"]).reshape(B, H, W, C)
        pool = sum(taps) / 9.0
        wm = jax.nn.softmax(p["alpha"])
        x = wm[0] * conv + wm[1] * trans + wm[2] * pool
    pooled = jnp.mean(x, axis=(1, 2))
    return pooled @ params["fc_w"] + params["fc_b"][0]


if __name__ == "__main__":
    key = jax.random.PRNGKey(0)
    k_x, k_p = jax.random.split(key)

    B, IN_CH, H, W = 2, C, 8, 8          # in_channels must be 64 (see note above)
    x = jax.random.normal(k_x, (B, IN_CH, H, W), jnp.float32)   # NCHW like PyTorch
    params = init_network_params(k_p, IN_CH, NUM_CLASSES)

    logits = darts_network(x, params)
    jax.block_until_ready(logits)
    assert logits.shape == (B, NUM_CLASSES)

    # sanity check against the f32 pure-JAX reference (kernel uses bf16 matmul
    # inputs with f32 accumulation, hence the loose tolerance)
    ref = reference_forward(x, params)
    assert float(jnp.max(jnp.abs(logits - ref))) < 0.2

    print("KERNEL_OK")
</pallas_src>

<mosaic_0001>
module attributes {stable_mosaic.version = 11 : i64} {
  func.func @darts_fused_kernel(%arg0: i32, %arg1: memref<3x3xf32, #tpu.memory_space<smem>>, %arg2: memref<1x8x8x64xf32, #tpu.memory_space<vmem>>, %arg3: memref<3x576x128xbf16, #tpu.memory_space<vmem>>, %arg4: memref<3x1x64xf32, #tpu.memory_space<vmem>>, %arg5: memref<3x64x192xbf16, #tpu.memory_space<vmem>>, %arg6: memref<3x1x192xf32, #tpu.memory_space<vmem>>, %arg7: memref<3x64x64xbf16, #tpu.memory_space<vmem>>, %arg8: memref<3x1x64xf32, #tpu.memory_space<vmem>>, %arg9: memref<64x128xbf16, #tpu.memory_space<vmem>>, %arg10: memref<1x128xf32, #tpu.memory_space<vmem>>, %arg11: memref<1x1x128xf32, #tpu.memory_space<vmem>>, %arg12: memref<1x10x10x64xf32, #tpu.memory_space<vmem>>) attributes {dimension_semantics = [#tpu.dimension_semantics<parallel>], iteration_bounds = array<i64: 2>, scalar_prefetch = 0 : i64, scratch_operands = 1 : i64, tpu.core_type = #tpu.core_type<tc>, window_params = [{transform_indices = @transform_0, window_bounds = array<i64: 3, 3>}, {transform_indices = @transform_1, window_bounds = array<i64: 1, 8, 8, 64>}, {pipeline_mode = #tpu.pipeline_mode<synchronous>, transform_indices = @transform_2, window_bounds = array<i64: 3, 576, 128>}, {pipeline_mode = #tpu.pipeline_mode<synchronous>, transform_indices = @transform_3, window_bounds = array<i64: 3, 1, 64>}, {pipeline_mode = #tpu.pipeline_mode<synchronous>, transform_indices = @transform_4, window_bounds = array<i64: 3, 64, 192>}, {pipeline_mode = #tpu.pipeline_mode<synchronous>, transform_indices = @transform_5, window_bounds = array<i64: 3, 1, 192>}, {pipeline_mode = #tpu.pipeline_mode<synchronous>, transform_indices = @transform_6, window_bounds = array<i64: 3, 64, 64>}, {pipeline_mode = #tpu.pipeline_mode<synchronous>, transform_indices = @transform_7, window_bounds = array<i64: 3, 1, 64>}, {pipeline_mode = #tpu.pipeline_mode<synchronous>, transform_indices = @transform_8, window_bounds = array<i64: 64, 128>}, {pipeline_mode = #tpu.pipeline_mode<synchronous>, transform_indices = @transform_9, window_bounds = array<i64: 1, 128>}, {transform_indices = @transform_10, window_bounds = array<i64: 1, 1, 128>}]} {
    %cst = arith.constant 0.000000e+00 : f32
    %0 = vector.broadcast %cst : f32 to vector<1x1x10x64xf32>
    %c0 = arith.constant 0 : index
    %c0_0 = arith.constant 0 : index
    %c0_1 = arith.constant 0 : index
    %c0_2 = arith.constant 0 : index
    %1 = vector.load %arg12[%c0, %c0_0, %c0_1, %c0_2] : memref<1x10x10x64xf32, #tpu.memory_space<vmem>>, vector<1x1x10x64xf32>
    tpu.vector_store %arg12[%c0, %c0_0, %c0_1, %c0_2], %0 {strides = array<i32>} : memref<1x10x10x64xf32, #tpu.memory_space<vmem>>, vector<1x1x10x64xf32>,
    %cst_3 = arith.constant 0.000000e+00 : f32
    %2 = vector.broadcast %cst_3 : f32 to vector<1x1x10x64xf32>
    %c0_4 = arith.constant 0 : index
    %c9 = arith.constant 9 : index
    %c0_5 = arith.constant 0 : index
    %c0_6 = arith.constant 0 : index
    %3 = vector.load %arg12[%c0_4, %c9, %c0_5, %c0_6] : memref<1x10x10x64xf32, #tpu.memory_space<vmem>>, vector<1x1x10x64xf32>
    tpu.vector_store %arg12[%c0_4, %c9, %c0_5, %c0_6], %2 {strides = array<i32>} : memref<1x10x10x64xf32, #tpu.memory_space<vmem>>, vector<1x1x10x64xf32>,
    %cst_7 = arith.constant 0.000000e+00 : f32
    %4 = vector.broadcast %cst_7 : f32 to vector<1x10x1x64xf32>
    %c0_8 = arith.constant 0 : index
    %c0_9 = arith.constant 0 : index
    %c0_10 = arith.constant 0 : index
    %c0_11 = arith.constant 0 : index
    %5 = vector.load %arg12[%c0_8, %c0_9, %c0_10, %c0_11] : memref<1x10x10x64xf32, #tpu.memory_space<vmem>>, vector<1x10x1x64xf32>
    tpu.vector_store %arg12[%c0_8, %c0_9, %c0_10, %c0_11], %4 {strides = array<i32>} : memref<1x10x10x64xf32, #tpu.memory_space<vmem>>, vector<1x10x1x64xf32>,
    %cst_12 = arith.constant 0.000000e+00 : f32
    %6 = vector.broadcast %cst_12 : f32 to vector<1x10x1x64xf32>
    %c0_13 = arith.constant 0 : index
    %c0_14 = arith.constant 0 : index
    %c9_15 = arith.constant 9 : index
    %c0_16 = arith.constant 0 : index
    %7 = vector.load %arg12[%c0_13, %c0_14, %c9_15, %c0_16] : memref<1x10x10x64xf32, #tpu.memory_space<vmem>>, vector<1x10x1x64xf32>
    tpu.vector_store %arg12[%c0_13, %c0_14, %c9_15, %c0_16], %6 {strides = array<i32>} : memref<1x10x10x64xf32, #tpu.memory_space<vmem>>, vector<1x10x1x64xf32>,
    %c0_17 = arith.constant 0 : index
    %c0_18 = arith.constant 0 : index
    %c0_19 = arith.constant 0 : index
    %c0_20 = arith.constant 0 : index
    %8 = vector.load %arg2[%c0_17, %c0_18, %c0_19, %c0_20] : memref<1x8x8x64xf32, #tpu.memory_space<vmem>>, vector<1x8x8x64xf32>
    %c0_21 = arith.constant 0 : index
    %c1 = arith.constant 1 : index
    %c1_22 = arith.constant 1 : index
    %c0_23 = arith.constant 0 : index
    %9 = vector.load %arg12[%c0_21, %c1, %c1_22, %c0_23] : memref<1x10x10x64xf32, #tpu.memory_space<vmem>>, vector<1x8x8x64xf32>
    tpu.vector_store %arg12[%c0_21, %c1, %c1_22, %c0_23], %8 {strides = array<i32>} : memref<1x10x10x64xf32, #tpu.memory_space<vmem>>, vector<1x8x8x64xf32>,
    %c0_24 = arith.constant 0 : index
    %c0_25 = arith.constant 0 : index
    %c0_26 = arith.constant 0 : index
    %c0_27 = arith.constant 0 : index
    %10 = vector.load %arg12[%c0_24, %c0_25, %c0_26, %c0_27] : memref<1x10x10x64xf32, #tpu.memory_space<vmem>>, vector<1x8x8x64xf32>
    %11 = arith.truncf %10 : vector<1x8x8x64xf32> to vector<1x8x8x64xbf16>
    %12 = vector.shape_cast %11 : vector<1x8x8x64xbf16> to vector<64x64xbf16>
    %c0_28 = arith.constant 0 : index
    %c0_29 = arith.constant 0 : index
    %c1_30 = arith.constant 1 : index
    %c0_31 = arith.constant 0 : index
    %13 = vector.load %arg12[%c0_28, %c0_29, %c1_30, %c0_31] : memref<1x10x10x64xf32, #tpu.memory_space<vmem>>, vector<1x8x8x64xf32>
    %14 = arith.truncf %13 : vector<1x8x8x64xf32> to vector<1x8x8x64xbf16>
    %15 = vector.shape_cast %14 : vector<1x8x8x64xbf16> to vector<64x64xbf16>
    %c0_32 = arith.constant 0 : index
    %c0_33 = arith.constant 0 : index
    %c2 = arith.constant 2 : index
    %c0_34 = arith.constant 0 : index
    %16 = vector.load %arg12[%c0_32, %c0_33, %c2, %c0_34] : memref<1x10x10x64xf32, #tpu.memory_space<vmem>>, vector<1x8x8x64xf32>
    %17 = arith.truncf %16 : vector<1x8x8x64xf32> to vector<1x8x8x64xbf16>
    %18 = vector.shape_cast %17 : vector<1x8x8x64xbf16> to vector<64x64xbf16>
    %c0_35 = arith.constant 0 : index
    %c1_36 = arith.constant 1 : index
    %c0_37 = arith.constant 0 : index
    %c0_38 = arith.constant 0 : index
    %19 = vector.load %arg12[%c0_35, %c1_36, %c0_37, %c0_38] : memref<1x10x10x64xf32, #tpu.memory_space<vmem>>, vector<1x8x8x64xf32>
    %20 = arith.truncf %19 : vector<1x8x8x64xf32> to vector<1x8x8x64xbf16>
    %21 = vector.shape_cast %20 : vector<1x8x8x64xbf16> to vector<64x64xbf16>
    %c0_39 = arith.constant 0 : index
    %c1_40 = arith.constant 1 : index
    %c1_41 = arith.constant 1 : index
    %c0_42 = arith.constant 0 : index
    %22 = vector.load %arg12[%c0_39, %c1_40, %c1_41, %c0_42] : memref<1x10x10x64xf32, #tpu.memory_space<vmem>>, vector<1x8x8x64xf32>
    %23 = arith.truncf %22 : vector<1x8x8x64xf32> to vector<1x8x8x64xbf16>
    %24 = vector.shape_cast %23 : vector<1x8x8x64xbf16> to vector<64x64xbf16>
    %c0_43 = arith.constant 0 : index
    %c1_44 = arith.constant 1 : index
    %c2_45 = arith.constant 2 : index
    %c0_46 = arith.constant 0 : index
    %25 = vector.load %arg12[%c0_43, %c1_44, %c2_45, %c0_46] : memref<1x10x10x64xf32, #tpu.memory_space<vmem>>, vector<1x8x8x64xf32>
    %26 = arith.truncf %25 : vector<1x8x8x64xf32> to vector<1x8x8x64xbf16>
    %27 = vector.shape_cast %26 : vector<1x8x8x64xbf16> to vector<64x64xbf16>
    %c0_47 = arith.constant 0 : index
    %c2_48 = arith.constant 2 : index
    %c0_49 = arith.constant 0 : index
    %c0_50 = arith.constant 0 : index
    %28 = vector.load %arg12[%c0_47, %c2_48, %c0_49, %c0_50] : memref<1x10x10x64xf32, #tpu.memory_space<vmem>>, vector<1x8x8x64xf32>
    %29 = arith.truncf %28 : vector<1x8x8x64xf32> to vector<1x8x8x64xbf16>
    %30 = vector.shape_cast %29 : vector<1x8x8x64xbf16> to vector<64x64xbf16>
    %c0_51 = arith.constant 0 : index
    %c2_52 = arith.constant 2 : index
    %c1_53 = arith.constant 1 : index
    %c0_54 = arith.constant 0 : index
    %31 = vector.load %arg12[%c0_51, %c2_52, %c1_53, %c0_54] : memref<1x10x10x64xf32, #tpu.memory_space<vmem>>, vector<1x8x8x64xf32>
    %32 = arith.truncf %31 : vector<1x8x8x64xf32> to vector<1x8x8x64xbf16>
    %33 = vector.shape_cast %32 : vector<1x8x8x64xbf16> to vector<64x64xbf16>
    %c0_55 = arith.constant 0 : index
    %c2_56 = arith.constant 2 : index
    %c2_57 = arith.constant 2 : index
    %c0_58 = arith.constant 0 : index
    %34 = vector.load %arg12[%c0_55, %c2_56, %c2_57, %c0_58] : memref<1x10x10x64xf32, #tpu.memory_space<vmem>>, vector<1x8x8x64xf32>
    %35 = arith.truncf %34 : vector<1x8x8x64xf32> to vector<1x8x8x64xbf16>
    %36 = vector.shape_cast %35 : vector<1x8x8x64xbf16> to vector<64x64xbf16>
    %37 = tpu.concatenate %12, %15, %18, %21, %24, %27, %30, %33, %36 in 1 : vector<64x64xbf16>, vector<64x64xbf16>, vector<64x64xbf16>, vector<64x64xbf16>, vector<64x64xbf16>, vector<64x64xbf16>, vector<64x64xbf16>, vector<64x64xbf16>, vector<64x64xbf16> -> vector<64x576xbf16>
    %c0_59 = arith.constant 0 : index
    %c0_60 = arith.constant 0 : index
    %c0_61 = arith.constant 0 : index
    %38 = vector.load %arg3[%c0_59, %c0_60, %c0_61] : memref<3x576x128xbf16, #tpu.memory_space<vmem>>, vector<1x576x128xbf16>
    %39 = vector.shape_cast %38 : vector<1x576x128xbf16> to vector<576x128xbf16>
    %cst_62 = arith.constant dense<0.000000e+00> : vector<64x128xf32>
    %40 = tpu.matmul %37, %39, %cst_62 {dimension_numbers = #tpu.dot_dimension_numbers<[1], [0], [0], [1], [0, 0, 1, 1], [], []>} : vector<64x576xbf16>, vector<576x128xbf16>, vector<64x128xf32> -> vector<64x128xf32>
    %41 = vector.extract_strided_slice %40 {offsets = [0, 0], sizes = [64, 64], strides = [1, 1]} : vector<64x128xf32> to vector<64x64xf32>
    %c0_63 = arith.constant 0 : index
    %c0_64 = arith.constant 0 : index
    %c0_65 = arith.constant 0 : index
    %42 = vector.load %arg4[%c0_63, %c0_64, %c0_65] : memref<3x1x64xf32, #tpu.memory_space<vmem>>, vector<1x1x64xf32>
    %43 = vector.shape_cast %42 : vector<1x1x64xf32> to vector<1x64xf32>
    %44 = vector.broadcast %43 : vector<1x64xf32> to vector<64x64xf32>
    %45 = arith.addf %41, %44 : vector<64x64xf32>
    %cst_66 = arith.constant 0.000000e+00 : f32
    %46 = vector.broadcast %cst_66 : f32 to vector<64x64xf32>
    %47 = arith.maximumf %45, %46 : vector<64x64xf32>
    %48 = vector.extract_strided_slice %40 {offsets = [0, 64], sizes = [64, 64], strides = [1, 1]} : vector<64x128xf32> to vector<64x64xf32>
    %c0_67 = arith.constant 0 : index
    %c1_68 = arith.constant 1 : index
    %c1_69 = arith.constant 1 : index
    %c0_70 = arith.constant 0 : index
    %49 = vector.load %arg12[%c0_67, %c1_68, %c1_69, %c0_70] : memref<1x10x10x64xf32, #tpu.memory_space<vmem>>, vector<1x8x8x64xf32>
    %50 = arith.truncf %49 : vector<1x8x8x64xf32> to vector<1x8x8x64xbf16>
    %51 = vector.shape_cast %50 : vector<1x8x8x64xbf16> to vector<64x64xbf16>
    %c0_71 = arith.constant 0 : index
    %c0_72 = arith.constant 0 : index
    %c0_73 = arith.constant 0 : index
    %52 = vector.load %arg5[%c0_71, %c0_72, %c0_73] : memref<3x64x192xbf16, #tpu.memory_space<vmem>>, vector<1x64x192xbf16>
    %53 = vector.shape_cast %52 : vector<1x64x192xbf16> to vector<64x192xbf16>
    %cst_74 = arith.constant dense<0.000000e+00> : vector<64x192xf32>
    %54 = tpu.matmul %51, %53, %cst_74 {dimension_numbers = #tpu.dot_dimension_numbers<[1], [0], [0], [1], [0, 0, 1, 1], [], []>} : vector<64x64xbf16>, vector<64x192xbf16>, vector<64x192xf32> -> vector<64x192xf32>
    %c0_75 = arith.constant 0 : index
    %c0_76 = arith.constant 0 : index
    %c0_77 = arith.constant 0 : index
    %55 = vector.load %arg6[%c0_75, %c0_76, %c0_77] : memref<3x1x192xf32, #tpu.memory_space<vmem>>, vector<1x1x192xf32>
    %56 = vector.shape_cast %55 : vector<1x1x192xf32> to vector<1x192xf32>
    %57 = vector.broadcast %56 : vector<1x192xf32> to vector<64x192xf32>
    %58 = arith.addf %54, %57 : vector<64x192xf32>
    %59 = vector.extract_strided_slice %58 {offsets = [0, 0], sizes = [64, 64], strides = [1, 1]} : vector<64x192xf32> to vector<64x64xf32>
    %60 = vector.shape_cast %59 : vector<64x64xf32> to vector<1x64x64xf32>
    %61 = arith.truncf %60 : vector<1x64x64xf32> to vector<1x64x64xbf16>
    %62 = vector.extract_strided_slice %58 {offsets = [0, 64], sizes = [64, 64], strides = [1, 1]} : vector<64x192xf32> to vector<64x64xf32>
    %63 = vector.shape_cast %62 : vector<64x64xf32> to vector<1x64x64xf32>
    %64 = arith.truncf %63 : vector<1x64x64xf32> to vector<1x64x64xbf16>
    %65 = vector.extract_strided_slice %58 {offsets = [0, 128], sizes = [64, 64], strides = [1, 1]} : vector<64x192xf32> to vector<64x64xf32>
    %66 = vector.shape_cast %65 : vector<64x64xf32> to vector<1x64x64xf32>
    %67 = arith.truncf %66 : vector<1x64x64xf32> to vector<1x64x64xbf16>
    %cst_78 = arith.constant dense<0.000000e+00> : vector<1x64x64xf32>
    %68 = tpu.matmul %61, %64, %cst_78 {dimension_numbers = #tpu.dot_dimension_numbers<[2], [2], [1], [1], [0, 0, 0, 1, 1, 1], [0], [0]>} : vector<1x64x64xbf16>, vector<1x64x64xbf16>, vector<1x64x64xf32> -> vector<1x64x64xf32>
    %cst_79 = arith.constant 1.250000e-01 : f32
    %69 = vector.broadcast %cst_79 : f32 to vector<1x64x64xf32>
    %70 = arith.mulf %68, %69 : vector<1x64x64xf32>
    %cst_80 = arith.constant dense<0xFF800000> : vector<1x64xf32>
    %71 = vector.multi_reduction <maximumf>, %70, %cst_80 [2] : vector<1x64x64xf32> to vector<1x64xf32>
    %72 = vector.shape_cast %71 : vector<1x64xf32> to vector<1x64x1xf32>
    %73 = vector.broadcast %72 : vector<1x64x1xf32> to vector<1x64x64xf32>
    %74 = arith.subf %70, %73 : vector<1x64x64xf32>
    %75 = math.exp %74 : vector<1x64x64xf32>
    %cst_81 = arith.constant dense<0.000000e+00> : vector<1x64xf32>
    %76 = vector.multi_reduction <add>, %75, %cst_81 [2] : vector<1x64x64xf32> to vector<1x64xf32>
    %77 = vector.shape_cast %76 : vector<1x64xf32> to vector<1x64x1xf32>
    %78 = tpu.reciprocal %77 {approx = true} : vector<1x64x1xf32> -> vector<1x64x1xf32>
    %79 = vector.broadcast %78 : vector<1x64x1xf32> to vector<1x64x64xf32>
    %80 = arith.mulf %75, %79 : vector<1x64x64xf32>
    %81 = arith.truncf %80 : vector<1x64x64xf32> to vector<1x64x64xbf16>
    %cst_82 = arith.constant dense<0.000000e+00> : vector<1x64x64xf32>
    %82 = tpu.matmul %81, %67, %cst_82 {dimension_numbers = #tpu.dot_dimension_numbers<[2], [1], [1], [2], [0, 0, 0, 1, 1, 2], [0], [0]>} : vector<1x64x64xbf16>, vector<1x64x64xbf16>, vector<1x64x64xf32> -> vector<1x64x64xf32>
    %83 = vector.shape_cast %82 : vector<1x64x64xf32> to vector<64x64xf32>
    %84 = arith.truncf %83 : vector<64x64xf32> to vector<64x64xbf16>
    %c0_83 = arith.constant 0 : index
    %c0_84 = arith.constant 0 : index
    %c0_85 = arith.constant 0 : index
    %85 = vector.load %arg7[%c0_83, %c0_84, %c0_85] : memref<3x64x64xbf16, #tpu.memory_space<vmem>>, vector<1x64x64xbf16>
    %86 = vector.shape_cast %85 : vector<1x64x64xbf16> to vector<64x64xbf16>
    %cst_86 = arith.constant dense<0.000000e+00> : vector<64x64xf32>
    %87 = tpu.matmul %84, %86, %cst_86 {dimension_numbers = #tpu.dot_dimension_numbers<[1], [0], [0], [1], [0, 0, 1, 1], [], []>} : vector<64x64xbf16>, vector<64x64xbf16>, vector<64x64xf32> -> vector<64x64xf32>
    %c0_87 = arith.constant 0 : index
    %c0_88 = arith.constant 0 : index
    %c0_89 = arith.constant 0 : index
    %88 = vector.load %arg8[%c0_87, %c0_88, %c0_89] : memref<3x1x64xf32, #tpu.memory_space<vmem>>, vector<1x1x64xf32>
    %89 = vector.shape_cast %88 : vector<1x1x64xf32> to vector<1x64xf32>
    %90 = vector.broadcast %89 : vector<1x64xf32> to vector<64x64xf32>
    %91 = arith.addf %87, %90 : vector<64x64xf32>
    %c0_90 = arith.constant 0 : index
    %c0_91 = arith.constant 0 : index
    %92 = memref.load %arg1[%c0_90, %c0_91] : memref<3x3xf32, #tpu.memory_space<smem>>
    %93 = vector.broadcast %92 : f32 to vector<64x64xf32>
    %94 = arith.mulf %93, %47 : vector<64x64xf32>
    %c0_92 = arith.constant 0 : index
    %c1_93 = arith.constant 1 : index
    %95 = memref.load %arg1[%c0_92, %c1_93] : memref<3x3xf32, #tpu.memory_space<smem>>
    %96 = vector.broadcast %95 : f32 to vector<64x64xf32>
    %97 = arith.mulf %96, %91 : vector<64x64xf32>
    %98 = arith.addf %94, %97 : vector<64x64xf32>
    %99 = arith.addf %98, %48 : vector<64x64xf32>
    %100 = vector.shape_cast %99 : vector<64x64xf32> to vector<1x8x8x64xf32>
    %c0_94 = arith.constant 0 : index
    %c1_95 = arith.constant 1 : index
    %c1_96 = arith.constant 1 : index
    %c0_97 = arith.constant 0 : index
    %101 = vector.load %arg12[%c0_94, %c1_95, %c1_96, %c0_97] : memref<1x10x10x64xf32, #tpu.memory_space<vmem>>, vector<1x8x8x64xf32>
    tpu.vector_store %arg12[%c0_94, %c1_95, %c1_96, %c0_97], %100 {strides = array<i32>} : memref<1x10x10x64xf32, #tpu.memory_space<vmem>>, vector<1x8x8x64xf32>,
    %c0_98 = arith.constant 0 : index
    %c0_99 = arith.constant 0 : index
    %c0_100 = arith.constant 0 : index
    %c0_101 = arith.constant 0 : index
    %102 = vector.load %arg12[%c0_98, %c0_99, %c0_100, %c0_101] : memref<1x10x10x64xf32, #tpu.memory_space<vmem>>, vector<1x8x8x64xf32>
    %103 = arith.truncf %102 : vector<1x8x8x64xf32> to vector<1x8x8x64xbf16>
    %104 = vector.shape_cast %103 : vector<1x8x8x64xbf16> to vector<64x64xbf16>
    %c0_102 = arith.constant 0 : index
    %c0_103 = arith.constant 0 : index
    %c1_104 = arith.constant 1 : index
    %c0_105 = arith.constant 0 : index
    %105 = vector.load %arg12[%c0_102, %c0_103, %c1_104, %c0_105] : memref<1x10x10x64xf32, #tpu.memory_space<vmem>>, vector<1x8x8x64xf32>
    %106 = arith.truncf %105 : vector<1x8x8x64xf32> to vector<1x8x8x64xbf16>
    %107 = vector.shape_cast %106 : vector<1x8x8x64xbf16> to vector<64x64xbf16>
    %c0_106 = arith.constant 0 : index
    %c0_107 = arith.constant 0 : index
    %c2_108 = arith.constant 2 : index
    %c0_109 = arith.constant 0 : index
    %108 = vector.load %arg12[%c0_106, %c0_107, %c2_108, %c0_109] : memref<1x10x10x64xf32, #tpu.memory_space<vmem>>, vector<1x8x8x64xf32>
    %109 = arith.truncf %108 : vector<1x8x8x64xf32> to vector<1x8x8x64xbf16>
    %110 = vector.shape_cast %109 : vector<1x8x8x64xbf16> to vector<64x64xbf16>
    %c0_110 = arith.constant 0 : index
    %c1_111 = arith.constant 1 : index
    %c0_112 = arith.constant 0 : index
    %c0_113 = arith.constant 0 : index
    %111 = vector.load %arg12[%c0_110, %c1_111, %c0_112, %c0_113] : memref<1x10x10x64xf32, #tpu.memory_space<vmem>>, vector<1x8x8x64xf32>
    %112 = arith.truncf %111 : vector<1x8x8x64xf32> to vector<1x8x8x64xbf16>
    %113 = vector.shape_cast %112 : vector<1x8x8x64xbf16> to vector<64x64xbf16>
    %c0_114 = arith.constant 0 : index
    %c1_115 = arith.constant 1 : index
    %c1_116 = arith.constant 1 : index
    %c0_117 = arith.constant 0 : index
    %114 = vector.load %arg12[%c0_114, %c1_115, %c1_116, %c0_117] : memref<1x10x10x64xf32, #tpu.memory_space<vmem>>, vector<1x8x8x64xf32>
    %115 = arith.truncf %114 : vector<1x8x8x64xf32> to vector<1x8x8x64xbf16>
    %116 = vector.shape_cast %115 : vector<1x8x8x64xbf16> to vector<64x64xbf16>
    %c0_118 = arith.constant 0 : index
    %c1_119 = arith.constant 1 : index
    %c2_120 = arith.constant 2 : index
    %c0_121 = arith.constant 0 : index
    %117 = vector.load %arg12[%c0_118, %c1_119, %c2_120, %c0_121] : memref<1x10x10x64xf32, #tpu.memory_space<vmem>>, vector<1x8x8x64xf32>
    %118 = arith.truncf %117 : vector<1x8x8x64xf32> to vector<1x8x8x64xbf16>
    %119 = vector.shape_cast %118 : vector<1x8x8x64xbf16> to vector<64x64xbf16>
    %c0_122 = arith.constant 0 : index
    %c2_123 = arith.constant 2 : index
    %c0_124 = arith.constant 0 : index
    %c0_125 = arith.constant 0 : index
    %120 = vector.load %arg12[%c0_122, %c2_123, %c0_124, %c0_125] : memref<1x10x10x64xf32, #tpu.memory_space<vmem>>, vector<1x8x8x64xf32>
    %121 = arith.truncf %120 : vector<1x8x8x64xf32> to vector<1x8x8x64xbf16>
    %122 = vector.shape_cast %121 : vector<1x8x8x64xbf16> to vector<64x64xbf16>
    %c0_126 = arith.constant 0 : index
    %c2_127 = arith.constant 2 : index
    %c1_128 = arith.constant 1 : index
    %c0_129 = arith.constant 0 : index
    %123 = vector.load %arg12[%c0_126, %c2_127, %c1_128, %c0_129] : memref<1x10x10x64xf32, #tpu.memory_space<vmem>>, vector<1x8x8x64xf32>
    %124 = arith.truncf %123 : vector<1x8x8x64xf32> to vector<1x8x8x64xbf16>
    %125 = vector.shape_cast %124 : vector<1x8x8x64xbf16> to vector<64x64xbf16>
    %c0_130 = arith.constant 0 : index
    %c2_131 = arith.constant 2 : index
    %c2_132 = arith.constant 2 : index
    %c0_133 = arith.constant 0 : index
    %126 = vector.load %arg12[%c0_130, %c2_131, %c2_132, %c0_133] : memref<1x10x10x64xf32, #tpu.memory_space<vmem>>, vector<1x8x8x64xf32>
    %127 = arith.truncf %126 : vector<1x8x8x64xf32> to vector<1x8x8x64xbf16>
    %128 = vector.shape_cast %127 : vector<1x8x8x64xbf16> to vector<64x64xbf16>
    %129 = tpu.concatenate %104, %107, %110, %113, %116, %119, %122, %125, %128 in 1 : vector<64x64xbf16>, vector<64x64xbf16>, vector<64x64xbf16>, vector<64x64xbf16>, vector<64x64xbf16>, vector<64x64xbf16>, vector<64x64xbf16>, vector<64x64xbf16>, vector<64x64xbf16> -> vector<64x576xbf16>
    %c1_134 = arith.constant 1 : index
    %c0_135 = arith.constant 0 : index
    %c0_136 = arith.constant 0 : index
    %130 = vector.load %arg3[%c1_134, %c0_135, %c0_136] : memref<3x576x128xbf16, #tpu.memory_space<vmem>>, vector<1x576x128xbf16>
    %131 = vector.shape_cast %130 : vector<1x576x128xbf16> to vector<576x128xbf16>
    %cst_137 = arith.constant dense<0.000000e+00> : vector<64x128xf32>
    %132 = tpu.matmul %129, %131, %cst_137 {dimension_numbers = #tpu.dot_dimension_numbers<[1], [0], [0], [1], [0, 0, 1, 1], [], []>} : vector<64x576xbf16>, vector<576x128xbf16>, vector<64x128xf32> -> vector<64x128xf32>
    %133 = vector.extract_strided_slice %132 {offsets = [0, 0], sizes = [64, 64], strides = [1, 1]} : vector<64x128xf32> to vector<64x64xf32>
    %c1_138 = arith.constant 1 : index
    %c0_139 = arith.constant 0 : index
    %c0_140 = arith.constant 0 : index
    %134 = vector.load %arg4[%c1_138, %c0_139, %c0_140] : memref<3x1x64xf32, #tpu.memory_space<vmem>>, vector<1x1x64xf32>
    %135 = vector.shape_cast %134 : vector<1x1x64xf32> to vector<1x64xf32>
    %136 = vector.broadcast %135 : vector<1x64xf32> to vector<64x64xf32>
    %137 = arith.addf %133, %136 : vector<64x64xf32>
    %cst_141 = arith.constant 0.000000e+00 : f32
    %138 = vector.broadcast %cst_141 : f32 to vector<64x64xf32>
    %139 = arith.maximumf %137, %138 : vector<64x64xf32>
    %140 = vector.extract_strided_slice %132 {offsets = [0, 64], sizes = [64, 64], strides = [1, 1]} : vector<64x128xf32> to vector<64x64xf32>
    %c0_142 = arith.constant 0 : index
    %c1_143 = arith.constant 1 : index
    %c1_144 = arith.constant 1 : index
    %c0_145 = arith.constant 0 : index
    %141 = vector.load %arg12[%c0_142, %c1_143, %c1_144, %c0_145] : memref<1x10x10x64xf32, #tpu.memory_space<vmem>>, vector<1x8x8x64xf32>
    %142 = arith.truncf %141 : vector<1x8x8x64xf32> to vector<1x8x8x64xbf16>
    %143 = vector.shape_cast %142 : vector<1x8x8x64xbf16> to vector<64x64xbf16>
    %c1_146 = arith.constant 1 : index
    %c0_147 = arith.constant 0 : index
    %c0_148 = arith.constant 0 : index
    %144 = vector.load %arg5[%c1_146, %c0_147, %c0_148] : memref<3x64x192xbf16, #tpu.memory_space<vmem>>, vector<1x64x192xbf16>
    %145 = vector.shape_cast %144 : vector<1x64x192xbf16> to vector<64x192xbf16>
    %cst_149 = arith.constant dense<0.000000e+00> : vector<64x192xf32>
    %146 = tpu.matmul %143, %145, %cst_149 {dimension_numbers = #tpu.dot_dimension_numbers<[1], [0], [0], [1], [0, 0, 1, 1], [], []>} : vector<64x64xbf16>, vector<64x192xbf16>, vector<64x192xf32> -> vector<64x192xf32>
    %c1_150 = arith.constant 1 : index
    %c0_151 = arith.constant 0 : index
    %c0_152 = arith.constant 0 : index
    %147 = vector.load %arg6[%c1_150, %c0_151, %c0_152] : memref<3x1x192xf32, #tpu.memory_space<vmem>>, vector<1x1x192xf32>
    %148 = vector.shape_cast %147 : vector<1x1x192xf32> to vector<1x192xf32>
    %149 = vector.broadcast %148 : vector<1x192xf32> to vector<64x192xf32>
    %150 = arith.addf %146, %149 : vector<64x192xf32>
    %151 = vector.extract_strided_slice %150 {offsets = [0, 0], sizes = [64, 64], strides = [1, 1]} : vector<64x192xf32> to vector<64x64xf32>
    %152 = vector.shape_cast %151 : vector<64x64xf32> to vector<1x64x64xf32>
    %153 = arith.truncf %152 : vector<1x64x64xf32> to vector<1x64x64xbf16>
    %154 = vector.extract_strided_slice %150 {offsets = [0, 64], sizes = [64, 64], strides = [1, 1]} : vector<64x192xf32> to vector<64x64xf32>
    %155 = vector.shape_cast %154 : vector<64x64xf32> to vector<1x64x64xf32>
    %156 = arith.truncf %155 : vector<1x64x64xf32> to vector<1x64x64xbf16>
    %157 = vector.extract_strided_slice %150 {offsets = [0, 128], sizes = [64, 64], strides = [1, 1]} : vector<64x192xf32> to vector<64x64xf32>
    %158 = vector.shape_cast %157 : vector<64x64xf32> to vector<1x64x64xf32>
    %159 = arith.truncf %158 : vector<1x64x64xf32> to vector<1x64x64xbf16>
    %cst_153 = arith.constant dense<0.000000e+00> : vector<1x64x64xf32>
    %160 = tpu.matmul %153, %156, %cst_153 {dimension_numbers = #tpu.dot_dimension_numbers<[2], [2], [1], [1], [0, 0, 0, 1, 1, 1], [0], [0]>} : vector<1x64x64xbf16>, vector<1x64x64xbf16>, vector<1x64x64xf32> -> vector<1x64x64xf32>
    %cst_154 = arith.constant 1.250000e-01 : f32
    %161 = vector.broadcast %cst_154 : f32 to vector<1x64x64xf32>
    %162 = arith.mulf %160, %161 : vector<1x64x64xf32>
    %cst_155 = arith.constant dense<0xFF800000> : vector<1x64xf32>
    %163 = vector.multi_reduction <maximumf>, %162, %cst_155 [2] : vector<1x64x64xf32> to vector<1x64xf32>
    %164 = vector.shape_cast %163 : vector<1x64xf32> to vector<1x64x1xf32>
    %165 = vector.broadcast %164 : vector<1x64x1xf32> to vector<1x64x64xf32>
    %166 = arith.subf %162, %165 : vector<1x64x64xf32>
    %167 = math.exp %166 : vector<1x64x64xf32>
    %cst_156 = arith.constant dense<0.000000e+00> : vector<1x64xf32>
    %168 = vector.multi_reduction <add>, %167, %cst_156 [2] : vector<1x64x64xf32> to vector<1x64xf32>
    %169 = vector.shape_cast %168 : vector<1x64xf32> to vector<1x64x1xf32>
    %170 = tpu.reciprocal %169 {approx = true} : vector<1x64x1xf32> -> vector<1x64x1xf32>
    %171 = vector.broadcast %170 : vector<1x64x1xf32> to vector<1x64x64xf32>
    %172 = arith.mulf %167, %171 : vector<1x64x64xf32>
    %173 = arith.truncf %172 : vector<1x64x64xf32> to vector<1x64x64xbf16>
    %cst_157 = arith.constant dense<0.000000e+00> : vector<1x64x64xf32>
    %174 = tpu.matmul %173, %159, %cst_157 {dimension_numbers = #tpu.dot_dimension_numbers<[2], [1], [1], [2], [0, 0, 0, 1, 1, 2], [0], [0]>} : vector<1x64x64xbf16>, vector<1x64x64xbf16>, vector<1x64x64xf32> -> vector<1x64x64xf32>
    %175 = vector.shape_cast %174 : vector<1x64x64xf32> to vector<64x64xf32>
    %176 = arith.truncf %175 : vector<64x64xf32> to vector<64x64xbf16>
    %c1_158 = arith.constant 1 : index
    %c0_159 = arith.constant 0 : index
    %c0_160 = arith.constant 0 : index
    %177 = vector.load %arg7[%c1_158, %c0_159, %c0_160] : memref<3x64x64xbf16, #tpu.memory_space<vmem>>, vector<1x64x64xbf16>
    %178 = vector.shape_cast %177 : vector<1x64x64xbf16> to vector<64x64xbf16>
    %cst_161 = arith.constant dense<0.000000e+00> : vector<64x64xf32>
    %179 = tpu.matmul %176, %178, %cst_161 {dimension_numbers = #tpu.dot_dimension_numbers<[1], [0], [0], [1], [0, 0, 1, 1], [], []>} : vector<64x64xbf16>, vector<64x64xbf16>, vector<64x64xf32> -> vector<64x64xf32>
    %c1_162 = arith.constant 1 : index
    %c0_163 = arith.constant 0 : index
    %c0_164 = arith.constant 0 : index
    %180 = vector.load %arg8[%c1_162, %c0_163, %c0_164] : memref<3x1x64xf32, #tpu.memory_space<vmem>>, vector<1x1x64xf32>
    %181 = vector.shape_cast %180 : vector<1x1x64xf32> to vector<1x64xf32>
    %182 = vector.broadcast %181 : vector<1x64xf32> to vector<64x64xf32>
    %183 = arith.addf %179, %182 : vector<64x64xf32>
    %c1_165 = arith.constant 1 : index
    %c0_166 = arith.constant 0 : index
    %184 = memref.load %arg1[%c1_165, %c0_166] : memref<3x3xf32, #tpu.memory_space<smem>>
    %185 = vector.broadcast %184 : f32 to vector<64x64xf32>
    %186 = arith.mulf %185, %139 : vector<64x64xf32>
    %c1_167 = arith.constant 1 : index
    %c1_168 = arith.constant 1 : index
    %187 = memref.load %arg1[%c1_167, %c1_168] : memref<3x3xf32, #tpu.memory_space<smem>>
    %188 = vector.broadcast %187 : f32 to vector<64x64xf32>
    %189 = arith.mulf %188, %183 : vector<64x64xf32>
    %190 = arith.addf %186, %189 : vector<64x64xf32>
    %191 = arith.addf %190, %140 : vector<64x64xf32>
    %192 = vector.shape_cast %191 : vector<64x64xf32> to vector<1x8x8x64xf32>
    %c0_169 = arith.constant 0 : index
    %c1_170 = arith.constant 1 : index
    %c1_171 = arith.constant 1 : index
    %c0_172 = arith.constant 0 : index
    %193 = vector.load %arg12[%c0_169, %c1_170, %c1_171, %c0_172] : memref<1x10x10x64xf32, #tpu.memory_space<vmem>>, vector<1x8x8x64xf32>
    tpu.vector_store %arg12[%c0_169, %c1_170, %c1_171, %c0_172], %192 {strides = array<i32>} : memref<1x10x10x64xf32, #tpu.memory_space<vmem>>, vector<1x8x8x64xf32>,
    %c0_173 = arith.constant 0 : index
    %c0_174 = arith.constant 0 : index
    %c0_175 = arith.constant 0 : index
    %c0_176 = arith.constant 0 : index
    %194 = vector.load %arg12[%c0_173, %c0_174, %c0_175, %c0_176] : memref<1x10x10x64xf32, #tpu.memory_space<vmem>>, vector<1x8x8x64xf32>
    %195 = arith.truncf %194 : vector<1x8x8x64xf32> to vector<1x8x8x64xbf16>
    %196 = vector.shape_cast %195 : vector<1x8x8x64xbf16> to vector<64x64xbf16>
    %c0_177 = arith.constant 0 : index
    %c0_178 = arith.constant 0 : index
    %c1_179 = arith.constant 1 : index
    %c0_180 = arith.constant 0 : index
    %197 = vector.load %arg12[%c0_177, %c0_178, %c1_179, %c0_180] : memref<1x10x10x64xf32, #tpu.memory_space<vmem>>, vector<1x8x8x64xf32>
    %198 = arith.truncf %197 : vector<1x8x8x64xf32> to vector<1x8x8x64xbf16>
    %199 = vector.shape_cast %198 : vector<1x8x8x64xbf16> to vector<64x64xbf16>
    %c0_181 = arith.constant 0 : index
    %c0_182 = arith.constant 0 : index
    %c2_183 = arith.constant 2 : index
    %c0_184 = arith.constant 0 : index
    %200 = vector.load %arg12[%c0_181, %c0_182, %c2_183, %c0_184] : memref<1x10x10x64xf32, #tpu.memory_space<vmem>>, vector<1x8x8x64xf32>
    %201 = arith.truncf %200 : vector<1x8x8x64xf32> to vector<1x8x8x64xbf16>
    %202 = vector.shape_cast %201 : vector<1x8x8x64xbf16> to vector<64x64xbf16>
    %c0_185 = arith.constant 0 : index
    %c1_186 = arith.constant 1 : index
    %c0_187 = arith.constant 0 : index
    %c0_188 = arith.constant 0 : index
    %203 = vector.load %arg12[%c0_185, %c1_186, %c0_187, %c0_188] : memref<1x10x10x64xf32, #tpu.memory_space<vmem>>, vector<1x8x8x64xf32>
    %204 = arith.truncf %203 : vector<1x8x8x64xf32> to vector<1x8x8x64xbf16>
    %205 = vector.shape_cast %204 : vector<1x8x8x64xbf16> to vector<64x64xbf16>
    %c0_189 = arith.constant 0 : index
    %c1_190 = arith.constant 1 : index
    %c1_191 = arith.constant 1 : index
    %c0_192 = arith.constant 0 : index
    %206 = vector.load %arg12[%c0_189, %c1_190, %c1_191, %c0_192] : memref<1x10x10x64xf32, #tpu.memory_space<vmem>>, vector<1x8x8x64xf32>
    %207 = arith.truncf %206 : vector<1x8x8x64xf32> to vector<1x8x8x64xbf16>
    %208 = vector.shape_cast %207 : vector<1x8x8x64xbf16> to vector<64x64xbf16>
    %c0_193 = arith.constant 0 : index
    %c1_194 = arith.constant 1 : index
    %c2_195 = arith.constant 2 : index
    %c0_196 = arith.constant 0 : index
    %209 = vector.load %arg12[%c0_193, %c1_194, %c2_195, %c0_196] : memref<1x10x10x64xf32, #tpu.memory_space<vmem>>, vector<1x8x8x64xf32>
    %210 = arith.truncf %209 : vector<1x8x8x64xf32> to vector<1x8x8x64xbf16>
    %211 = vector.shape_cast %210 : vector<1x8x8x64xbf16> to vector<64x64xbf16>
    %c0_197 = arith.constant 0 : index
    %c2_198 = arith.constant 2 : index
    %c0_199 = arith.constant 0 : index
    %c0_200 = arith.constant 0 : index
    %212 = vector.load %arg12[%c0_197, %c2_198, %c0_199, %c0_200] : memref<1x10x10x64xf32, #tpu.memory_space<vmem>>, vector<1x8x8x64xf32>
    %213 = arith.truncf %212 : vector<1x8x8x64xf32> to vector<1x8x8x64xbf16>
    %214 = vector.shape_cast %213 : vector<1x8x8x64xbf16> to vector<64x64xbf16>
    %c0_201 = arith.constant 0 : index
    %c2_202 = arith.constant 2 : index
    %c1_203 = arith.constant 1 : index
    %c0_204 = arith.constant 0 : index
    %215 = vector.load %arg12[%c0_201, %c2_202, %c1_203, %c0_204] : memref<1x10x10x64xf32, #tpu.memory_space<vmem>>, vector<1x8x8x64xf32>
    %216 = arith.truncf %215 : vector<1x8x8x64xf32> to vector<1x8x8x64xbf16>
    %217 = vector.shape_cast %216 : vector<1x8x8x64xbf16> to vector<64x64xbf16>
    %c0_205 = arith.constant 0 : index
    %c2_206 = arith.constant 2 : index
    %c2_207 = arith.constant 2 : index
    %c0_208 = arith.constant 0 : index
    %218 = vector.load %arg12[%c0_205, %c2_206, %c2_207, %c0_208] : memref<1x10x10x64xf32, #tpu.memory_space<vmem>>, vector<1x8x8x64xf32>
    %219 = arith.truncf %218 : vector<1x8x8x64xf32> to vector<1x8x8x64xbf16>
    %220 = vector.shape_cast %219 : vector<1x8x8x64xbf16> to vector<64x64xbf16>
    %221 = tpu.concatenate %196, %199, %202, %205, %208, %211, %214, %217, %220 in 1 : vector<64x64xbf16>, vector<64x64xbf16>, vector<64x64xbf16>, vector<64x64xbf16>, vector<64x64xbf16>, vector<64x64xbf16>, vector<64x64xbf16>, vector<64x64xbf16>, vector<64x64xbf16> -> vector<64x576xbf16>
    %c2_209 = arith.constant 2 : index
    %c0_210 = arith.constant 0 : index
    %c0_211 = arith.constant 0 : index
    %222 = vector.load %arg3[%c2_209, %c0_210, %c0_211] : memref<3x576x128xbf16, #tpu.memory_space<vmem>>, vector<1x576x128xbf16>
    %223 = vector.shape_cast %222 : vector<1x576x128xbf16> to vector<576x128xbf16>
    %cst_212 = arith.constant dense<0.000000e+00> : vector<64x128xf32>
    %224 = tpu.matmul %221, %223, %cst_212 {dimension_numbers = #tpu.dot_dimension_numbers<[1], [0], [0], [1], [0, 0, 1, 1], [], []>} : vector<64x576xbf16>, vector<576x128xbf16>, vector<64x128xf32> -> vector<64x128xf32>
    %225 = vector.extract_strided_slice %224 {offsets = [0, 0], sizes = [64, 64], strides = [1, 1]} : vector<64x128xf32> to vector<64x64xf32>
    %c2_213 = arith.constant 2 : index
    %c0_214 = arith.constant 0 : index
    %c0_215 = arith.constant 0 : index
    %226 = vector.load %arg4[%c2_213, %c0_214, %c0_215] : memref<3x1x64xf32, #tpu.memory_space<vmem>>, vector<1x1x64xf32>
    %227 = vector.shape_cast %226 : vector<1x1x64xf32> to vector<1x64xf32>
    %228 = vector.broadcast %227 : vector<1x64xf32> to vector<64x64xf32>
    %229 = arith.addf %225, %228 : vector<64x64xf32>
    %cst_216 = arith.constant 0.000000e+00 : f32
    %230 = vector.broadcast %cst_216 : f32 to vector<64x64xf32>
    %231 = arith.maximumf %229, %230 : vector<64x64xf32>
    %232 = vector.extract_strided_slice %224 {offsets = [0, 64], sizes = [64, 64], strides = [1, 1]} : vector<64x128xf32> to vector<64x64xf32>
    %c0_217 = arith.constant 0 : index
    %c1_218 = arith.constant 1 : index
    %c1_219 = arith.constant 1 : index
    %c0_220 = arith.constant 0 : index
    %233 = vector.load %arg12[%c0_217, %c1_218, %c1_219, %c0_220] : memref<1x10x10x64xf32, #tpu.memory_space<vmem>>, vector<1x8x8x64xf32>
    %234 = arith.truncf %233 : vector<1x8x8x64xf32> to vector<1x8x8x64xbf16>
    %235 = vector.shape_cast %234 : vector<1x8x8x64xbf16> to vector<64x64xbf16>
    %c2_221 = arith.constant 2 : index
    %c0_222 = arith.constant 0 : index
    %c0_223 = arith.constant 0 : index
    %236 = vector.load %arg5[%c2_221, %c0_222, %c0_223] : memref<3x64x192xbf16, #tpu.memory_space<vmem>>, vector<1x64x192xbf16>
    %237 = vector.shape_cast %236 : vector<1x64x192xbf16> to vector<64x192xbf16>
    %cst_224 = arith.constant dense<0.000000e+00> : vector<64x192xf32>
    %238 = tpu.matmul %235, %237, %cst_224 {dimension_numbers = #tpu.dot_dimension_numbers<[1], [0], [0], [1], [0, 0, 1, 1], [], []>} : vector<64x64xbf16>, vector<64x192xbf16>, vector<64x192xf32> -> vector<64x192xf32>
    %c2_225 = arith.constant 2 : index
    %c0_226 = arith.constant 0 : index
    %c0_227 = arith.constant 0 : index
    %239 = vector.load %arg6[%c2_225, %c0_226, %c0_227] : memref<3x1x192xf32, #tpu.memory_space<vmem>>, vector<1x1x192xf32>
    %240 = vector.shape_cast %239 : vector<1x1x192xf32> to vector<1x192xf32>
    %241 = vector.broadcast %240 : vector<1x192xf32> to vector<64x192xf32>
    %242 = arith.addf %238, %241 : vector<64x192xf32>
    %243 = vector.extract_strided_slice %242 {offsets = [0, 0], sizes = [64, 64], strides = [1, 1]} : vector<64x192xf32> to vector<64x64xf32>
    %244 = vector.shape_cast %243 : vector<64x64xf32> to vector<1x64x64xf32>
    %245 = arith.truncf %244 : vector<1x64x64xf32> to vector<1x64x64xbf16>
    %246 = vector.extract_strided_slice %242 {offsets = [0, 64], sizes = [64, 64], strides = [1, 1]} : vector<64x192xf32> to vector<64x64xf32>
    %247 = vector.shape_cast %246 : vector<64x64xf32> to vector<1x64x64xf32>
    %248 = arith.truncf %247 : vector<1x64x64xf32> to vector<1x64x64xbf16>
    %249 = vector.extract_strided_slice %242 {offsets = [0, 128], sizes = [64, 64], strides = [1, 1]} : vector<64x192xf32> to vector<64x64xf32>
    %250 = vector.shape_cast %249 : vector<64x64xf32> to vector<1x64x64xf32>
    %251 = arith.truncf %250 : vector<1x64x64xf32> to vector<1x64x64xbf16>
    %cst_228 = arith.constant dense<0.000000e+00> : vector<1x64x64xf32>
    %252 = tpu.matmul %245, %248, %cst_228 {dimension_numbers = #tpu.dot_dimension_numbers<[2], [2], [1], [1], [0, 0, 0, 1, 1, 1], [0], [0]>} : vector<1x64x64xbf16>, vector<1x64x64xbf16>, vector<1x64x64xf32> -> vector<1x64x64xf32>
    %cst_229 = arith.constant 1.250000e-01 : f32
    %253 = vector.broadcast %cst_229 : f32 to vector<1x64x64xf32>
    %254 = arith.mulf %252, %253 : vector<1x64x64xf32>
    %cst_230 = arith.constant dense<0xFF800000> : vector<1x64xf32>
    %255 = vector.multi_reduction <maximumf>, %254, %cst_230 [2] : vector<1x64x64xf32> to vector<1x64xf32>
    %256 = vector.shape_cast %255 : vector<1x64xf32> to vector<1x64x1xf32>
    %257 = vector.broadcast %256 : vector<1x64x1xf32> to vector<1x64x64xf32>
    %258 = arith.subf %254, %257 : vector<1x64x64xf32>
    %259 = math.exp %258 : vector<1x64x64xf32>
    %cst_231 = arith.constant dense<0.000000e+00> : vector<1x64xf32>
    %260 = vector.multi_reduction <add>, %259, %cst_231 [2] : vector<1x64x64xf32> to vector<1x64xf32>
    %261 = vector.shape_cast %260 : vector<1x64xf32> to vector<1x64x1xf32>
    %262 = tpu.reciprocal %261 {approx = true} : vector<1x64x1xf32> -> vector<1x64x1xf32>
    %263 = vector.broadcast %262 : vector<1x64x1xf32> to vector<1x64x64xf32>
    %264 = arith.mulf %259, %263 : vector<1x64x64xf32>
    %265 = arith.truncf %264 : vector<1x64x64xf32> to vector<1x64x64xbf16>
    %cst_232 = arith.constant dense<0.000000e+00> : vector<1x64x64xf32>
    %266 = tpu.matmul %265, %251, %cst_232 {dimension_numbers = #tpu.dot_dimension_numbers<[2], [1], [1], [2], [0, 0, 0, 1, 1, 2], [0], [0]>} : vector<1x64x64xbf16>, vector<1x64x64xbf16>, vector<1x64x64xf32> -> vector<1x64x64xf32>
    %267 = vector.shape_cast %266 : vector<1x64x64xf32> to vector<64x64xf32>
    %268 = arith.truncf %267 : vector<64x64xf32> to vector<64x64xbf16>
    %c2_233 = arith.constant 2 : index
    %c0_234 = arith.constant 0 : index
    %c0_235 = arith.constant 0 : index
    %269 = vector.load %arg7[%c2_233, %c0_234, %c0_235] : memref<3x64x64xbf16, #tpu.memory_space<vmem>>, vector<1x64x64xbf16>
    %270 = vector.shape_cast %269 : vector<1x64x64xbf16> to vector<64x64xbf16>
    %cst_236 = arith.constant dense<0.000000e+00> : vector<64x64xf32>
    %271 = tpu.matmul %268, %270, %cst_236 {dimension_numbers = #tpu.dot_dimension_numbers<[1], [0], [0], [1], [0, 0, 1, 1], [], []>} : vector<64x64xbf16>, vector<64x64xbf16>, vector<64x64xf32> -> vector<64x64xf32>
    %c2_237 = arith.constant 2 : index
    %c0_238 = arith.constant 0 : index
    %c0_239 = arith.constant 0 : index
    %272 = vector.load %arg8[%c2_237, %c0_238, %c0_239] : memref<3x1x64xf32, #tpu.memory_space<vmem>>, vector<1x1x64xf32>
    %273 = vector.shape_cast %272 : vector<1x1x64xf32> to vector<1x64xf32>
    %274 = vector.broadcast %273 : vector<1x64xf32> to vector<64x64xf32>
    %275 = arith.addf %271, %274 : vector<64x64xf32>
    %c2_240 = arith.constant 2 : index
    %c0_241 = arith.constant 0 : index
    %276 = memref.load %arg1[%c2_240, %c0_241] : memref<3x3xf32, #tpu.memory_space<smem>>
    %277 = vector.broadcast %276 : f32 to vector<64x64xf32>
    %278 = arith.mulf %277, %231 : vector<64x64xf32>
    %c2_242 = arith.constant 2 : index
    %c1_243 = arith.constant 1 : index
    %279 = memref.load %arg1[%c2_242, %c1_243] : memref<3x3xf32, #tpu.memory_space<smem>>
    %280 = vector.broadcast %279 : f32 to vector<64x64xf32>
    %281 = arith.mulf %280, %275 : vector<64x64xf32>
    %282 = arith.addf %278, %281 : vector<64x64xf32>
    %283 = arith.addf %282, %232 : vector<64x64xf32>
    %284 = vector.shape_cast %283 : vector<64x64xf32> to vector<1x64x64xf32>
    %cst_244 = arith.constant dense<0.000000e+00> : vector<1x64xf32>
    %285 = vector.multi_reduction <add>, %284, %cst_244 [1] : vector<1x64x64xf32> to vector<1x64xf32>
    %cst_245 = arith.constant 6.400000e+01 : f32
    %286 = vector.broadcast %cst_245 : f32 to vector<1x64xf32>
    %287 = arith.divf %285, %286 : vector<1x64xf32>
    %288 = arith.truncf %287 : vector<1x64xf32> to vector<1x64xbf16>
    %c0_246 = arith.constant 0 : index
    %c0_247 = arith.constant 0 : index
    %289 = vector.load %arg9[%c0_246, %c0_247] : memref<64x128xbf16, #tpu.memory_space<vmem>>, vector<64x128xbf16>
    %cst_248 = arith.constant dense<0.000000e+00> : vector<1x128xf32>
    %290 = tpu.matmul %288, %289, %cst_248 {dimension_numbers = #tpu.dot_dimension_numbers<[1], [0], [0], [1], [0, 0, 1, 1], [], []>} : vector<1x64xbf16>, vector<64x128xbf16>, vector<1x128xf32> -> vector<1x128xf32>
    %c0_249 = arith.constant 0 : index
    %c0_250 = arith.constant 0 : index
    %291 = vector.load %arg10[%c0_249, %c0_250] : memref<1x128xf32, #tpu.memory_space<vmem>>, vector<1x128xf32>
    %292 = arith.addf %290, %291 : vector<1x128xf32>
    %293 = vector.shape_cast %292 : vector<1x128xf32> to vector<1x1x128xf32>
    %c0_251 = arith.constant 0 : index
    %c0_252 = arith.constant 0 : index
    %c0_253 = arith.constant 0 : index
    %294 = vector.load %arg11[%c0_251, %c0_252, %c0_253] : memref<1x1x128xf32, #tpu.memory_space<vmem>>, vector<1x1x128xf32>
    tpu.vector_store %arg11[%c0_251, %c0_252, %c0_253], %293 {strides = array<i32>} : memref<1x1x128xf32, #tpu.memory_space<vmem>>, vector<1x1x128xf32>,
    return
  }
  func.func @transform_0(%arg0: i32) -> (i32, i32) {
    %c0_i32 = arith.constant 0 : i32
    %c0_i32_0 = arith.constant 0 : i32
    %c0_i32_1 = arith.constant 0 : i32
    return %c0_i32, %c0_i32_0 : i32, i32
  }
  func.func @transform_1(%arg0: i32) -> (i32, i32, i32, i32) {
    %c0_i32 = arith.constant 0 : i32
    %c0_i32_0 = arith.constant 0 : i32
    %c0_i32_1 = arith.constant 0 : i32
    %c0_i32_2 = arith.constant 0 : i32
    return %arg0, %c0_i32, %c0_i32_0, %c0_i32_1 : i32, i32, i32, i32
  }
  func.func @transform_2(%arg0: i32) -> (i32, i32, i32) {
    %c0_i32 = arith.constant 0 : i32
    %c0_i32_0 = arith.constant 0 : i32
    %c0_i32_1 = arith.constant 0 : i32
    %c0_i32_2 = arith.constant 0 : i32
    return %c0_i32, %c0_i32_0, %c0_i32_1 : i32, i32, i32
  }
  func.func @transform_3(%arg0: i32) -> (i32, i32, i32) {
    %c0_i32 = arith.constant 0 : i32
    %c0_i32_0 = arith.constant 0 : i32
    %c0_i32_1 = arith.constant 0 : i32
    %c0_i32_2 = arith.constant 0 : i32
    return %c0_i32, %c0_i32_0, %c0_i32_1 : i32, i32, i32
  }
  func.func @transform_4(%arg0: i32) -> (i32, i32, i32) {
    %c0_i32 = arith.constant 0 : i32
    %c0_i32_0 = arith.constant 0 : i32
    %c0_i32_1 = arith.constant 0 : i32
    %c0_i32_2 = arith.constant 0 : i32
    return %c0_i32, %c0_i32_0, %c0_i32_1 : i32, i32, i32
  }
  func.func @transform_5(%arg0: i32) -> (i32, i32, i32) {
    %c0_i32 = arith.constant 0 : i32
    %c0_i32_0 = arith.constant 0 : i32
    %c0_i32_1 = arith.constant 0 : i32
    %c0_i32_2 = arith.constant 0 : i32
    return %c0_i32, %c0_i32_0, %c0_i32_1 : i32, i32, i32
  }
  func.func @transform_6(%arg0: i32) -> (i32, i32, i32) {
    %c0_i32 = arith.constant 0 : i32
    %c0_i32_0 = arith.constant 0 : i32
    %c0_i32_1 = arith.constant 0 : i32
    %c0_i32_2 = arith.constant 0 : i32
    return %c0_i32, %c0_i32_0, %c0_i32_1 : i32, i32, i32
  }
  func.func @transform_7(%arg0: i32) -> (i32, i32, i32) {
    %c0_i32 = arith.constant 0 : i32
    %c0_i32_0 = arith.constant 0 : i32
    %c0_i32_1 = arith.constant 0 : i32
    %c0_i32_2 = arith.constant 0 : i32
    return %c0_i32, %c0_i32_0, %c0_i32_1 : i32, i32, i32
  }
  func.func @transform_8(%arg0: i32) -> (i32, i32) {
    %c0_i32 = arith.constant 0 : i32
    %c0_i32_0 = arith.constant 0 : i32
    %c0_i32_1 = arith.constant 0 : i32
    return %c0_i32, %c0_i32_0 : i32, i32
  }
  func.func @transform_9(%arg0: i32) -> (i32, i32) {
    %c0_i32 = arith.constant 0 : i32
    %c0_i32_0 = arith.constant 0 : i32
    %c0_i32_1 = arith.constant 0 : i32
    return %c0_i32, %c0_i32_0 : i32, i32
  }
  func.func @transform_10(%arg0: i32) -> (i32, i32, i32) {
    %c0_i32 = arith.constant 0 : i32
    %c0_i32_0 = arith.constant 0 : i32
    %c0_i32_1 = arith.constant 0 : i32
    return %arg0, %c0_i32, %c0_i32_0 : i32, i32, i32
  }
}

</mosaic_0001>

<llo_original>
// kernel: tpu_custom_call.1
$region0: #{tpu_custom_call.1}
  #allocation0 [shape = 'u32[]', space=smem, size = 0x4, offset = 0x4, fixed_abs, tag = 'smem constant byte address 0x4 - core index']
  #allocation1 [shape = 'u32[72,128]{1,0:T(1,128)}', space=vmem, size = 0x9000, scoped, tag = 'internal scratch']
  #allocation2 [shape = 'f32[1,10,10,64]{3,2,1,0:T(8,128)}', space=vmem, size = 0x14000, scoped, tag = 'scratch operand']
  %s0 = inlined_call_operand.hbm [shape: f32[3,3], index: 0, kind: input, shape index: {}]
  %s1 = inlined_call_operand.hbm [shape: f32[2,8,8,64], index: 1, kind: input, shape index: {}]
  %s2 = inlined_call_operand.hbm [shape: bf16[3,576,128], index: 2, kind: input, shape index: {}]
  %s3 = inlined_call_operand.hbm [shape: f32[3,1,64], index: 3, kind: input, shape index: {}]
  %s4 = inlined_call_operand.hbm [shape: bf16[3,64,192], index: 4, kind: input, shape index: {}]
  %s5 = inlined_call_operand.hbm [shape: f32[3,1,192], index: 5, kind: input, shape index: {}]
  %s6 = inlined_call_operand.hbm [shape: bf16[3,64,64], index: 6, kind: input, shape index: {}]
  %s7 = inlined_call_operand.vmem [shape: f32[3,1,64], index: 7, kind: input, shape index: {}]
  %s8 = inlined_call_operand.hbm [shape: bf16[64,128], index: 8, kind: input, shape index: {}]
  %s9 = inlined_call_operand.vmem [shape: f32[1,128], index: 9, kind: input, shape index: {}]
  %s10 = inlined_call_operand.hbm [shape: f32[2,1,128], index: 10, kind: output, shape index: {}]
  %s11 = sld [smem:[#allocation0]]
  $region105: #{tpu_custom_call.1} parent=0
    _
  %s13 = ssub.s32 1, %s11
  %s14 = scalar_select 0, %s13, %s11
  $region1: #{tpu_custom_call.1} parent=0
    #allocation3 [shape = 'u8[2048]{0}', space=smem, size = 0x800, scoped, tag = 'input window, operand 0, single buffered']
    #allocation4 [shape = 's32[2]{0}', space=sflag, size = 0x8, scoped, tag = 'scoped memory for tpu_custom_call.1']
    #allocation5 [shape = 's32[2]{0}', space=sflag, size = 0x8, scoped, tag = 'scoped memory for tpu_custom_call.1']
    #allocation6 [shape = 's32[2]{0}', space=sflag, size = 0x8, scoped, tag = 'scoped memory for tpu_custom_call.1']
    #allocation7 [shape = 'u8[65536]{0}', space=vmem, size = 0x10000, scoped, tag = 'input window, operand 1']
    #allocation8 [shape = 'u8[442368]{0}', space=vmem, size = 0x6c000, scoped, tag = 'input window, operand 2, single buffered']
    #allocation9 [shape = 's32[1]{0}', space=sflag, size = 0x4, scoped, tag = 'scoped memory for tpu_custom_call.1']
    #allocation10 [shape = 'u8[1536]{0}', space=vmem, size = 0x800, scoped, tag = 'input window, operand 3, single buffered']
    #allocation11 [shape = 'u8[98304]{0}', space=vmem, size = 0x18000, scoped, tag = 'input window, operand 4, single buffered']
    #allocation12 [shape = 's32[1]{0}', space=sflag, size = 0x4, scoped, tag = 'scoped memory for tpu_custom_call.1']
    #allocation13 [shape = 'u8[3072]{0}', space=vmem, size = 0xc00, scoped, tag = 'input window, operand 5, single buffered']
    #allocation14 [shape = 'u8[49152]{0}', space=vmem, size = 0xc000, scoped, tag = 'input window, operand 6, single buffered']
    #allocation15 [shape = 's32[1]{0}', space=sflag, size = 0x4, scoped, tag = 'scoped memory for tpu_custom_call.1']
    #allocation16 [shape = 'u8[16384]{0}', space=vmem, size = 0x4000, scoped, tag = 'input window, operand 8, single buffered']
    #allocation17 [shape = 'u8[1024]{0}', space=vmem, size = 0x400, scoped, tag = 'output window, operand 0']
    %15 = vsyncpa [#allocation6], 0
    %16 = vsyncpa [#allocation4], 0
    %s17 = scalar_lea.sflag [#allocation4], 1
    %18 = vsyncpa %s17, 0
    %19 = vsyncpa [#allocation9], 0
    %20 = vsyncpa [#allocation12], 0
    %21 = vsyncpa [#allocation15], 0
    %22 = vsyncpa [#allocation5], 0
    %s23 = scalar_lea.sflag [#allocation5], 1
    %24 = vsyncpa %s23, 0
    loop: start=0, step=1, limit=4
    $region2: #{tpu_custom_call.1} parent=1 // loop_pre_header
      _
    $region3: #{tpu_custom_call.1} parent=1 // loop_header
      %s26 = sphi 0, %s30
      %p27 = scmp.ge.s32.totalorder %s26, 4
      %s34 = sphi 0, %s34
      %s36 = sphi 0, %s34
      %s37 = sphi 0, %s36
      %s51 = sphi 0, %s37
      %s57 = sphi 0, %s59
      %s60 = sphi 0, %s57
      %s61 = sphi 0, %s60
      %s77 = sphi 0, %s61
      %s81 = sphi 0, %s81
      %s83 = sphi 0, %s81
      %s84 = sphi 0, %s83
      %s98 = sphi 0, %s84
      %s102 = sphi 0, %s102
      %s104 = sphi 0, %s102
      %s105 = sphi 0, %s104
      %s119 = sphi 0, %s105
      %s123 = sphi 0, %s123
      %s125 = sphi 0, %s123
      %s126 = sphi 0, %s125
      %s140 = sphi 0, %s126
      %s144 = sphi 0, %s144
      %s146 = sphi 0, %s144
      %s147 = sphi 0, %s146
      %s161 = sphi 0, %s147
      %s165 = sphi 0, %s165
      %s167 = sphi 0, %s165
      %s168 = sphi 0, %s167
      %s182 = sphi 0, %s168
      %s186 = sphi 0, %s186
      %s188 = sphi 0, %s186
      %s189 = sphi 0, %s188
      %s203 = sphi 0, %s189
      %s207 = sphi 0, %s207
      %s209 = sphi 0, %s207
      %s210 = sphi 0, %s209
      %s224 = sphi 0, %s210
      %s228 = sphi 0, %s228
      %s230 = sphi 0, %s228
      %s231 = sphi 0, %s230
      %s245 = sphi 0, %s231
      %s251 = sphi 0, %s253
      %s254 = sphi 0, %s251
      %s255 = sphi 0, %s254
      %s271 = sphi 0, %s255
    $region4: #{tpu_custom_call.1} parent=1 // loop_header_branch
      %29 = sbr.rel (%p27) target = $region8
    $region5: #{tpu_custom_call.1} parent=1 // loop_body
      %s31 = ssub.s32 %s26, 1
      %s32 = ssub.s32 %s26, 2
      %s33 = sadd.s32 %s26, 1
      %s35 = sadd.s32 %s34, 1
      %p38 = scmp.eq.s32.totalorder %s26, 1
      %p39 = scmp.ne.s32.totalorder %s34, %s36
      %p40 = scmp.eq.s32.totalorder %s26, 0
      %p41 = por %p39, %p40
      %p42 = scmp.ne.s32.totalorder %s34, %s36
      %p43 = scmp.eq.s32.totalorder %s31, 1
      %p44 = por %p42, %p43
      %p45 = scmp.ne.s32.totalorder %s36, %s37
      %p46 = scmp.eq.s32.totalorder %s31, 0
      %p47 = por %p45, %p46
      %p48 = scmp.ne.s32.totalorder %s36, %s37
      %p49 = scmp.eq.s32.totalorder %s32, 1
      %p50 = por %p48, %p49
      %p52 = scmp.ne.s32.totalorder %s37, %s51
      %p53 = scmp.eq.s32.totalorder %s32, 0
      %p54 = por %p52, %p53
      %s55 = ssub.s32 %s26, %s33
      %p56 = scmp.eq.s32.totalorder %s55, 0
      %s58 = sadd.s32 %s57, 1
      %s59 = scalar_select %p56, %s57, %s58
      %p62 = pneg %p56
      %p63 = scmp.eq.s32.totalorder %s26, 1
      %p64 = por %p62, %p63
      %p65 = scmp.ne.s32.totalorder %s57, %s60
      %p66 = scmp.eq.s32.totalorder %s26, 0
      %p67 = por %p65, %p66
      %p68 = scmp.ne.s32.totalorder %s57, %s60
      %p69 = scmp.eq.s32.totalorder %s31, 1
      %p70 = por %p68, %p69
      %p71 = scmp.ne.s32.totalorder %s60, %s61
      %p72 = scmp.eq.s32.totalorder %s31, 0
      %p73 = por %p71, %p72
      %p74 = scmp.ne.s32.totalorder %s60, %s61
      %p75 = scmp.eq.s32.totalorder %s32, 1
      %p76 = por %p74, %p75
      %p78 = scmp.ne.s32.totalorder %s61, %s77
      %p79 = scmp.eq.s32.totalorder %s32, 0
      %p80 = por %p78, %p79
      %s82 = sadd.s32 %s81, 1
      %p85 = scmp.eq.s32.totalorder %s26, 1
      %p86 = scmp.ne.s32.totalorder %s81, %s83
      %p87 = scmp.eq.s32.totalorder %s26, 0
      %p88 = por %p86, %p87
      %p89 = scmp.ne.s32.totalorder %s81, %s83
      %p90 = scmp.eq.s32.totalorder %s31, 1
      %p91 = por %p89, %p90
      %p92 = scmp.ne.s32.totalorder %s83, %s84
      %p93 = scmp.eq.s32.totalorder %s31, 0
      %p94 = por %p92, %p93
      %p95 = scmp.ne.s32.totalorder %s83, %s84
      %p96 = scmp.eq.s32.totalorder %s32, 1
      %p97 = por %p95, %p96
      %p99 = scmp.ne.s32.totalorder %s84, %s98
      %p100 = scmp.eq.s32.totalorder %s32, 0
      %p101 = por %p99, %p100
      %s103 = sadd.s32 %s102, 1
      %p106 = scmp.eq.s32.totalorder %s26, 1
      %p107 = scmp.ne.s32.totalorder %s102, %s104
      %p108 = scmp.eq.s32.totalorder %s26, 0
      %p109 = por %p107, %p108
      %p110 = scmp.ne.s32.totalorder %s102, %s104
      %p111 = scmp.eq.s32.totalorder %s31, 1
      %p112 = por %p110, %p111
      %p113 = scmp.ne.s32.totalorder %s104, %s105
      %p114 = scmp.eq.s32.totalorder %s31, 0
      %p115 = por %p113, %p114
      %p116 = scmp.ne.s32.totalorder %s104, %s105
      %p117 = scmp.eq.s32.totalorder %s32, 1
      %p118 = por %p116, %p117
      %p120 = scmp.ne.s32.totalorder %s105, %s119
      %p121 = scmp.eq.s32.totalorder %s32, 0
      %p122 = por %p120, %p121
      %s124 = sadd.s32 %s123, 1
      %p127 = scmp.eq.s32.totalorder %s26, 1
      %p128 = scmp.ne.s32.totalorder %s123, %s125
      %p129 = scmp.eq.s32.totalorder %s26, 0
      %p130 = por %p128, %p129
      %p131 = scmp.ne.s32.totalorder %s123, %s125
      %p132 = scmp.eq.s32.totalorder %s31, 1
      %p133 = por %p131, %p132
      %p134 = scmp.ne.s32.totalorder %s125, %s126
      %p135 = scmp.eq.s32.totalorder %s31, 0
      %p136 = por %p134, %p135
      %p137 = scmp.ne.s32.totalorder %s125, %s126
      %p138 = scmp.eq.s32.totalorder %s32, 1
      %p139 = por %p137, %p138
      %p141 = scmp.ne.s32.totalorder %s126, %s140
      %p142 = scmp.eq.s32.totalorder %s32, 0
      %p143 = por %p141, %p142
      %s145 = sadd.s32 %s144, 1
      %p148 = scmp.eq.s32.totalorder %s26, 1
      %p149 = scmp.ne.s32.totalorder %s144, %s146
      %p150 = scmp.eq.s32.totalorder %s26, 0
      %p151 = por %p149, %p150
      %p152 = scmp.ne.s32.totalorder %s144, %s146
      %p153 = scmp.eq.s32.totalorder %s31, 1
      %p154 = por %p152, %p153
      %p155 = scmp.ne.s32.totalorder %s146, %s147
      %p156 = scmp.eq.s32.totalorder %s31, 0
      %p157 = por %p155, %p156
      %p158 = scmp.ne.s32.totalorder %s146, %s147
      %p159 = scmp.eq.s32.totalorder %s32, 1
      %p160 = por %p158, %p159
      %p162 = scmp.ne.s32.totalorder %s147, %s161
      %p163 = scmp.eq.s32.totalorder %s32, 0
      %p164 = por %p162, %p163
      %s166 = sadd.s32 %s165, 1
      %p169 = scmp.eq.s32.totalorder %s26, 1
      %p170 = scmp.ne.s32.totalorder %s165, %s167
      %p171 = scmp.eq.s32.totalorder %s26, 0
      %p172 = por %p170, %p171
      %p173 = scmp.ne.s32.totalorder %s165, %s167
      %p174 = scmp.eq.s32.totalorder %s31, 1
      %p175 = por %p173, %p174
      %p176 = scmp.ne.s32.totalorder %s167, %s168
      %p177 = scmp.eq.s32.totalorder %s31, 0
      %p178 = por %p176, %p177
      %p179 = scmp.ne.s32.totalorder %s167, %s168
      %p180 = scmp.eq.s32.totalorder %s32, 1
      %p181 = por %p179, %p180
      %p183 = scmp.ne.s32.totalorder %s168, %s182
      %p184 = scmp.eq.s32.totalorder %s32, 0
      %p185 = por %p183, %p184
      %s187 = sadd.s32 %s186, 1
      %p190 = scmp.eq.s32.totalorder %s26, 1
      %p191 = scmp.ne.s32.totalorder %s186, %s188
      %p192 = scmp.eq.s32.totalorder %s26, 0
      %p193 = por %p191, %p192
      %p194 = scmp.ne.s32.totalorder %s186, %s188
      %p195 = scmp.eq.s32.totalorder %s31, 1
      %p196 = por %p194, %p195
      %p197 = scmp.ne.s32.totalorder %s188, %s189
      %p198 = scmp.eq.s32.totalorder %s31, 0
      %p199 = por %p197, %p198
      %p200 = scmp.ne.s32.totalorder %s188, %s189
      %p201 = scmp.eq.s32.totalorder %s32, 1
      %p202 = por %p200, %p201
      %p204 = scmp.ne.s32.totalorder %s189, %s203
      %p205 = scmp.eq.s32.totalorder %s32, 0
      %p206 = por %p204, %p205
      %s208 = sadd.s32 %s207, 1
      %p211 = scmp.eq.s32.totalorder %s26, 1
      %p212 = scmp.ne.s32.totalorder %s207, %s209
      %p213 = scmp.eq.s32.totalorder %s26, 0
      %p214 = por %p212, %p213
      %p215 = scmp.ne.s32.totalorder %s207, %s209
      %p216 = scmp.eq.s32.totalorder %s31, 1
      %p217 = por %p215, %p216
      %p218 = scmp.ne.s32.totalorder %s209, %s210
      %p219 = scmp.eq.s32.totalorder %s31, 0
      %p220 = por %p218, %p219
      %p221 = scmp.ne.s32.totalorder %s209, %s210
      %p222 = scmp.eq.s32.totalorder %s32, 1
      %p223 = por %p221, %p222
      %p225 = scmp.ne.s32.totalorder %s210, %s224
      %p226 = scmp.eq.s32.totalorder %s32, 0
      %p227 = por %p225, %p226
      %s229 = sadd.s32 %s228, 1
      %p232 = scmp.eq.s32.totalorder %s26, 1
      %p233 = scmp.ne.s32.totalorder %s228, %s230
      %p234 = scmp.eq.s32.totalorder %s26, 0
      %p235 = por %p233, %p234
      %p236 = scmp.ne.s32.totalorder %s228, %s230
      %p237 = scmp.eq.s32.totalorder %s31, 1
      %p238 = por %p236, %p237
      %p239 = scmp.ne.s32.totalorder %s230, %s231
      %p240 = scmp.eq.s32.totalorder %s31, 0
      %p241 = por %p239, %p240
      %p242 = scmp.ne.s32.totalorder %s230, %s231
      %p243 = scmp.eq.s32.totalorder %s32, 1
      %p244 = por %p242, %p243
      %p246 = scmp.ne.s32.totalorder %s231, %s245
      %p247 = scmp.eq.s32.totalorder %s32, 0
      %p248 = por %p246, %p247
      %s249 = ssub.s32 %s26, %s33
      %p250 = scmp.eq.s32.totalorder %s249, 0
      %s252 = sadd.s32 %s251, 1
      %s253 = scalar_select %p250, %s251, %s252
      %p256 = pneg %p250
      %p257 = scmp.eq.s32.totalorder %s26, 1
      %p258 = por %p256, %p257
      %p259 = scmp.ne.s32.totalorder %s251, %s254
      %p260 = scmp.eq.s32.totalorder %s26, 0
      %p261 = por %p259, %p260
      %p262 = scmp.ne.s32.totalorder %s251, %s254
      %p263 = scmp.eq.s32.totalorder %s31, 1
      %p264 = por %p262, %p263
      %p265 = scmp.ne.s32.totalorder %s254, %s255
      %p266 = scmp.eq.s32.totalorder %s31, 0
      %p267 = por %p265, %p266
      %p268 = scmp.ne.s32.totalorder %s254, %s255
      %p269 = scmp.eq.s32.totalorder %s32, 1
      %p270 = por %p268, %p269
      %p272 = scmp.ne.s32.totalorder %s255, %s271
      %p273 = scmp.eq.s32.totalorder %s32, 0
      %p274 = por %p272, %p273
      %p275 = scmp.le.s32.totalorder 1, %s26
      %p276 = scmp.lt.s32.totalorder %s26, 3
      %p277 = pnand %p275, %p276
      %p278 = pneg %p277
      // Predicated region
      $region9: #{tpu_custom_call.1} parent=5 // pred_check
        _
      $region10: #{tpu_custom_call.1} parent=5 // pred_check_branch
        %280 = sbr.rel (%p277) target = $region12
      $region11: #{tpu_custom_call.1} parent=5 // pred_region
        %s281 = ssub.s32 %s26, 1
        // Predicated region
        $region13: #{tpu_custom_call.1} parent=11 // pred_check
          %p282 = pneg %p47
        $region14: #{tpu_custom_call.1} parent=11 // pred_check_branch
          %284 = sbr.rel (%p282) target = $region16
        $region15: #{tpu_custom_call.1} parent=11 // pred_region
          %286 = vsyncadd [#allocation6], 0
          %s288 = sshll.u32 %s0, 4
          %s289 = int_to_ptr.hbm [resolvable:$true] %s288
          %291 = dma.hbm_to_smem %s289, 64, [#allocation3], [#allocation6]
        $region16: #{tpu_custom_call.1} parent=11 // pred_fallthru
          _
        // Predicated region
        $region17: #{tpu_custom_call.1} parent=11 // pred_check
          %p292 = pneg %p94
        $region18: #{tpu_custom_call.1} parent=11 // pred_check_branch
          %294 = sbr.rel (%p292) target = $region20
        $region19: #{tpu_custom_call.1} parent=11 // pred_region
          %296 = vsyncadd [#allocation9], 0
          %s297 = sshll.u32 %s2, 4
          %s298 = int_to_ptr.hbm [resolvable:$true] %s297
          %s299 = sshll.u32 [#allocation8], 4
          %s300 = int_to_ptr.vmem [resolvable:$true] %s299
          %305 = dma.hbm_to_vmem [thread:$0]  %s298, 13824, %s300, [#allocation9], 64, 64, 4
        $region20: #{tpu_custom_call.1} parent=11 // pred_fallthru
          _
        // Predicated region
        $region21: #{tpu_custom_call.1} parent=11 // pred_check
          %p306 = pneg %p115
        $region22: #{tpu_custom_call.1} parent=11 // pred_check_branch
          %308 = sbr.rel (%p306) target = $region24
        $region23: #{tpu_custom_call.1} parent=11 // pred_region
          %310 = vsyncadd [#allocation9], 0
          %s311 = sshll.u32 %s3, 4
          %s312 = int_to_ptr.hbm [resolvable:$true] %s311
          %s313 = sshll.u32 [#allocation10], 4
          %s314 = int_to_ptr.vmem [resolvable:$true] %s313
          %319 = dma.hbm_to_vmem [thread:$0]  %s312, 48, %s314, [#allocation9], 16, 16, 1
        $region24: #{tpu_custom_call.1} parent=11 // pred_fallthru
          _
        // Predicated region
        $region25: #{tpu_custom_call.1} parent=11 // pred_check
          %p320 = pneg %p136
        $region26: #{tpu_custom_call.1} parent=11 // pred_check_branch
          %322 = sbr.rel (%p320) target = $region28
        $region27: #{tpu_custom_call.1} parent=11 // pred_region
          %324 = vsyncadd [#allocation12], 0
          %s325 = sshll.u32 %s4, 4
          %s326 = int_to_ptr.hbm [resolvable:$true] %s325
          %s327 = sshll.u32 [#allocation11], 4
          %s328 = int_to_ptr.vmem [resolvable:$true] %s327
          %333 = dma.hbm_to_vmem [thread:$0]  %s326, 3072, %s328, [#allocation12], 128, 128, 8
        $region28: #{tpu_custom_call.1} parent=11 // pred_fallthru
          _
        // Predicated region
        $region29: #{tpu_custom_call.1} parent=11 // pred_check
          %p334 = pneg %p157
        $region30: #{tpu_custom_call.1} parent=11 // pred_check_branch
          %336 = sbr.rel (%p334) target = $region32
        $region31: #{tpu_custom_call.1} parent=11 // pred_region
          %338 = vsyncadd [#allocation12], 0
          %s339 = sshll.u32 %s5, 4
          %s340 = int_to_ptr.hbm [resolvable:$true] %s339
          %s341 = sshll.u32 [#allocation13], 4
          %s342 = int_to_ptr.vmem [resolvable:$true] %s341
          %347 = dma.hbm_to_vmem [thread:$0]  %s340, 96, %s342, [#allocation12], 32, 32, 2
        $region32: #{tpu_custom_call.1} parent=11 // pred_fallthru
          _
        // Predicated region
        $region33: #{tpu_custom_call.1} parent=11 // pred_check
          %p348 = pneg %p178
        $region34: #{tpu_custom_call.1} parent=11 // pred_check_branch
          %350 = sbr.rel (%p348) target = $region36
        $region35: #{tpu_custom_call.1} parent=11 // pred_region
          %352 = vsyncadd [#allocation15], 0
          %s353 = sshll.u32 %s6, 4
          %s354 = int_to_ptr.hbm [resolvable:$true] %s353
          %s355 = sshll.u32 [#allocation14], 4
          %s356 = int_to_ptr.vmem [resolvable:$true] %s355
          %361 = dma.hbm_to_vmem [thread:$0]  %s354, 1536, %s356, [#allocation15], 64, 64, 4
        $region36: #{tpu_custom_call.1} parent=11 // pred_fallthru
          _
        // Predicated region
        $region37: #{tpu_custom_call.1} parent=11 // pred_check
          %p362 = pneg %p199
        $region38: #{tpu_custom_call.1} parent=11 // pred_check_branch
          %364 = sbr.rel (%p362) target = $region40
        $region39: #{tpu_custom_call.1} parent=11 // pred_region
          _
        $region40: #{tpu_custom_call.1} parent=11 // pred_fallthru
          _
        // Predicated region
        $region41: #{tpu_custom_call.1} parent=11 // pred_check
          %p365 = pneg %p220
        $region42: #{tpu_custom_call.1} parent=11 // pred_check_branch
          %367 = sbr.rel (%p365) target = $region44
        $region43: #{tpu_custom_call.1} parent=11 // pred_region
          %369 = vsyncadd [#allocation15], 0
          %s370 = sshll.u32 %s8, 4
          %s371 = int_to_ptr.hbm [resolvable:$true] %s370
          %s372 = sshll.u32 [#allocation16], 4
          %s373 = int_to_ptr.vmem [resolvable:$true] %s372
          %378 = dma.hbm_to_vmem [thread:$0]  %s371, 512, %s373, [#allocation15], 64, 64, 4
        $region44: #{tpu_custom_call.1} parent=11 // pred_fallthru
          _
        // Predicated region
        $region45: #{tpu_custom_call.1} parent=11 // pred_check
          %p379 = pneg %p241
        $region46: #{tpu_custom_call.1} parent=11 // pred_check_branch
          %381 = sbr.rel (%p379) target = $region48
        $region47: #{tpu_custom_call.1} parent=11 // pred_region
          _
        $region48: #{tpu_custom_call.1} parent=11 // pred_fallthru
          _
      $region12: #{tpu_custom_call.1} parent=5 // pred_fallthru
        _
      %p382 = scmp.lt.s32.totalorder %s26, 2
      // Predicated region
      $region49: #{tpu_custom_call.1} parent=5 // pred_check
        %p383 = pneg %p382
      $region50: #{tpu_custom_call.1} parent=5 // pred_check_branch
        %385 = sbr.rel (%p383) target = $region52
      $region51: #{tpu_custom_call.1} parent=5 // pred_region
        // Predicated region
        $region53: #{tpu_custom_call.1} parent=51 // pred_check
          %p386 = pneg %p67
        $region54: #{tpu_custom_call.1} parent=51 // pred_check_branch
          %388 = sbr.rel (%p386) target = $region56
        $region55: #{tpu_custom_call.1} parent=51 // pred_region
          %s389 = sand.u32 %s57, 1
          %s390 = scalar_lea.sflag [#allocation4], %s389
          %s391 = sand.u32 %s57, 1
          %s392 = smul.addr %s391, 64
          %s393 = scalar_lea.vmem [#allocation7], %s392
          %395 = vsyncadd %s390, 0
          %s396 = smul.addr %s26, 8
          %s397 = smul.addr %s396, 8
          %s398 = scalar_lea.hbm %s1, %s397
          %s399 = sshll.u32 %s398, 4
          %s400 = int_to_ptr.hbm [resolvable:$true] %s399
          %s401 = sshll.u32 %s393, 4
          %s402 = int_to_ptr.vmem [resolvable:$true] %s401
          %407 = dma.hbm_to_vmem [thread:$0]  %s400, 1024, %s402, %s390, 128, 128, 8
        $region56: #{tpu_custom_call.1} parent=51 // pred_fallthru
          _
      $region52: #{tpu_custom_call.1} parent=5 // pred_fallthru
        _
      %p408 = scmp.le.s32.totalorder 1, %s26
      %p409 = scmp.lt.s32.totalorder %s26, 3
      %p410 = pnand %p408, %p409
      %p411 = pneg %p410
      // Predicated region
      $region57: #{tpu_custom_call.1} parent=5 // pred_check
        _
      $region58: #{tpu_custom_call.1} parent=5 // pred_check_branch
        %413 = sbr.rel (%p410) target = $region60
      $region59: #{tpu_custom_call.1} parent=5 // pred_region
        %s414 = ssub.s32 %s26, 1
        // Predicated region
        $region61: #{tpu_custom_call.1} parent=59 // pred_check
          %p415 = pneg %p47
        $region62: #{tpu_custom_call.1} parent=59 // pred_check_branch
          %417 = sbr.rel (%p415) target = $region64
        $region63: #{tpu_custom_call.1} parent=59 // pred_region
          %419 = dma.done [#allocation6], 64
        $region64: #{tpu_custom_call.1} parent=59 // pred_fallthru
          _
        %s420 = sand.u32 %s60, 1
        %s421 = scalar_lea.sflag [#allocation4], %s420
        %s422 = sand.u32 %s60, 1
        %s423 = smul.addr %s422, 64
        %s424 = scalar_lea.vmem [#allocation7], %s423
        // Predicated region
        $region65: #{tpu_custom_call.1} parent=59 // pred_check
          %p425 = pneg %p73
        $region66: #{tpu_custom_call.1} parent=59 // pred_check_branch
          %427 = sbr.rel (%p425) target = $region68
        $region67: #{tpu_custom_call.1} parent=59 // pred_region
          %429 = dma.done %s421, 1024
        $region68: #{tpu_custom_call.1} parent=59 // pred_fallthru
          _
        // Predicated region
        $region69: #{tpu_custom_call.1} parent=59 // pred_check
          %p430 = pneg %p94
        $region70: #{tpu_custom_call.1} parent=59 // pred_check_branch
          %432 = sbr.rel (%p430) target = $region72
        $region71: #{tpu_custom_call.1} parent=59 // pred_region
          %434 = dma.done [#allocation9], 13824
        $region72: #{tpu_custom_call.1} parent=59 // pred_fallthru
          _
        // Predicated region
        $region73: #{tpu_custom_call.1} parent=59 // pred_check
          %p435 = pneg %p115
        $region74: #{tpu_custom_call.1} parent=59 // pred_check_branch
          %437 = sbr.rel (%p435) target = $region76
        $region75: #{tpu_custom_call.1} parent=59 // pred_region
          %439 = dma.done [#allocation9], 48
        $region76: #{tpu_custom_call.1} parent=59 // pred_fallthru
          _
        // Predicated region
        $region77: #{tpu_custom_call.1} parent=59 // pred_check
          %p440 = pneg %p136
        $region78: #{tpu_custom_call.1} parent=59 // pred_check_branch
          %442 = sbr.rel (%p440) target = $region80
        $region79: #{tpu_custom_call.1} parent=59 // pred_region
          %444 = dma.done [#allocation12], 3072
        $region80: #{tpu_custom_call.1} parent=59 // pred_fallthru
          _
        // Predicated region
        $region81: #{tpu_custom_call.1} parent=59 // pred_check
          %p445 = pneg %p157
        $region82: #{tpu_custom_call.1} parent=59 // pred_check_branch
          %447 = sbr.rel (%p445) target = $region84
        $region83: #{tpu_custom_call.1} parent=59 // pred_region
          %449 = dma.done [#allocation12], 96
        $region84: #{tpu_custom_call.1} parent=59 // pred_fallthru
          _
        // Predicated region
        $region85: #{tpu_custom_call.1} parent=59 // pred_check
          %p450 = pneg %p178
        $region86: #{tpu_custom_call.1} parent=59 // pred_check_branch
          %452 = sbr.rel (%p450) target = $region88
        $region87: #{tpu_custom_call.1} parent=59 // pred_region
          %454 = dma.done [#allocation15], 1536
        $region88: #{tpu_custom_call.1} parent=59 // pred_fallthru
          _
        // Predicated region
        $region89: #{tpu_custom_call.1} parent=59 // pred_check
          %p455 = pneg %p220
        $region90: #{tpu_custom_call.1} parent=59 // pred_check_branch
          %457 = sbr.rel (%p455) target = $region92
        $region91: #{tpu_custom_call.1} parent=59 // pred_region
          %459 = dma.done [#allocation15], 512
        $region92: #{tpu_custom_call.1} parent=59 // pred_fallthru
          _
        %460 = sfence
        %p461 = pneg %p47
        %p462 = pneg %p44
        %s463 = sand.u32 %s60, 1
        %s464 = scalar_lea.sflag [#allocation4], %s463
        %s465 = sand.u32 %s60, 1
        %s466 = smul.addr %s465, 64
        %s467 = scalar_lea.vmem [#allocation7], %s466
        %p468 = pneg %p73
        %p469 = pneg %p70
        %p470 = pneg %p94
        %p471 = pneg %p91
        %p472 = pneg %p115
        %p473 = pneg %p112
        %p474 = pneg %p136
        %p475 = pneg %p133
        %p476 = pneg %p157
        %p477 = pneg %p154
        %p478 = pneg %p178
        %p479 = pneg %p175
        %p480 = pneg %p199
        %p481 = pneg %p196
        %p482 = pneg %p220
        %p483 = pneg %p217
        %p484 = pneg %p241
        %p485 = pneg %p238
        %p486 = pneg %p267
        %p487 = pneg %p264
        %s488 = sand.u32 %s254, 1
        %s489 = scalar_lea.sflag [#allocation5], %s488
        %s490 = sand.u32 %s254, 1
        %s491 = scalar_lea.vmem [#allocation17], %s490
        %vm493 = vcmask 523264
        %494 = vst.msk [vmem:[#allocation2] sm:$0xff] %vm493, 0.0
        %vm495 = vcmask 517120
        %496 = vst.msk [vmem:[#allocation2 + $0x8] sm:$0x3] %vm495, 0.0
        %s497 = scalar_lea.vmem [#allocation2], 144
        %498 = vst.msk [vmem:[%s497] sm:$0xff] %vm493, 0.0
        %499 = vst.msk [vmem:[%s497 + $0x8] sm:$0x3] %vm495, 0.0
        %vm500 = vcmask 516096
        %501 = vst.msk [vmem:[#allocation2] sm:$0x1] %vm500, 0.0
        %502 = vst.msk [vmem:[#allocation2 + $0x10] sm:$0x1] %vm500, 0.0
        %503 = vst.msk [vmem:[#allocation2 + $0x20] sm:$0x1] %vm500, 0.0
        %504 = vst.msk [vmem:[#allocation2 + $0x30] sm:$0x1] %vm500, 0.0
        %505 = vst.msk [vmem:[#allocation2 + $0x40] sm:$0x1] %vm500, 0.0
        %506 = vst.msk [vmem:[#allocation2 + $0x50] sm:$0x1] %vm500, 0.0
        %507 = vst.msk [vmem:[#allocation2 + $0x60] sm:$0x1] %vm500, 0.0
        %508 = vst.msk [vmem:[#allocation2 + $0x70] sm:$0x1] %vm500, 0.0
        %509 = vst.msk [vmem:[#allocation2 + $0x80] sm:$0x1] %vm500, 0.0
        %510 = vst.msk [vmem:[#allocation2 + $0x90] sm:$0x1] %vm500, 0.0
        %511 = vst.msk [vmem:[#allocation2 + $0x9] sm:$0x1] %vm500, 0.0
        %512 = vst.msk [vmem:[#allocation2 + $0x19] sm:$0x1] %vm500, 0.0
        %513 = vst.msk [vmem:[#allocation2 + $0x29] sm:$0x1] %vm500, 0.0
        %514 = vst.msk [vmem:[#allocation2 + $0x39] sm:$0x1] %vm500, 0.0
        %515 = vst.msk [vmem:[#allocation2 + $0x49] sm:$0x1] %vm500, 0.0
        %516 = vst.msk [vmem:[#allocation2 + $0x59] sm:$0x1] %vm500, 0.0
        %517 = vst.msk [vmem:[#allocation2 + $0x69] sm:$0x1] %vm500, 0.0
        %518 = vst.msk [vmem:[#allocation2 + $0x79] sm:$0x1] %vm500, 0.0
        %519 = vst.msk [vmem:[#allocation2 + $0x89] sm:$0x1] %vm500, 0.0
        %520 = vst.msk [vmem:[#allocation2 + $0x99] sm:$0x1] %vm500, 0.0
        %v521 = vld [vmem:[%s424] sm:$0xff]
        %v522 = vld [vmem:[%s424 + $0x8] sm:$0xff]
        %v523 = vld [vmem:[%s424 + $0x10] sm:$0xff]
        %v524 = vld [vmem:[%s424 + $0x18] sm:$0xff]
        %v525 = vld [vmem:[%s424 + $0x20] sm:$0xff]
        %v526 = vld [vmem:[%s424 + $0x28] sm:$0xff]
        %v527 = vld [vmem:[%s424 + $0x30] sm:$0xff]
        %v528 = vld [vmem:[%s424 + $0x38] sm:$0xff]
        %s529 = scalar_lea.vmem [#allocation2], 16
        %530 = vst.msk [vmem:[%s529 + $0x1] sm:$0xff] %vm493, %v521
        %531 = vst.msk [vmem:[%s529 + $0x11] sm:$0xff] %vm493, %v522
        %532 = vst.msk [vmem:[%s529 + $0x21] sm:$0xff] %vm493, %v523
        %533 = vst.msk [vmem:[%s529 + $0x31] sm:$0xff] %vm493, %v524
        %534 = vst.msk [vmem:[%s529 + $0x41] sm:$0xff] %vm493, %v525
        %535 = vst.msk [vmem:[%s529 + $0x51] sm:$0xff] %vm493, %v526
        %536 = vst.msk [vmem:[%s529 + $0x61] sm:$0xff] %vm493, %v527
        %537 = vst.msk [vmem:[%s529 + $0x71] sm:$0xff] %vm493, %v528
        %v538 = vld [vmem:[#allocation2] sm:$0xff]
        %v539 = vld [vmem:[#allocation2 + $0x10] sm:$0xff]
        %v540 = vld [vmem:[#allocation2 + $0x20] sm:$0xff]
        %v541 = vld [vmem:[#allocation2 + $0x30] sm:$0xff]
        %v542 = vld [vmem:[#allocation2 + $0x40] sm:$0xff]
        %v543 = vld [vmem:[#allocation2 + $0x50] sm:$0xff]
        %v544 = vld [vmem:[#allocation2 + $0x60] sm:$0xff]
        %v545 = vld [vmem:[#allocation2 + $0x70] sm:$0xff]
        %v546 = vpack.c.bf16 %v538, %v538
        %v547 = vpack.c.bf16 %v539, %v539
        %v548 = vpack.c.bf16 %v540, %v540
        %v549 = vpack.c.bf16 %v541, %v541
        %v550 = vpack.c.bf16 %v542, %v542
        %v551 = vpack.c.bf16 %v543, %v543
        %v552 = vpack.c.bf16 %v544, %v544
        %v553 = vpack.c.bf16 %v545, %v545
        %v554 = vld [vmem:[#allocation2 + $0x1] sm:$0xff]
        %v555 = vld [vmem:[#allocation2 + $0x11] sm:$0xff]
        %v556 = vld [vmem:[#allocation2 + $0x21] sm:$0xff]
        %v557 = vld [vmem:[#allocation2 + $0x31] sm:$0xff]
        %v558 = vld [vmem:[#allocation2 + $0x41] sm:$0xff]
        %v559 = vld [vmem:[#allocation2 + $0x51] sm:$0xff]
        %v560 = vld [vmem:[#allocation2 + $0x61] sm:$0xff]
        %v561 = vld [vmem:[#allocation2 + $0x71] sm:$0xff]
        %v562 = vpack.c.bf16 %v554, %v554
        %v563 = vpack.c.bf16 %v555, %v555
        %v564 = vpack.c.bf16 %v556, %v556
        %v565 = vpack.c.bf16 %v557, %v557
        %v566 = vpack.c.bf16 %v558, %v558
        %v567 = vpack.c.bf16 %v559, %v559
        %v568 = vpack.c.bf16 %v560, %v560
        %v569 = vpack.c.bf16 %v561, %v561
        %v570 = vld [vmem:[#allocation2 + $0x2] sm:$0xff]
        %v571 = vld [vmem:[#allocation2 + $0x12] sm:$0xff]
        %v572 = vld [vmem:[#allocation2 + $0x22] sm:$0xff]
        %v573 = vld [vmem:[#allocation2 + $0x32] sm:$0xff]
        %v574 = vld [vmem:[#allocation2 + $0x42] sm:$0xff]
        %v575 = vld [vmem:[#allocation2 + $0x52] sm:$0xff]
        %v576 = vld [vmem:[#allocation2 + $0x62] sm:$0xff]
        %v577 = vld [vmem:[#allocation2 + $0x72] sm:$0xff]
        %v578 = vpack.c.bf16 %v570, %v570
        %v579 = vpack.c.bf16 %v571, %v571
        %v580 = vpack.c.bf16 %v572, %v572
        %v581 = vpack.c.bf16 %v573, %v573
        %v582 = vpack.c.bf16 %v574, %v574
        %v583 = vpack.c.bf16 %v575, %v575
        %v584 = vpack.c.bf16 %v576, %v576
        %v585 = vpack.c.bf16 %v577, %v577
        %v586 = vld [vmem:[%s529] sm:$0xff]
        %v587 = vld [vmem:[%s529 + $0x10] sm:$0xff]
        %v588 = vld [vmem:[%s529 + $0x20] sm:$0xff]
        %v589 = vld [vmem:[%s529 + $0x30] sm:$0xff]
        %v590 = vld [vmem:[%s529 + $0x40] sm:$0xff]
        %v591 = vld [vmem:[%s529 + $0x50] sm:$0xff]
        %v592 = vld [vmem:[%s529 + $0x60] sm:$0xff]
        %v593 = vld [vmem:[%s529 + $0x70] sm:$0xff]
        %v594 = vpack.c.bf16 %v586, %v586
        %v595 = vpack.c.bf16 %v587, %v587
        %v596 = vpack.c.bf16 %v588, %v588
        %v597 = vpack.c.bf16 %v589, %v589
        %v598 = vpack.c.bf16 %v590, %v590
        %v599 = vpack.c.bf16 %v591, %v591
        %v600 = vpack.c.bf16 %v592, %v592
        %v601 = vpack.c.bf16 %v593, %v593
        %v602 = vld [vmem:[%s529 + $0x1] sm:$0xff]
        %v603 = vld [vmem:[%s529 + $0x11] sm:$0xff]
        %v604 = vld [vmem:[%s529 + $0x21] sm:$0xff]
        %v605 = vld [vmem:[%s529 + $0x31] sm:$0xff]
        %v606 = vld [vmem:[%s529 + $0x41] sm:$0xff]
        %v607 = vld [vmem:[%s529 + $0x51] sm:$0xff]
        %v608 = vld [vmem:[%s529 + $0x61] sm:$0xff]
        %v609 = vld [vmem:[%s529 + $0x71] sm:$0xff]
        %v610 = vpack.c.bf16 %v602, %v602
        %v611 = vpack.c.bf16 %v603, %v603
        %v612 = vpack.c.bf16 %v604, %v604
        %v613 = vpack.c.bf16 %v605, %v605
        %v614 = vpack.c.bf16 %v606, %v606
        %v615 = vpack.c.bf16 %v607, %v607
        %v616 = vpack.c.bf16 %v608, %v608
        %v617 = vpack.c.bf16 %v609, %v609
        %v618 = vld [vmem:[%s529 + $0x2] sm:$0xff]
        %v619 = vld [vmem:[%s529 + $0x12] sm:$0xff]
        %v620 = vld [vmem:[%s529 + $0x22] sm:$0xff]
        %v621 = vld [vmem:[%s529 + $0x32] sm:$0xff]
        %v622 = vld [vmem:[%s529 + $0x42] sm:$0xff]
        %v623 = vld [vmem:[%s529 + $0x52] sm:$0xff]
        %v624 = vld [vmem:[%s529 + $0x62] sm:$0xff]
        %v625 = vld [vmem:[%s529 + $0x72] sm:$0xff]
        %v626 = vpack.c.bf16 %v618, %v618
        %v627 = vpack.c.bf16 %v619, %v619
        %v628 = vpack.c.bf16 %v620, %v620
        %v629 = vpack.c.bf16 %v621, %v621
        %v630 = vpack.c.bf16 %v622, %v622
        %v631 = vpack.c.bf16 %v623, %v623
        %v632 = vpack.c.bf16 %v624, %v624
        %v633 = vpack.c.bf16 %v625, %v625
        %s634 = scalar_lea.vmem [#allocation2], 32
        %v635 = vld [vmem:[%s634] sm:$0xff]
        %v636 = vld [vmem:[%s634 + $0x10] sm:$0xff]
        %v637 = vld [vmem:[%s634 + $0x20] sm:$0xff]
        %v638 = vld [vmem:[%s634 + $0x30] sm:$0xff]
        %v639 = vld [vmem:[%s634 + $0x40] sm:$0xff]
        %v640 = vld [vmem:[%s634 + $0x50] sm:$0xff]
        %v641 = vld [vmem:[%s634 + $0x60] sm:$0xff]
        %v642 = vld [vmem:[%s634 + $0x70] sm:$0xff]
        %v643 = vpack.c.bf16 %v635, %v635
        %v644 = vpack.c.bf16 %v636, %v636
        %v645 = vpack.c.bf16 %v637, %v637
        %v646 = vpack.c.bf16 %v638, %v638
        %v647 = vpack.c.bf16 %v639, %v639
        %v648 = vpack.c.bf16 %v640, %v640
        %v649 = vpack.c.bf16 %v641, %v641
        %v650 = vpack.c.bf16 %v642, %v642
        %v651 = vld [vmem:[%s634 + $0x1] sm:$0xff]
        %v652 = vld [vmem:[%s634 + $0x11] sm:$0xff]
        %v653 = vld [vmem:[%s634 + $0x21] sm:$0xff]
        %v654 = vld [vmem:[%s634 + $0x31] sm:$0xff]
        %v655 = vld [vmem:[%s634 + $0x41] sm:$0xff]
        %v656 = vld [vmem:[%s634 + $0x51] sm:$0xff]
        %v657 = vld [vmem:[%s634 + $0x61] sm:$0xff]
        %v658 = vld [vmem:[%s634 + $0x71] sm:$0xff]
        %v659 = vpack.c.bf16 %v651, %v651
        %v660 = vpack.c.bf16 %v652, %v652
        %v661 = vpack.c.bf16 %v653, %v653
        %v662 = vpack.c.bf16 %v654, %v654
        %v663 = vpack.c.bf16 %v655, %v655
        %v664 = vpack.c.bf16 %v656, %v656
        %v665 = vpack.c.bf16 %v657, %v657
        %v666 = vpack.c.bf16 %v658, %v658
        %v667 = vld [vmem:[%s634 + $0x2] sm:$0xff]
        %v668 = vld [vmem:[%s634 + $0x12] sm:$0xff]
        %v669 = vld [vmem:[%s634 + $0x22] sm:$0xff]
        %v670 = vld [vmem:[%s634 + $0x32] sm:$0xff]
        %v671 = vld [vmem:[%s634 + $0x42] sm:$0xff]
        %v672 = vld [vmem:[%s634 + $0x52] sm:$0xff]
        %v673 = vld [vmem:[%s634 + $0x62] sm:$0xff]
        %v674 = vld [vmem:[%s634 + $0x72] sm:$0xff]
        %v675 = vpack.c.bf16 %v667, %v667
        %v676 = vpack.c.bf16 %v668, %v668
        %v677 = vpack.c.bf16 %v669, %v669
        %v678 = vpack.c.bf16 %v670, %v670
        %v679 = vpack.c.bf16 %v671, %v671
        %v680 = vpack.c.bf16 %v672, %v672
        %v681 = vpack.c.bf16 %v673, %v673
        %v682 = vpack.c.bf16 %v674, %v674
        %v691 = vunpack.c.l.b16 %v546
        %v692 = vunpack.c.l.b16 %v547
        %v693 = vunpack.c.l.b16 %v548
        %v694 = vunpack.c.l.b16 %v549
        %v695 = vunpack.c.l.b16 %v550
        %v696 = vunpack.c.l.b16 %v551
        %v697 = vunpack.c.l.b16 %v552
        %v698 = vunpack.c.l.b16 %v553
        %v699 = vpack.c.b16 %v692, %v691
        %v700 = vpack.c.b16 %v694, %v693
        %v701 = vpack.c.b16 %v696, %v695
        %v702 = vpack.c.b16 %v698, %v697
        %v711 = vunpack.c.l.b16 %v562
        %v712 = vunpack.c.l.b16 %v563
        %v713 = vunpack.c.l.b16 %v564
        %v714 = vunpack.c.l.b16 %v565
        %v715 = vunpack.c.l.b16 %v566
        %v716 = vunpack.c.l.b16 %v567
        %v717 = vunpack.c.l.b16 %v568
        %v718 = vunpack.c.l.b16 %v569
        %v719 = vpack.c.b16 %v712, %v711
        %v720 = vpack.c.b16 %v714, %v713
        %v721 = vpack.c.b16 %v716, %v715
        %v722 = vpack.c.b16 %v718, %v717
        %723 = vrot.lane.b32.xlu0 %v719, 64
        %v724 = vpop.permute.xlu0 %723
        %725 = vrot.lane.b32.xlu0 %v720, 64
        %v726 = vpop.permute.xlu0 %725
        %727 = vrot.lane.b32.xlu0 %v721, 64
        %v728 = vpop.permute.xlu0 %727
        %729 = vrot.lane.b32.xlu0 %v722, 64
        %v730 = vpop.permute.xlu0 %729
        %v739 = vunpack.c.l.b16 %v578
        %v740 = vunpack.c.l.b16 %v579
        %v741 = vunpack.c.l.b16 %v580
        %v742 = vunpack.c.l.b16 %v581
        %v743 = vunpack.c.l.b16 %v582
        %v744 = vunpack.c.l.b16 %v583
        %v745 = vunpack.c.l.b16 %v584
        %v746 = vunpack.c.l.b16 %v585
        %v747 = vpack.c.b16 %v740, %v739
        %v748 = vpack.c.b16 %v742, %v741
        %v749 = vpack.c.b16 %v744, %v743
        %v750 = vpack.c.b16 %v746, %v745
        %v759 = vunpack.c.l.b16 %v594
        %v760 = vunpack.c.l.b16 %v595
        %v761 = vunpack.c.l.b16 %v596
        %v762 = vunpack.c.l.b16 %v597
        %v763 = vunpack.c.l.b16 %v598
        %v764 = vunpack.c.l.b16 %v599
        %v765 = vunpack.c.l.b16 %v600
        %v766 = vunpack.c.l.b16 %v601
        %v767 = vpack.c.b16 %v760, %v759
        %v768 = vpack.c.b16 %v762, %v761
        %v769 = vpack.c.b16 %v764, %v763
        %v770 = vpack.c.b16 %v766, %v765
        %771 = vrot.lane.b32.xlu0 %v767, 64
        %v772 = vpop.permute.xlu0 %771
        %773 = vrot.lane.b32.xlu0 %v768, 64
        %v774 = vpop.permute.xlu0 %773
        %775 = vrot.lane.b32.xlu0 %v769, 64
        %v776 = vpop.permute.xlu0 %775
        %777 = vrot.lane.b32.xlu0 %v770, 64
        %v778 = vpop.permute.xlu0 %777
        %v787 = vunpack.c.l.b16 %v610
        %v788 = vunpack.c.l.b16 %v611
        %v789 = vunpack.c.l.b16 %v612
        %v790 = vunpack.c.l.b16 %v613
        %v791 = vunpack.c.l.b16 %v614
        %v792 = vunpack.c.l.b16 %v615
        %v793 = vunpack.c.l.b16 %v616
        %v794 = vunpack.c.l.b16 %v617
        %v795 = vpack.c.b16 %v788, %v787
        %v796 = vpack.c.b16 %v790, %v789
        %v797 = vpack.c.b16 %v792, %v791
        %v798 = vpack.c.b16 %v794, %v793
        %v807 = vunpack.c.l.b16 %v626
        %v808 = vunpack.c.l.b16 %v627
        %v809 = vunpack.c.l.b16 %v628
        %v810 = vunpack.c.l.b16 %v629
        %v811 = vunpack.c.l.b16 %v630
        %v812 = vunpack.c.l.b16 %v631
        %v813 = vunpack.c.l.b16 %v632
        %v814 = vunpack.c.l.b16 %v633
        %v815 = vpack.c.b16 %v808, %v807
        %v816 = vpack.c.b16 %v810, %v809
        %v817 = vpack.c.b16 %v812, %v811
        %v818 = vpack.c.b16 %v814, %v813
        %819 = vrot.lane.b32.xlu0 %v815, 64
        %v820 = vpop.permute.xlu0 %819
        %821 = vrot.lane.b32.xlu0 %v816, 64
        %v822 = vpop.permute.xlu0 %821
        %823 = vrot.lane.b32.xlu0 %v817, 64
        %v824 = vpop.permute.xlu0 %823
        %825 = vrot.lane.b32.xlu0 %v818, 64
        %v826 = vpop.permute.xlu0 %825
        %v835 = vunpack.c.l.b16 %v643
        %v836 = vunpack.c.l.b16 %v644
        %v837 = vunpack.c.l.b16 %v645
        %v838 = vunpack.c.l.b16 %v646
        %v839 = vunpack.c.l.b16 %v647
        %v840 = vunpack.c.l.b16 %v648
        %v841 = vunpack.c.l.b16 %v649
        %v842 = vunpack.c.l.b16 %v650
        %v843 = vpack.c.b16 %v836, %v835
        %v844 = vpack.c.b16 %v838, %v837
        %v845 = vpack.c.b16 %v840, %v839
        %v846 = vpack.c.b16 %v842, %v841
        %v855 = vunpack.c.l.b16 %v659
        %v856 = vunpack.c.l.b16 %v660
        %v857 = vunpack.c.l.b16 %v661
        %v858 = vunpack.c.l.b16 %v662
        %v859 = vunpack.c.l.b16 %v663
        %v860 = vunpack.c.l.b16 %v664
        %v861 = vunpack.c.l.b16 %v665
        %v862 = vunpack.c.l.b16 %v666
        %v863 = vpack.c.b16 %v856, %v855
        %v864 = vpack.c.b16 %v858, %v857
        %v865 = vpack.c.b16 %v860, %v859
        %v866 = vpack.c.b16 %v862, %v861
        %867 = vrot.lane.b32.xlu0 %v863, 64
        %v868 = vpop.permute.xlu0 %867
        %869 = vrot.lane.b32.xlu0 %v864, 64
        %v870 = vpop.permute.xlu0 %869
        %871 = vrot.lane.b32.xlu0 %v865, 64
        %v872 = vpop.permute.xlu0 %871
        %873 = vrot.lane.b32.xlu0 %v866, 64
        %v874 = vpop.permute.xlu0 %873
        %v883 = vunpack.c.l.b16 %v675
        %v884 = vunpack.c.l.b16 %v676
        %v885 = vunpack.c.l.b16 %v677
        %v886 = vunpack.c.l.b16 %v678
        %v887 = vunpack.c.l.b16 %v679
        %v888 = vunpack.c.l.b16 %v680
        %v889 = vunpack.c.l.b16 %v681
        %v890 = vunpack.c.l.b16 %v682
        %v891 = vpack.c.b16 %v884, %v883
        %v892 = vpack.c.b16 %v886, %v885
        %v893 = vpack.c.b16 %v888, %v887
        %v894 = vpack.c.b16 %v890, %v889
        %v897 = vsel %vm493, %v699, %v724
        %v901 = vsel %vm493, %v700, %v726
        %v905 = vsel %vm493, %v701, %v728
        %v909 = vsel %vm493, %v702, %v730
        %v913 = vsel %vm493, %v747, %v772
        %v917 = vsel %vm493, %v748, %v774
        %v921 = vsel %vm493, %v749, %v776
        %v925 = vsel %vm493, %v750, %v778
        %v929 = vsel %vm493, %v795, %v820
        %v933 = vsel %vm493, %v796, %v822
        %v937 = vsel %vm493, %v797, %v824
        %v941 = vsel %vm493, %v798, %v826
        %v945 = vsel %vm493, %v843, %v868
        %v949 = vsel %vm493, %v844, %v870
        %v953 = vsel %vm493, %v845, %v872
        %v957 = vsel %vm493, %v846, %v874
        %v959 = vld [vmem:[#allocation8] sm:$0xf]
        %v960 = vld [vmem:[#allocation8 + $0x4] sm:$0xf]
        %v961 = vld [vmem:[#allocation8 + $0x8] sm:$0xf]
        %v962 = vld [vmem:[#allocation8 + $0xc] sm:$0xf]
        %v963 = vld [vmem:[#allocation8 + $0x10] sm:$0xf]
        %v964 = vld [vmem:[#allocation8 + $0x14] sm:$0xf]
        %v965 = vld [vmem:[#allocation8 + $0x18] sm:$0xf]
        %v966 = vld [vmem:[#allocation8 + $0x1c] sm:$0xf]
        %v967 = vld [vmem:[#allocation8 + $0x20] sm:$0xf]
        %v968 = vld [vmem:[#allocation8 + $0x24] sm:$0xf]
        %v969 = vld [vmem:[#allocation8 + $0x28] sm:$0xf]
        %v970 = vld [vmem:[#allocation8 + $0x2c] sm:$0xf]
        %v971 = vld [vmem:[#allocation8 + $0x30] sm:$0xf]
        %v972 = vld [vmem:[#allocation8 + $0x34] sm:$0xf]
        %v973 = vld [vmem:[#allocation8 + $0x38] sm:$0xf]
        %v974 = vld [vmem:[#allocation8 + $0x3c] sm:$0xf]
        %v975 = vld [vmem:[#allocation8 + $0x40] sm:$0xf]
        %v976 = vld [vmem:[#allocation8 + $0x44] sm:$0xf]
        %v977 = vld [vmem:[#allocation8 + $0x48] sm:$0xf]
        %v978 = vld [vmem:[#allocation8 + $0x4c] sm:$0xf]
        %v979 = vld [vmem:[#allocation8 + $0x50] sm:$0xf]
        %v980 = vld [vmem:[#allocation8 + $0x54] sm:$0xf]
        %v981 = vld [vmem:[#allocation8 + $0x58] sm:$0xf]
        %v982 = vld [vmem:[#allocation8 + $0x5c] sm:$0xf]
        %v983 = vld [vmem:[#allocation8 + $0x60] sm:$0xf]
        %v984 = vld [vmem:[#allocation8 + $0x64] sm:$0xf]
        %v985 = vld [vmem:[#allocation8 + $0x68] sm:$0xf]
        %v986 = vld [vmem:[#allocation8 + $0x6c] sm:$0xf]
        %v987 = vld [vmem:[#allocation8 + $0x70] sm:$0xf]
        %v988 = vld [vmem:[#allocation8 + $0x74] sm:$0xf]
        %v989 = vld [vmem:[#allocation8 + $0x78] sm:$0xf]
        %v990 = vld [vmem:[#allocation8 + $0x7c] sm:$0xf]
        %v991 = vld [vmem:[#allocation8 + $0x80] sm:$0xf]
        %v992 = vld [vmem:[#allocation8 + $0x84] sm:$0xf]
        %v993 = vld [vmem:[#allocation8 + $0x88] sm:$0xf]
        %v994 = vld [vmem:[#allocation8 + $0x8c] sm:$0xf]
        %v995 = vld [vmem:[#allocation8 + $0x90] sm:$0xf]
        %v996 = vld [vmem:[#allocation8 + $0x94] sm:$0xf]
        %v997 = vld [vmem:[#allocation8 + $0x98] sm:$0xf]
        %v998 = vld [vmem:[#allocation8 + $0x9c] sm:$0xf]
        %v999 = vld [vmem:[#allocation8 + $0xa0] sm:$0xf]
        %v1000 = vld [vmem:[#allocation8 + $0xa4] sm:$0xf]
        %v1001 = vld [vmem:[#allocation8 + $0xa8] sm:$0xf]
        %v1002 = vld [vmem:[#allocation8 + $0xac] sm:$0xf]
        %v1003 = vld [vmem:[#allocation8 + $0xb0] sm:$0xf]
        %v1004 = vld [vmem:[#allocation8 + $0xb4] sm:$0xf]
        %v1005 = vld [vmem:[#allocation8 + $0xb8] sm:$0xf]
        %v1006 = vld [vmem:[#allocation8 + $0xbc] sm:$0xf]
        %v1007 = vld [vmem:[#allocation8 + $0xc0] sm:$0xf]
        %v1008 = vld [vmem:[#allocation8 + $0xc4] sm:$0xf]
        %v1009 = vld [vmem:[#allocation8 + $0xc8] sm:$0xf]
        %v1010 = vld [vmem:[#allocation8 + $0xcc] sm:$0xf]
        %v1011 = vld [vmem:[#allocation8 + $0xd0] sm:$0xf]
        %v1012 = vld [vmem:[#allocation8 + $0xd4] sm:$0xf]
        %v1013 = vld [vmem:[#allocation8 + $0xd8] sm:$0xf]
        %v1014 = vld [vmem:[#allocation8 + $0xdc] sm:$0xf]
        %v1015 = vld [vmem:[#allocation8 + $0xe0] sm:$0xf]
        %v1016 = vld [vmem:[#allocation8 + $0xe4] sm:$0xf]
        %v1017 = vld [vmem:[#allocation8 + $0xe8] sm:$0xf]
        %v1018 = vld [vmem:[#allocation8 + $0xec] sm:$0xf]
        %v1019 = vld [vmem:[#allocation8 + $0xf0] sm:$0xf]
        %v1020 = vld [vmem:[#allocation8 + $0xf4] sm:$0xf]
        %v1021 = vld [vmem:[#allocation8 + $0xf8] sm:$0xf]
        %v1022 = vld [vmem:[#allocation8 + $0xfc] sm:$0xf]
        %v1023 = vld [vmem:[#allocation8 + $0x100] sm:$0xf]
        %v1024 = vld [vmem:[#allocation8 + $0x104] sm:$0xf]
        %v1025 = vld [vmem:[#allocation8 + $0x108] sm:$0xf]
        %v1026 = vld [vmem:[#allocation8 + $0x10c] sm:$0xf]
        %v1027 = vld [vmem:[#allocation8 + $0x110] sm:$0xf]
        %v1028 = vld [vmem:[#allocation8 + $0x114] sm:$0xf]
        %v1029 = vld [vmem:[#allocation8 + $0x118] sm:$0xf]
        %v1030 = vld [vmem:[#allocation8 + $0x11c] sm:$0xf]
        %v1103 = vunpack.c.l.b16 %v959
        %v1104 = vunpack.c.l.b16 %v960
        %v1105 = vunpack.c.l.b16 %v961
        %v1106 = vunpack.c.l.b16 %v962
        %v1107 = vunpack.c.l.b16 %v963
        %v1108 = vunpack.c.l.b16 %v964
        %v1109 = vunpack.c.l.b16 %v965
        %v1110 = vunpack.c.l.b16 %v966
        %v1111 = vunpack.c.l.b16 %v967
        %v1112 = vunpack.c.l.b16 %v968
        %v1113 = vunpack.c.l.b16 %v969
        %v1114 = vunpack.c.l.b16 %v970
        %v1115 = vunpack.c.l.b16 %v971
        %v1116 = vunpack.c.l.b16 %v972
        %v1117 = vunpack.c.l.b16 %v973
        %v1118 = vunpack.c.l.b16 %v974
        %v1119 = vunpack.c.l.b16 %v975
        %v1120 = vunpack.c.l.b16 %v976
        %v1121 = vunpack.c.l.b16 %v977
        %v1122 = vunpack.c.l.b16 %v978
        %v1123 = vunpack.c.l.b16 %v979
        %v1124 = vunpack.c.l.b16 %v980
        %v1125 = vunpack.c.l.b16 %v981
        %v1126 = vunpack.c.l.b16 %v982
        %v1127 = vunpack.c.l.b16 %v983
        %v1128 = vunpack.c.l.b16 %v984
        %v1129 = vunpack.c.l.b16 %v985
        %v1130 = vunpack.c.l.b16 %v986
        %v1131 = vunpack.c.l.b16 %v987
        %v1132 = vunpack.c.l.b16 %v988
        %v1133 = vunpack.c.l.b16 %v989
        %v1134 = vunpack.c.l.b16 %v990
        %v1135 = vunpack.c.l.b16 %v991
        %v1136 = vunpack.c.l.b16 %v992
        %v1137 = vunpack.c.l.b16 %v993
        %v1138 = vunpack.c.l.b16 %v994
        %v1139 = vunpack.c.l.b16 %v995
        %v1140 = vunpack.c.l.b16 %v996
        %v1141 = vunpack.c.l.b16 %v997
        %v1142 = vunpack.c.l.b16 %v998
        %v1143 = vunpack.c.l.b16 %v999
        %v1144 = vunpack.c.l.b16 %v1000
        %v1145 = vunpack.c.l.b16 %v1001
        %v1146 = vunpack.c.l.b16 %v1002
        %v1147 = vunpack.c.l.b16 %v1003
        %v1148 = vunpack.c.l.b16 %v1004
        %v1149 = vunpack.c.l.b16 %v1005
        %v1150 = vunpack.c.l.b16 %v1006
        %v1151 = vunpack.c.l.b16 %v1007
        %v1152 = vunpack.c.l.b16 %v1008
        %v1153 = vunpack.c.l.b16 %v1009
        %v1154 = vunpack.c.l.b16 %v1010
        %v1155 = vunpack.c.l.b16 %v1011
        %v1156 = vunpack.c.l.b16 %v1012
        %v1157 = vunpack.c.l.b16 %v1013
        %v1158 = vunpack.c.l.b16 %v1014
        %v1159 = vunpack.c.l.b16 %v1015
        %v1160 = vunpack.c.l.b16 %v1016
        %v1161 = vunpack.c.l.b16 %v1017
        %v1162 = vunpack.c.l.b16 %v1018
        %v1163 = vunpack.c.l.b16 %v1019
        %v1164 = vunpack.c.l.b16 %v1020
        %v1165 = vunpack.c.l.b16 %v1021
        %v1166 = vunpack.c.l.b16 %v1022
        %v1167 = vunpack.c.l.b16 %v1023
        %v1168 = vunpack.c.l.b16 %v1024
        %v1169 = vunpack.c.l.b16 %v1025
        %v1170 = vunpack.c.l.b16 %v1026
        %v1171 = vunpack.c.l.b16 %v1027
        %v1172 = vunpack.c.l.b16 %v1028
        %v1173 = vunpack.c.l.b16 %v1029
        %v1174 = vunpack.c.l.b16 %v1030
        %v1175 = vpack.c.b16 %v1104, %v1103
        %v1176 = vpack.c.b16 %v1106, %v1105
        %v1177 = vpack.c.b16 %v1108, %v1107
        %v1178 = vpack.c.b16 %v1110, %v1109
        %v1179 = vpack.c.b16 %v1112, %v1111
        %v1180 = vpack.c.b16 %v1114, %v1113
        %v1181 = vpack.c.b16 %v1116, %v1115
        %v1182 = vpack.c.b16 %v1118, %v1117
        %v1183 = vpack.c.b16 %v1120, %v1119
        %v1184 = vpack.c.b16 %v1122, %v1121
        %v1185 = vpack.c.b16 %v1124, %v1123
        %v1186 = vpack.c.b16 %v1126, %v1125
        %v1187 = vpack.c.b16 %v1128, %v1127
        %v1188 = vpack.c.b16 %v1130, %v1129
        %v1189 = vpack.c.b16 %v1132, %v1131
        %v1190 = vpack.c.b16 %v1134, %v1133
        %v1191 = vpack.c.b16 %v1136, %v1135
        %v1192 = vpack.c.b16 %v1138, %v1137
        %v1193 = vpack.c.b16 %v1140, %v1139
        %v1194 = vpack.c.b16 %v1142, %v1141
        %v1195 = vpack.c.b16 %v1144, %v1143
        %v1196 = vpack.c.b16 %v1146, %v1145
        %v1197 = vpack.c.b16 %v1148, %v1147
        %v1198 = vpack.c.b16 %v1150, %v1149
        %v1199 = vpack.c.b16 %v1152, %v1151
        %v1200 = vpack.c.b16 %v1154, %v1153
        %v1201 = vpack.c.b16 %v1156, %v1155
        %v1202 = vpack.c.b16 %v1158, %v1157
        %v1203 = vpack.c.b16 %v1160, %v1159
        %v1204 = vpack.c.b16 %v1162, %v1161
        %v1205 = vpack.c.b16 %v1164, %v1163
        %v1206 = vpack.c.b16 %v1166, %v1165
        %v1207 = vpack.c.b16 %v1168, %v1167
        %v1208 = vpack.c.b16 %v1170, %v1169
        %v1209 = vpack.c.b16 %v1172, %v1171
        %v1210 = vpack.c.b16 %v1174, %v1173
        %v1248 = vsel %vm493, %v891, 0
        %v1251 = vsel %vm493, %v892, 0
        %v1254 = vsel %vm493, %v893, 0
        %v1257 = vsel %vm493, %v894, 0
        %1259 = vmatpush.bf16.msra.mxu0 %v1182
        %1260 = vmatpush.bf16.msra.mxu0 %v1181
        %1261 = vmatpush.bf16.msra.mxu0 %v1180
        %1262 = vmatpush.bf16.msra.mxu0 %v1179
        %1263 = vmatpush.bf16.msra.mxu0 %v1178
        %1264 = vmatpush.bf16.msra.mxu0 %v1177
        %1265 = vmatpush.bf16.msra.mxu0 %v1176
        %1266 = vmatpush.bf16.msra.mxu0 %v1175
        %1267 = vmatmul.bf16.gmra.mxu0 %v897
        %v1268 = vpop.f32.mrf.mxu0
        %v1269 = vadd.f32 0.0, %v1268
        %v1270 = vpop.f32.mrf.mxu0
        %v1271 = vadd.f32 0.0, %v1270
        %1272 = vmatmul.bf16.gmra.mxu0 %v901
        %v1273 = vpop.f32.mrf.mxu0
        %v1274 = vadd.f32 0.0, %v1273
        %v1275 = vpop.f32.mrf.mxu0
        %v1276 = vadd.f32 0.0, %v1275
        %1277 = vmatmul.bf16.gmra.mxu0 %v905
        %v1278 = vpop.f32.mrf.mxu0
        %v1279 = vadd.f32 0.0, %v1278
        %v1280 = vpop.f32.mrf.mxu0
        %v1281 = vadd.f32 0.0, %v1280
        %1282 = vmatmul.bf16.gmra.mxu0 %v909
        %v1283 = vpop.f32.mrf.mxu0
        %v1284 = vadd.f32 0.0, %v1283
        %v1285 = vpop.f32.mrf.mxu0
        %v1286 = vadd.f32 0.0, %v1285
        %1287 = vdwg.mxu0
        %1288 = vmatpush.bf16.msra.mxu0 %v1190
        %1289 = vmatpush.bf16.msra.mxu0 %v1189
        %1290 = vmatpush.bf16.msra.mxu0 %v1188
        %1291 = vmatpush.bf16.msra.mxu0 %v1187
        %1292 = vmatpush.bf16.msra.mxu0 %v1186
        %1293 = vmatpush.bf16.msra.mxu0 %v1185
        %1294 = vmatpush.bf16.msra.mxu0 %v1184
        %1295 = vmatpush.bf16.msra.mxu0 %v1183
        %1296 = vmatmul.bf16.gmra.mxu0 %v913
        %v1297 = vpop.f32.mrf.mxu0
        %v1298 = vadd.f32 %v1269, %v1297
        %v1299 = vpop.f32.mrf.mxu0
        %v1300 = vadd.f32 %v1271, %v1299
        %1301 = vmatmul.bf16.gmra.mxu0 %v917
        %v1302 = vpop.f32.mrf.mxu0
        %v1303 = vadd.f32 %v1274, %v1302
        %v1304 = vpop.f32.mrf.mxu0
        %v1305 = vadd.f32 %v1276, %v1304
        %1306 = vmatmul.bf16.gmra.mxu0 %v921
        %v1307 = vpop.f32.mrf.mxu0
        %v1308 = vadd.f32 %v1279, %v1307
        %v1309 = vpop.f32.mrf.mxu0
        %v1310 = vadd.f32 %v1281, %v1309
        %1311 = vmatmul.bf16.gmra.mxu0 %v925
        %v1312 = vpop.f32.mrf.mxu0
        %v1313 = vadd.f32 %v1284, %v1312
        %v1314 = vpop.f32.mrf.mxu0
        %v1315 = vadd.f32 %v1286, %v1314
        %1316 = vdwg.mxu0
        %1317 = vmatpush.bf16.msra.mxu0 %v1198
        %1318 = vmatpush.bf16.msra.mxu0 %v1197
        %1319 = vmatpush.bf16.msra.mxu0 %v1196
        %1320 = vmatpush.bf16.msra.mxu0 %v1195
        %1321 = vmatpush.bf16.msra.mxu0 %v1194
        %1322 = vmatpush.bf16.msra.mxu0 %v1193
        %1323 = vmatpush.bf16.msra.mxu0 %v1192
        %1324 = vmatpush.bf16.msra.mxu0 %v1191
        %1325 = vmatmul.bf16.gmra.mxu0 %v929
        %v1326 = vpop.f32.mrf.mxu0
        %v1327 = vadd.f32 %v1298, %v1326
        %v1328 = vpop.f32.mrf.mxu0
        %v1329 = vadd.f32 %v1300, %v1328
        %1330 = vmatmul.bf16.gmra.mxu0 %v933
        %v1331 = vpop.f32.mrf.mxu0
        %v1332 = vadd.f32 %v1303, %v1331
        %v1333 = vpop.f32.mrf.mxu0
        %v1334 = vadd.f32 %v1305, %v1333
        %1335 = vmatmul.bf16.gmra.mxu0 %v937
        %v1336 = vpop.f32.mrf.mxu0
        %v1337 = vadd.f32 %v1308, %v1336
        %v1338 = vpop.f32.mrf.mxu0
        %v1339 = vadd.f32 %v1310, %v1338
        %1340 = vmatmul.bf16.gmra.mxu0 %v941
        %v1341 = vpop.f32.mrf.mxu0
        %v1342 = vadd.f32 %v1313, %v1341
        %v1343 = vpop.f32.mrf.mxu0
        %v1344 = vadd.f32 %v1315, %v1343
        %1345 = vdwg.mxu0
        %1346 = vmatpush.bf16.msra.mxu0 %v1206
        %1347 = vmatpush.bf16.msra.mxu0 %v1205
        %1348 = vmatpush.bf16.msra.mxu0 %v1204
        %1349 = vmatpush.bf16.msra.mxu0 %v1203
        %1350 = vmatpush.bf16.msra.mxu0 %v1202
        %1351 = vmatpush.bf16.msra.mxu0 %v1201
        %1352 = vmatpush.bf16.msra.mxu0 %v1200
        %1353 = vmatpush.bf16.msra.mxu0 %v1199
        %1354 = vmatmul.bf16.gmra.mxu0 %v945
        %v1355 = vpop.f32.mrf.mxu0
        %v1356 = vadd.f32 %v1327, %v1355
        %v1357 = vpop.f32.mrf.mxu0
        %v1358 = vadd.f32 %v1329, %v1357
        %1359 = vmatmul.bf16.gmra.mxu0 %v949
        %v1360 = vpop.f32.mrf.mxu0
        %v1361 = vadd.f32 %v1332, %v1360
        %v1362 = vpop.f32.mrf.mxu0
        %v1363 = vadd.f32 %v1334, %v1362
        %1364 = vmatmul.bf16.gmra.mxu0 %v953
        %v1365 = vpop.f32.mrf.mxu0
        %v1366 = vadd.f32 %v1337, %v1365
        %v1367 = vpop.f32.mrf.mxu0
        %v1368 = vadd.f32 %v1339, %v1367
        %1369 = vmatmul.bf16.gmra.mxu0 %v957
        %v1370 = vpop.f32.mrf.mxu0
        %v1371 = vadd.f32 %v1342, %v1370
        %v1372 = vpop.f32.mrf.mxu0
        %v1373 = vadd.f32 %v1344, %v1372
        %1374 = vdwg.mxu0
        %1375 = vmatpush.bf16.msra.mxu0 0
        %1376 = vmatpush.bf16.msra.mxu0 0
        %1377 = vmatpush.bf16.msra.mxu0 0
        %1378 = vmatpush.bf16.msra.mxu0 0
        %1379 = vmatpush.bf16.msra.mxu0 %v1210
        %1380 = vmatpush.bf16.msra.mxu0 %v1209
        %1381 = vmatpush.bf16.msra.mxu0 %v1208
        %1382 = vmatpush.bf16.msra.mxu0 %v1207
        %1383 = vmatmul.bf16.gmra.mxu0 %v1248
        %v1384 = vpop.f32.mrf.mxu0
        %v1385 = vadd.f32 %v1356, %v1384
        %v1386 = vpop.f32.mrf.mxu0
        %v1387 = vadd.f32 %v1358, %v1386
        %1388 = vmatmul.bf16.gmra.mxu0 %v1251
        %v1389 = vpop.f32.mrf.mxu0
        %v1390 = vadd.f32 %v1361, %v1389
        %v1391 = vpop.f32.mrf.mxu0
        %v1392 = vadd.f32 %v1363, %v1391
        %1393 = vmatmul.bf16.gmra.mxu0 %v1254
        %v1394 = vpop.f32.mrf.mxu0
        %v1395 = vadd.f32 %v1366, %v1394
        %v1396 = vpop.f32.mrf.mxu0
        %v1397 = vadd.f32 %v1368, %v1396
        %1398 = vmatmul.bf16.gmra.mxu0 %v1257
        %v1399 = vpop.f32.mrf.mxu0
        %v1400 = vadd.f32 %v1371, %v1399
        %v1401 = vpop.f32.mrf.mxu0
        %v1402 = vadd.f32 %v1373, %v1401
        %1403 = vdwg.mxu0
        %v1404 = vld [vmem:[#allocation10] sm:$0x1]
        %v1406 = vperm.slane %v1404, 0
        %v1408 = vadd.f32 %v1385, %v1406
        %v1409 = vadd.f32 %v1387, %v1406
        %v1410 = vadd.f32 %v1390, %v1406
        %v1411 = vadd.f32 %v1392, %v1406
        %v1412 = vadd.f32 %v1395, %v1406
        %v1413 = vadd.f32 %v1397, %v1406
        %v1414 = vadd.f32 %v1400, %v1406
        %v1415 = vadd.f32 %v1402, %v1406
        %v1416 = vmax.f32 %v1408, 0.0
        %v1417 = vmax.f32 %v1409, 0.0
        %v1418 = vmax.f32 %v1410, 0.0
        %v1419 = vmax.f32 %v1411, 0.0
        %v1420 = vmax.f32 %v1412, 0.0
        %v1421 = vmax.f32 %v1413, 0.0
        %v1422 = vmax.f32 %v1414, 0.0
        %v1423 = vmax.f32 %v1415, 0.0
        %v1424 = vld [vmem:[#allocation11] sm:$0xff]
        %v1425 = vld [vmem:[#allocation11 + $0x8] sm:$0xff]
        %v1426 = vld [vmem:[#allocation11 + $0x10] sm:$0xff]
        %v1427 = vld [vmem:[#allocation11 + $0x18] sm:$0xff]
        %v1428 = vld [vmem:[#allocation11 + $0x20] sm:$0xff]
        %v1429 = vld [vmem:[#allocation11 + $0x28] sm:$0xff]
        %v1430 = vld [vmem:[#allocation11 + $0x30] sm:$0xff]
        %v1431 = vld [vmem:[#allocation11 + $0x38] sm:$0xff]
        %v1432 = vld [vmem:[#allocation13] sm:$0x3]
        %v1434 = vperm.slane %v1432, 0
        %v1435 = vperm.slane %v1432, 1
        %v1446 = vunpack.c.l.b16 %v1424
        %v1447 = vunpack.c.h.b16 %v1424
        %v1448 = vunpack.c.l.b16 %v1425
        %v1449 = vunpack.c.h.b16 %v1425
        %v1450 = vunpack.c.l.b16 %v1426
        %v1451 = vunpack.c.h.b16 %v1426
        %v1452 = vunpack.c.l.b16 %v1427
        %v1453 = vunpack.c.h.b16 %v1427
        %v1454 = vunpack.c.l.b16 %v1428
        %v1455 = vunpack.c.h.b16 %v1428
        %v1456 = vunpack.c.l.b16 %v1429
        %v1457 = vunpack.c.h.b16 %v1429
        %v1458 = vunpack.c.l.b16 %v1430
        %v1459 = vunpack.c.h.b16 %v1430
        %v1460 = vunpack.c.l.b16 %v1431
        %v1461 = vunpack.c.h.b16 %v1431
        %v1462 = vpack.c.b16 %v1448, %v1446
        %v1463 = vpack.c.b16 %v1449, %v1447
        %v1464 = vpack.c.b16 %v1452, %v1450
        %v1465 = vpack.c.b16 %v1453, %v1451
        %v1466 = vpack.c.b16 %v1456, %v1454
        %v1467 = vpack.c.b16 %v1457, %v1455
        %v1468 = vpack.c.b16 %v1460, %v1458
        %v1469 = vpack.c.b16 %v1461, %v1459
        %v1478 = vsel %vm493, %v795, 0
        %v1480 = vsel %vm493, %v796, 0
        %v1482 = vsel %vm493, %v797, 0
        %v1484 = vsel %vm493, %v798, 0
        %1486 = vmatpush.bf16.msra.mxu0 0
        %1487 = vmatpush.bf16.msra.mxu0 0
        %1488 = vmatpush.bf16.msra.mxu0 0
        %1489 = vmatpush.bf16.msra.mxu0 0
        %1490 = vmatpush.bf16.msra.mxu0 %v1468
        %1491 = vmatpush.bf16.msra.mxu0 %v1466
        %1492 = vmatpush.bf16.msra.mxu0 %v1464
        %1493 = vmatpush.bf16.msra.mxu0 %v1462
        %1494 = vmatmul.bf16.gmra.mxu0 %v1478
        %v1495 = vpop.f32.mrf.mxu0
        %v1496 = vadd.f32 %v1434, %v1495
        %v1497 = vpop.f32.mrf.mxu0
        %v1498 = vadd.f32 %v1434, %v1497
        %1499 = vmatmul.bf16.gmra.mxu0 %v1480
        %v1500 = vpop.f32.mrf.mxu0
        %v1501 = vadd.f32 %v1434, %v1500
        %v1502 = vpop.f32.mrf.mxu0
        %v1503 = vadd.f32 %v1434, %v1502
        %1504 = vmatmul.bf16.gmra.mxu0 %v1482
        %v1505 = vpop.f32.mrf.mxu0
        %v1506 = vadd.f32 %v1434, %v1505
        %v1507 = vpop.f32.mrf.mxu0
        %v1508 = vadd.f32 %v1434, %v1507
        %1509 = vmatmul.bf16.gmra.mxu0 %v1484
        %v1510 = vpop.f32.mrf.mxu0
        %v1511 = vadd.f32 %v1434, %v1510
        %v1512 = vpop.f32.mrf.mxu0
        %v1513 = vadd.f32 %v1434, %v1512
        %1514 = vdwg.mxu0
        %1515 = vmatpush.bf16.msra.mxu0 0
        %1516 = vmatpush.bf16.msra.mxu0 0
        %1517 = vmatpush.bf16.msra.mxu0 0
        %1518 = vmatpush.bf16.msra.mxu0 0
        %1519 = vmatpush.bf16.msra.mxu0 %v1469
        %1520 = vmatpush.bf16.msra.mxu0 %v1467
        %1521 = vmatpush.bf16.msra.mxu0 %v1465
        %1522 = vmatpush.bf16.msra.mxu0 %v1463
        %1523 = vmatmul.bf16.gmra.mxu0 %v1478
        %v1524 = vpop.f32.mrf.mxu0
        %v1525 = vadd.f32 %v1435, %v1524
        %v1526 = vpop.f32.mrf.mxu0
        %v1527 = vadd.f32 %v1435, %v1526
        %1528 = vmatmul.bf16.gmra.mxu0 %v1480
        %v1529 = vpop.f32.mrf.mxu0
        %v1530 = vadd.f32 %v1435, %v1529
        %v1531 = vpop.f32.mrf.mxu0
        %v1532 = vadd.f32 %v1435, %v1531
        %1533 = vmatmul.bf16.gmra.mxu0 %v1482
        %v1534 = vpop.f32.mrf.mxu0
        %v1535 = vadd.f32 %v1435, %v1534
        %v1536 = vpop.f32.mrf.mxu0
        %v1537 = vadd.f32 %v1435, %v1536
        %1538 = vmatmul.bf16.gmra.mxu0 %v1484
        %v1539 = vpop.f32.mrf.mxu0
        %v1540 = vadd.f32 %v1435, %v1539
        %v1541 = vpop.f32.mrf.mxu0
        %v1542 = vadd.f32 %v1435, %v1541
        %1543 = vdwg.mxu0
        %v1544 = vpack.c.bf16 %v1496, %v1496
        %v1545 = vpack.c.bf16 %v1498, %v1498
        %v1546 = vpack.c.bf16 %v1501, %v1501
        %v1547 = vpack.c.bf16 %v1503, %v1503
        %v1548 = vpack.c.bf16 %v1506, %v1506
        %v1549 = vpack.c.bf16 %v1508, %v1508
        %v1550 = vpack.c.bf16 %v1511, %v1511
        %v1551 = vpack.c.bf16 %v1513, %v1513
        %v1552 = vpack.c.bf16 %v1525, %v1525
        %v1553 = vpack.c.bf16 %v1527, %v1527
        %v1554 = vpack.c.bf16 %v1530, %v1530
        %v1555 = vpack.c.bf16 %v1532, %v1532
        %v1556 = vpack.c.bf16 %v1535, %v1535
        %v1557 = vpack.c.bf16 %v1537, %v1537
        %v1558 = vpack.c.bf16 %v1540, %v1540
        %v1559 = vpack.c.bf16 %v1542, %v1542
        %v1568 = vunpack.c.l.b16 %v1544
        %v1569 = vunpack.c.l.b16 %v1545
        %v1570 = vunpack.c.l.b16 %v1546
        %v1571 = vunpack.c.l.b16 %v1547
        %v1572 = vunpack.c.l.b16 %v1548
        %v1573 = vunpack.c.l.b16 %v1549
        %v1574 = vunpack.c.l.b16 %v1550
        %v1575 = vunpack.c.l.b16 %v1551
        %v1576 = vpack.c.b16 %v1569, %v1568
        %v1577 = vpack.c.b16 %v1571, %v1570
        %v1578 = vpack.c.b16 %v1573, %v1572
        %v1579 = vpack.c.b16 %v1575, %v1574
        %1580 = vrot.lane.b32.xlu0 %v1576, 64
        %v1581 = vpop.permute.xlu0 %1580
        %1582 = vrot.lane.b32.xlu0 %v1577, 64
        %v1583 = vpop.permute.xlu0 %1582
        %1584 = vrot.lane.b32.xlu0 %v1578, 64
        %v1585 = vpop.permute.xlu0 %1584
        %1586 = vrot.lane.b32.xlu0 %v1579, 64
        %v1587 = vpop.permute.xlu0 %1586
        %v1589 = vsel %vm493, %v1576, 0
        %v1592 = vsel %vm493, %v1577, 0
        %v1595 = vsel %vm493, %v1578, 0
        %v1598 = vsel %vm493, %v1579, 0
        %v1601 = vsel %vm493, %v1581, 0
        %v1604 = vsel %vm493, %v1583, 0
        %v1607 = vsel %vm493, %v1585, 0
        %v1610 = vsel %vm493, %v1587, 0
        %1612 = vmatpush.bf16.xpose.msra.mxu0 0
        %1613 = vmatpush.bf16.xpose.msra.mxu0 0
        %1614 = vmatpush.bf16.xpose.msra.mxu0 0
        %1615 = vmatpush.bf16.xpose.msra.mxu0 0
        %1616 = vmatpush.bf16.xpose.msra.mxu0 %v1610
        %1617 = vmatpush.bf16.xpose.msra.mxu0 %v1607
        %1618 = vmatpush.bf16.xpose.msra.mxu0 %v1604
        %1619 = vmatpush.bf16.xpose.msra.mxu0 %v1601
        %1620 = vmatmul.bf16.gmra.mxu0 %v1589
        %v1621 = vpop.f32.mrf.mxu0
        %v1622 = vadd.f32 0.0, %v1621
        %v1623 = vpop.f32.mrf.mxu0
        %v1624 = vadd.f32 0.0, %v1623
        %1625 = vmatmul.bf16.gmra.mxu0 %v1592
        %v1626 = vpop.f32.mrf.mxu0
        %v1627 = vadd.f32 0.0, %v1626
        %v1628 = vpop.f32.mrf.mxu0
        %v1629 = vadd.f32 0.0, %v1628
        %1630 = vmatmul.bf16.gmra.mxu0 %v1595
        %v1631 = vpop.f32.mrf.mxu0
        %v1632 = vadd.f32 0.0, %v1631
        %v1633 = vpop.f32.mrf.mxu0
        %v1634 = vadd.f32 0.0, %v1633
        %1635 = vmatmul.bf16.gmra.mxu0 %v1598
        %v1636 = vpop.f32.mrf.mxu0
        %v1637 = vadd.f32 0.0, %v1636
        %v1638 = vpop.f32.mrf.mxu0
        %v1639 = vadd.f32 0.0, %v1638
        %1640 = vdwg.mxu0
        %v1641 = vmul.f32 %v1622, 0.125
        %v1642 = vmul.f32 %v1624, 0.125
        %v1643 = vmul.f32 %v1627, 0.125
        %v1644 = vmul.f32 %v1629, 0.125
        %v1645 = vmul.f32 %v1632, 0.125
        %v1646 = vmul.f32 %v1634, 0.125
        %v1647 = vmul.f32 %v1637, 0.125
        %v1648 = vmul.f32 %v1639, 0.125
        %v1649 = vsel %vm493, %v1641, -inf
        %1650 = vmax.xlane.f32.xlu0 %v1649
        %v1651 = vpop.xlane.xlu0 %1650
        %v1652 = vsel %vm493, %v1642, -inf
        %1653 = vmax.xlane.f32.xlu0 %v1652
        %v1654 = vpop.xlane.xlu0 %1653
        %v1655 = vsel %vm493, %v1643, -inf
        %1656 = vmax.xlane.f32.xlu0 %v1655
        %v1657 = vpop.xlane.xlu0 %1656
        %v1658 = vsel %vm493, %v1644, -inf
        %1659 = vmax.xlane.f32.xlu0 %v1658
        %v1660 = vpop.xlane.xlu0 %1659
        %v1661 = vsel %vm493, %v1645, -inf
        %1662 = vmax.xlane.f32.xlu0 %v1661
        %v1663 = vpop.xlane.xlu0 %1662
        %v1664 = vsel %vm493, %v1646, -inf
        %1665 = vmax.xlane.f32.xlu0 %v1664
        %v1666 = vpop.xlane.xlu0 %1665
        %v1667 = vsel %vm493, %v1647, -inf
        %1668 = vmax.xlane.f32.xlu0 %v1667
        %v1669 = vpop.xlane.xlu0 %1668
        %v1670 = vsel %vm493, %v1648, -inf
        %1671 = vmax.xlane.f32.xlu0 %v1670
        %v1672 = vpop.xlane.xlu0 %1671
        %v1673 = vsub.f32 %v1641, %v1651
        %v1674 = vsub.f32 %v1642, %v1654
        %v1675 = vsub.f32 %v1643, %v1657
        %v1676 = vsub.f32 %v1644, %v1660
        %v1677 = vsub.f32 %v1645, %v1663
        %v1678 = vsub.f32 %v1646, %v1666
        %v1679 = vsub.f32 %v1647, %v1669
        %v1680 = vsub.f32 %v1648, %v1672
        %v1681 = vmul.f32 %v1673, 1.442695
        %v1682 = vpow.pop %v1681
        %v1683 = vmul.f32 %v1674, 1.442695
        %v1684 = vpow.pop %v1683
        %v1685 = vmul.f32 %v1675, 1.442695
        %v1686 = vpow.pop %v1685
        %v1687 = vmul.f32 %v1676, 1.442695
        %v1688 = vpow.pop %v1687
        %v1689 = vmul.f32 %v1677, 1.442695
        %v1690 = vpow.pop %v1689
        %v1691 = vmul.f32 %v1678, 1.442695
        %v1692 = vpow.pop %v1691
        %v1693 = vmul.f32 %v1679, 1.442695
        %v1694 = vpow.pop %v1693
        %v1695 = vmul.f32 %v1680, 1.442695
        %v1696 = vpow.pop %v1695
        %v1697 = vsel %vm493, %v1682, 0.0
        %1698 = vadd.xlane.f32.xlu0 %v1697
        %v1699 = vpop.xlane.xlu0 %1698
        %v1700 = vsel %vm493, %v1684, 0.0
        %1701 = vadd.xlane.f32.xlu0 %v1700
        %v1702 = vpop.xlane.xlu0 %1701
        %v1703 = vsel %vm493, %v1686, 0.0
        %1704 = vadd.xlane.f32.xlu0 %v1703
        %v1705 = vpop.xlane.xlu0 %1704
        %v1706 = vsel %vm493, %v1688, 0.0
        %1707 = vadd.xlane.f32.xlu0 %v1706
        %v1708 = vpop.xlane.xlu0 %1707
        %v1709 = vsel %vm493, %v1690, 0.0
        %1710 = vadd.xlane.f32.xlu0 %v1709
        %v1711 = vpop.xlane.xlu0 %1710
        %v1712 = vsel %vm493, %v1692, 0.0
        %1713 = vadd.xlane.f32.xlu0 %v1712
        %v1714 = vpop.xlane.xlu0 %1713
        %v1715 = vsel %vm493, %v1694, 0.0
        %1716 = vadd.xlane.f32.xlu0 %v1715
        %v1717 = vpop.xlane.xlu0 %1716
        %v1718 = vsel %vm493, %v1696, 0.0
        %1719 = vadd.xlane.f32.xlu0 %v1718
        %v1720 = vpop.xlane.xlu0 %1719
        %v1721 = vrcp.pop %v1699
        %v1722 = vrcp.pop %v1702
        %v1723 = vrcp.pop %v1705
        %v1724 = vrcp.pop %v1708
        %v1725 = vrcp.pop %v1711
        %v1726 = vrcp.pop %v1714
        %v1727 = vrcp.pop %v1717
        %v1728 = vrcp.pop %v1720
        %v1729 = vmul.f32 %v1682, %v1721
        %v1730 = vmul.f32 %v1684, %v1722
        %v1731 = vmul.f32 %v1686, %v1723
        %v1732 = vmul.f32 %v1688, %v1724
        %v1733 = vmul.f32 %v1690, %v1725
        %v1734 = vmul.f32 %v1692, %v1726
        %v1735 = vmul.f32 %v1694, %v1727
        %v1736 = vmul.f32 %v1696, %v1728
        %v1737 = vpack.c.bf16 %v1729, %v1729
        %v1738 = vpack.c.bf16 %v1730, %v1730
        %v1739 = vpack.c.bf16 %v1731, %v1731
        %v1740 = vpack.c.bf16 %v1732, %v1732
        %v1741 = vpack.c.bf16 %v1733, %v1733
        %v1742 = vpack.c.bf16 %v1734, %v1734
        %v1743 = vpack.c.bf16 %v1735, %v1735
        %v1744 = vpack.c.bf16 %v1736, %v1736
        %v1753 = vunpack.c.l.b16 %v1737
        %v1754 = vunpack.c.l.b16 %v1738
        %v1755 = vunpack.c.l.b16 %v1739
        %v1756 = vunpack.c.l.b16 %v1740
        %v1757 = vunpack.c.l.b16 %v1741
        %v1758 = vunpack.c.l.b16 %v1742
        %v1759 = vunpack.c.l.b16 %v1743
        %v1760 = vunpack.c.l.b16 %v1744
        %v1761 = vpack.c.b16 %v1754, %v1753
        %v1762 = vpack.c.b16 %v1756, %v1755
        %v1763 = vpack.c.b16 %v1758, %v1757
        %v1764 = vpack.c.b16 %v1760, %v1759
        %v1773 = vunpack.c.l.b16 %v1552
        %v1774 = vunpack.c.l.b16 %v1553
        %v1775 = vunpack.c.l.b16 %v1554
        %v1776 = vunpack.c.l.b16 %v1555
        %v1777 = vunpack.c.l.b16 %v1556
        %v1778 = vunpack.c.l.b16 %v1557
        %v1779 = vunpack.c.l.b16 %v1558
        %v1780 = vunpack.c.l.b16 %v1559
        %v1781 = vpack.c.b16 %v1774, %v1773
        %v1782 = vpack.c.b16 %v1776, %v1775
        %v1783 = vpack.c.b16 %v1778, %v1777
        %v1784 = vpack.c.b16 %v1780, %v1779
        %v1790 = vsel %vm493, %v1761, 0
        %v1793 = vsel %vm493, %v1762, 0
        %v1796 = vsel %vm493, %v1763, 0
        %v1799 = vsel %vm493, %v1764, 0
        %1801 = vmatpush.bf16.msra.mxu0 0
        %1802 = vmatpush.bf16.msra.mxu0 0
        %1803 = vmatpush.bf16.msra.mxu0 0
        %1804 = vmatpush.bf16.msra.mxu0 0
        %1805 = vmatpush.bf16.msra.mxu0 %v1784
        %1806 = vmatpush.bf16.msra.mxu0 %v1783
        %1807 = vmatpush.bf16.msra.mxu0 %v1782
        %1808 = vmatpush.bf16.msra.mxu0 %v1781
        %1809 = vmatmul.bf16.gmra.mxu0 %v1790
        %v1810 = vpop.f32.mrf.mxu0
        %v1811 = vadd.f32 0.0, %v1810
        %v1812 = vpop.f32.mrf.mxu0
        %v1813 = vadd.f32 0.0, %v1812
        %1814 = vmatmul.bf16.gmra.mxu0 %v1793
        %v1815 = vpop.f32.mrf.mxu0
        %v1816 = vadd.f32 0.0, %v1815
        %v1817 = vpop.f32.mrf.mxu0
        %v1818 = vadd.f32 0.0, %v1817
        %1819 = vmatmul.bf16.gmra.mxu0 %v1796
        %v1820 = vpop.f32.mrf.mxu0
        %v1821 = vadd.f32 0.0, %v1820
        %v1822 = vpop.f32.mrf.mxu0
        %v1823 = vadd.f32 0.0, %v1822
        %1824 = vmatmul.bf16.gmra.mxu0 %v1799
        %v1825 = vpop.f32.mrf.mxu0
        %v1826 = vadd.f32 0.0, %v1825
        %v1827 = vpop.f32.mrf.mxu0
        %v1828 = vadd.f32 0.0, %v1827
        %1829 = vdwg.mxu0
        %v1830 = vpack.c.bf16 %v1813, %v1811
        %v1831 = vpack.c.bf16 %v1818, %v1816
        %v1832 = vpack.c.bf16 %v1823, %v1821
        %v1833 = vpack.c.bf16 %v1828, %v1826
        %v1834 = vld [vmem:[#allocation14] sm:$0xf]
        %v1835 = vld [vmem:[#allocation14 + $0x4] sm:$0xf]
        %v1836 = vld [vmem:[#allocation14 + $0x8] sm:$0xf]
        %v1837 = vld [vmem:[#allocation14 + $0xc] sm:$0xf]
        %v1838 = vld [vmem:[#allocation14 + $0x10] sm:$0xf]
        %v1839 = vld [vmem:[#allocation14 + $0x14] sm:$0xf]
        %v1840 = vld [vmem:[#allocation14 + $0x18] sm:$0xf]
        %v1841 = vld [vmem:[#allocation14 + $0x1c] sm:$0xf]
        %v1842 = vld [vmem:[%s7] sm:$0x1]
        %v1844 = vperm.slane %v1842, 0
        %v1854 = vunpack.c.l.b16 %v1834
        %v1855 = vunpack.c.l.b16 %v1835
        %v1856 = vunpack.c.l.b16 %v1836
        %v1857 = vunpack.c.l.b16 %v1837
        %v1858 = vunpack.c.l.b16 %v1838
        %v1859 = vunpack.c.l.b16 %v1839
        %v1860 = vunpack.c.l.b16 %v1840
        %v1861 = vunpack.c.l.b16 %v1841
        %v1862 = vpack.c.b16 %v1855, %v1854
        %v1863 = vpack.c.b16 %v1857, %v1856
        %v1864 = vpack.c.b16 %v1859, %v1858
        %v1865 = vpack.c.b16 %v1861, %v1860
        %v1871 = vsel %vm493, %v1830, 0
        %v1874 = vsel %vm493, %v1831, 0
        %v1877 = vsel %vm493, %v1832, 0
        %v1880 = vsel %vm493, %v1833, 0
        %1882 = vmatpush.bf16.msra.mxu0 0
        %1883 = vmatpush.bf16.msra.mxu0 0
        %1884 = vmatpush.bf16.msra.mxu0 0
        %1885 = vmatpush.bf16.msra.mxu0 0
        %1886 = vmatpush.bf16.msra.mxu0 %v1865
        %1887 = vmatpush.bf16.msra.mxu0 %v1864
        %1888 = vmatpush.bf16.msra.mxu0 %v1863
        %1889 = vmatpush.bf16.msra.mxu0 %v1862
        %1890 = vmatmul.bf16.gmra.mxu0 %v1871
        %v1891 = vpop.f32.mrf.mxu0
        %v1892 = vadd.f32 %v1844, %v1891
        %v1893 = vpop.f32.mrf.mxu0
        %v1894 = vadd.f32 %v1844, %v1893
        %1895 = vmatmul.bf16.gmra.mxu0 %v1874
        %v1896 = vpop.f32.mrf.mxu0
        %v1897 = vadd.f32 %v1844, %v1896
        %v1898 = vpop.f32.mrf.mxu0
        %v1899 = vadd.f32 %v1844, %v1898
        %1900 = vmatmul.bf16.gmra.mxu0 %v1877
        %v1901 = vpop.f32.mrf.mxu0
        %v1902 = vadd.f32 %v1844, %v1901
        %v1903 = vpop.f32.mrf.mxu0
        %v1904 = vadd.f32 %v1844, %v1903
        %1905 = vmatmul.bf16.gmra.mxu0 %v1880
        %v1906 = vpop.f32.mrf.mxu0
        %v1907 = vadd.f32 %v1844, %v1906
        %v1908 = vpop.f32.mrf.mxu0
        %v1909 = vadd.f32 %v1844, %v1908
        %1910 = vdwg.mxu0
        %s1911 = sld [smem:[#allocation3]]
        %v1912 = vstv %s1911
        %v1913 = vmul.f32 %v1912, %v1416
        %v1914 = vmul.f32 %v1912, %v1417
        %v1915 = vmul.f32 %v1912, %v1418
        %v1916 = vmul.f32 %v1912, %v1419
        %v1917 = vmul.f32 %v1912, %v1420
        %v1918 = vmul.f32 %v1912, %v1421
        %v1919 = vmul.f32 %v1912, %v1422
        %v1920 = vmul.f32 %v1912, %v1423
        %s1921 = sld [smem:[#allocation3 + $0x1]]
        %v1922 = vstv %s1921
        %v1923 = vmul.f32 %v1922, %v1892
        %v1924 = vmul.f32 %v1922, %v1894
        %v1925 = vmul.f32 %v1922, %v1897
        %v1926 = vmul.f32 %v1922, %v1899
        %v1927 = vmul.f32 %v1922, %v1902
        %v1928 = vmul.f32 %v1922, %v1904
        %v1929 = vmul.f32 %v1922, %v1907
        %v1930 = vmul.f32 %v1922, %v1909
        %v1931 = vadd.f32 %v1913, %v1923
        %v1932 = vadd.f32 %v1914, %v1924
        %v1933 = vadd.f32 %v1915, %v1925
        %v1934 = vadd.f32 %v1916, %v1926
        %v1935 = vadd.f32 %v1917, %v1927
        %v1936 = vadd.f32 %v1918, %v1928
        %v1937 = vadd.f32 %v1919, %v1929
        %v1938 = vadd.f32 %v1920, %v1930
        %1947 = vrot.lane.b32.xlu0 %v1385, 64
        %v1948 = vpop.permute.xlu0 %1947
        %1949 = vrot.lane.b32.xlu0 %v1387, 64
        %v1950 = vpop.permute.xlu0 %1949
        %1951 = vrot.lane.b32.xlu0 %v1390, 64
        %v1952 = vpop.permute.xlu0 %1951
        %1953 = vrot.lane.b32.xlu0 %v1392, 64
        %v1954 = vpop.permute.xlu0 %1953
        %1955 = vrot.lane.b32.xlu0 %v1395, 64
        %v1956 = vpop.permute.xlu0 %1955
        %1957 = vrot.lane.b32.xlu0 %v1397, 64
        %v1958 = vpop.permute.xlu0 %1957
        %1959 = vrot.lane.b32.xlu0 %v1400, 64
        %v1960 = vpop.permute.xlu0 %1959
        %1961 = vrot.lane.b32.xlu0 %v1402, 64
        %v1962 = vpop.permute.xlu0 %1961
        %v1971 = vadd.f32 %v1931, %v1948
        %v1972 = vadd.f32 %v1932, %v1950
        %v1973 = vadd.f32 %v1933, %v1952
        %v1974 = vadd.f32 %v1934, %v1954
        %v1975 = vadd.f32 %v1935, %v1956
        %v1976 = vadd.f32 %v1936, %v1958
        %v1977 = vadd.f32 %v1937, %v1960
        %v1978 = vadd.f32 %v1938, %v1962
        %1979 = vst.msk [vmem:[%s529 + $0x1] sm:$0xff] %vm493, %v1971
        %1980 = vst.msk [vmem:[%s529 + $0x11] sm:$0xff] %vm493, %v1972
        %1981 = vst.msk [vmem:[%s529 + $0x21] sm:$0xff] %vm493, %v1973
        %1982 = vst.msk [vmem:[%s529 + $0x31] sm:$0xff] %vm493, %v1974
        %1983 = vst.msk [vmem:[%s529 + $0x41] sm:$0xff] %vm493, %v1975
        %1984 = vst.msk [vmem:[%s529 + $0x51] sm:$0xff] %vm493, %v1976
        %1985 = vst.msk [vmem:[%s529 + $0x61] sm:$0xff] %vm493, %v1977
        %1986 = vst.msk [vmem:[%s529 + $0x71] sm:$0xff] %vm493, %v1978
        %v1987 = vld [vmem:[#allocation2] sm:$0xff]
        %v1988 = vld [vmem:[#allocation2 + $0x10] sm:$0xff]
        %v1989 = vld [vmem:[#allocation2 + $0x20] sm:$0xff]
        %v1990 = vld [vmem:[#allocation2 + $0x30] sm:$0xff]
        %v1991 = vld [vmem:[#allocation2 + $0x40] sm:$0xff]
        %v1992 = vld [vmem:[#allocation2 + $0x50] sm:$0xff]
        %v1993 = vld [vmem:[#allocation2 + $0x60] sm:$0xff]
        %v1994 = vld [vmem:[#allocation2 + $0x70] sm:$0xff]
        %v1995 = vpack.c.bf16 %v1987, %v1987
        %v1996 = vpack.c.bf16 %v1988, %v1988
        %v1997 = vpack.c.bf16 %v1989, %v1989
        %v1998 = vpack.c.bf16 %v1990, %v1990
        %v1999 = vpack.c.bf16 %v1991, %v1991
        %v2000 = vpack.c.bf16 %v1992, %v1992
        %v2001 = vpack.c.bf16 %v1993, %v1993
        %v2002 = vpack.c.bf16 %v1994, %v1994
        %v2003 = vld [vmem:[#allocation2 + $0x1] sm:$0xff]
        %v2004 = vld [vmem:[#allocation2 + $0x11] sm:$0xff]
        %v2005 = vld [vmem:[#allocation2 + $0x21] sm:$0xff]
        %v2006 = vld [vmem:[#allocation2 + $0x31] sm:$0xff]
        %v2007 = vld [vmem:[#allocation2 + $0x41] sm:$0xff]
        %v2008 = vld [vmem:[#allocation2 + $0x51] sm:$0xff]
        %v2009 = vld [vmem:[#allocation2 + $0x61] sm:$0xff]
        %v2010 = vld [vmem:[#allocation2 + $0x71] sm:$0xff]
        %v2011 = vpack.c.bf16 %v2003, %v2003
        %v2012 = vpack.c.bf16 %v2004, %v2004
        %v2013 = vpack.c.bf16 %v2005, %v2005
        %v2014 = vpack.c.bf16 %v2006, %v2006
        %v2015 = vpack.c.bf16 %v2007, %v2007
        %v2016 = vpack.c.bf16 %v2008, %v2008
        %v2017 = vpack.c.bf16 %v2009, %v2009
        %v2018 = vpack.c.bf16 %v2010, %v2010
        %v2019 = vld [vmem:[#allocation2 + $0x2] sm:$0xff]
        %v2020 = vld [vmem:[#allocation2 + $0x12] sm:$0xff]
        %v2021 = vld [vmem:[#allocation2 + $0x22] sm:$0xff]
        %v2022 = vld [vmem:[#allocation2 + $0x32] sm:$0xff]
        %v2023 = vld [vmem:[#allocation2 + $0x42] sm:$0xff]
        %v2024 = vld [vmem:[#allocation2 + $0x52] sm:$0xff]
        %v2025 = vld [vmem:[#allocation2 + $0x62] sm:$0xff]
        %v2026 = vld [vmem:[#allocation2 + $0x72] sm:$0xff]
        %v2027 = vpack.c.bf16 %v2019, %v2019
        %v2028 = vpack.c.bf16 %v2020, %v2020
        %v2029 = vpack.c.bf16 %v2021, %v2021
        %v2030 = vpack.c.bf16 %v2022, %v2022
        %v2031 = vpack.c.bf16 %v2023, %v2023
        %v2032 = vpack.c.bf16 %v2024, %v2024
        %v2033 = vpack.c.bf16 %v2025, %v2025
        %v2034 = vpack.c.bf16 %v2026, %v2026
        %v2035 = vld [vmem:[%s529] sm:$0xff]
        %v2036 = vld [vmem:[%s529 + $0x10] sm:$0xff]
        %v2037 = vld [vmem:[%s529 + $0x20] sm:$0xff]
        %v2038 = vld [vmem:[%s529 + $0x30] sm:$0xff]
        %v2039 = vld [vmem:[%s529 + $0x40] sm:$0xff]
        %v2040 = vld [vmem:[%s529 + $0x50] sm:$0xff]
        %v2041 = vld [vmem:[%s529 + $0x60] sm:$0xff]
        %v2042 = vld [vmem:[%s529 + $0x70] sm:$0xff]
        %v2043 = vpack.c.bf16 %v2035, %v2035
        %v2044 = vpack.c.bf16 %v2036, %v2036
        %v2045 = vpack.c.bf16 %v2037, %v2037
        %v2046 = vpack.c.bf16 %v2038, %v2038
        %v2047 = vpack.c.bf16 %v2039, %v2039
        %v2048 = vpack.c.bf16 %v2040, %v2040
        %v2049 = vpack.c.bf16 %v2041, %v2041
        %v2050 = vpack.c.bf16 %v2042, %v2042
        %v2051 = vld [vmem:[%s529 + $0x1] sm:$0xff]
        %v2052 = vld [vmem:[%s529 + $0x11] sm:$0xff]
        %v2053 = vld [vmem:[%s529 + $0x21] sm:$0xff]
        %v2054 = vld [vmem:[%s529 + $0x31] sm:$0xff]
        %v2055 = vld [vmem:[%s529 + $0x41] sm:$0xff]
        %v2056 = vld [vmem:[%s529 + $0x51] sm:$0xff]
        %v2057 = vld [vmem:[%s529 + $0x61] sm:$0xff]
        %v2058 = vld [vmem:[%s529 + $0x71] sm:$0xff]
        %v2059 = vpack.c.bf16 %v2051, %v2051
        %v2060 = vpack.c.bf16 %v2052, %v2052
        %v2061 = vpack.c.bf16 %v2053, %v2053
        %v2062 = vpack.c.bf16 %v2054, %v2054
        %v2063 = vpack.c.bf16 %v2055, %v2055
        %v2064 = vpack.c.bf16 %v2056, %v2056
        %v2065 = vpack.c.bf16 %v2057, %v2057
        %v2066 = vpack.c.bf16 %v2058, %v2058
        %v2067 = vld [vmem:[%s529 + $0x2] sm:$0xff]
        %v2068 = vld [vmem:[%s529 + $0x12] sm:$0xff]
        %v2069 = vld [vmem:[%s529 + $0x22] sm:$0xff]
        %v2070 = vld [vmem:[%s529 + $0x32] sm:$0xff]
        %v2071 = vld [vmem:[%s529 + $0x42] sm:$0xff]
        %v2072 = vld [vmem:[%s529 + $0x52] sm:$0xff]
        %v2073 = vld [vmem:[%s529 + $0x62] sm:$0xff]
        %v2074 = vld [vmem:[%s529 + $0x72] sm:$0xff]
        %v2075 = vpack.c.bf16 %v2067, %v2067
        %v2076 = vpack.c.bf16 %v2068, %v2068
        %v2077 = vpack.c.bf16 %v2069, %v2069
        %v2078 = vpack.c.bf16 %v2070, %v2070
        %v2079 = vpack.c.bf16 %v2071, %v2071
        %v2080 = vpack.c.bf16 %v2072, %v2072
        %v2081 = vpack.c.bf16 %v2073, %v2073
        %v2082 = vpack.c.bf16 %v2074, %v2074
        %v2083 = vld [vmem:[%s634] sm:$0xff]
        %v2084 = vld [vmem:[%s634 + $0x10] sm:$0xff]
        %v2085 = vld [vmem:[%s634 + $0x20] sm:$0xff]
        %v2086 = vld [vmem:[%s634 + $0x30] sm:$0xff]
        %v2087 = vld [vmem:[%s634 + $0x40] sm:$0xff]
        %v2088 = vld [vmem:[%s634 + $0x50] sm:$0xff]
        %v2089 = vld [vmem:[%s634 + $0x60] sm:$0xff]
        %v2090 = vld [vmem:[%s634 + $0x70] sm:$0xff]
        %v2091 = vpack.c.bf16 %v2083, %v2083
        %v2092 = vpack.c.bf16 %v2084, %v2084
        %v2093 = vpack.c.bf16 %v2085, %v2085
        %v2094 = vpack.c.bf16 %v2086, %v2086
        %v2095 = vpack.c.bf16 %v2087, %v2087
        %v2096 = vpack.c.bf16 %v2088, %v2088
        %v2097 = vpack.c.bf16 %v2089, %v2089
        %v2098 = vpack.c.bf16 %v2090, %v2090
        %v2099 = vld [vmem:[%s634 + $0x1] sm:$0xff]
        %v2100 = vld [vmem:[%s634 + $0x11] sm:$0xff]
        %v2101 = vld [vmem:[%s634 + $0x21] sm:$0xff]
        %v2102 = vld [vmem:[%s634 + $0x31] sm:$0xff]
        %v2103 = vld [vmem:[%s634 + $0x41] sm:$0xff]
        %v2104 = vld [vmem:[%s634 + $0x51] sm:$0xff]
        %v2105 = vld [vmem:[%s634 + $0x61] sm:$0xff]
        %v2106 = vld [vmem:[%s634 + $0x71] sm:$0xff]
        %v2107 = vpack.c.bf16 %v2099, %v2099
        %v2108 = vpack.c.bf16 %v2100, %v2100
        %v2109 = vpack.c.bf16 %v2101, %v2101
        %v2110 = vpack.c.bf16 %v2102, %v2102
        %v2111 = vpack.c.bf16 %v2103, %v2103
        %v2112 = vpack.c.bf16 %v2104, %v2104
        %v2113 = vpack.c.bf16 %v2105, %v2105
        %v2114 = vpack.c.bf16 %v2106, %v2106
        %v2115 = vld [vmem:[%s634 + $0x2] sm:$0xff]
        %v2116 = vld [vmem:[%s634 + $0x12] sm:$0xff]
        %v2117 = vld [vmem:[%s634 + $0x22] sm:$0xff]
        %v2118 = vld [vmem:[%s634 + $0x32] sm:$0xff]
        %v2119 = vld [vmem:[%s634 + $0x42] sm:$0xff]
        %v2120 = vld [vmem:[%s634 + $0x52] sm:$0xff]
        %v2121 = vld [vmem:[%s634 + $0x62] sm:$0xff]
        %v2122 = vld [vmem:[%s634 + $0x72] sm:$0xff]
        %v2123 = vpack.c.bf16 %v2115, %v2115
        %v2124 = vpack.c.bf16 %v2116, %v2116
        %v2125 = vpack.c.bf16 %v2117, %v2117
        %v2126 = vpack.c.bf16 %v2118, %v2118
        %v2127 = vpack.c.bf16 %v2119, %v2119
        %v2128 = vpack.c.bf16 %v2120, %v2120
        %v2129 = vpack.c.bf16 %v2121, %v2121
        %v2130 = vpack.c.bf16 %v2122, %v2122
        %v2139 = vunpack.c.l.b16 %v1995
        %v2140 = vunpack.c.l.b16 %v1996
        %v2141 = vunpack.c.l.b16 %v1997
        %v2142 = vunpack.c.l.b16 %v1998
        %v2143 = vunpack.c.l.b16 %v1999
        %v2144 = vunpack.c.l.b16 %v2000
        %v2145 = vunpack.c.l.b16 %v2001
        %v2146 = vunpack.c.l.b16 %v2002
        %v2147 = vpack.c.b16 %v2140, %v2139
        %v2148 = vpack.c.b16 %v2142, %v2141
        %v2149 = vpack.c.b16 %v2144, %v2143
        %v2150 = vpack.c.b16 %v2146, %v2145
        %v2159 = vunpack.c.l.b16 %v2011
        %v2160 = vunpack.c.l.b16 %v2012
        %v2161 = vunpack.c.l.b16 %v2013
        %v2162 = vunpack.c.l.b16 %v2014
        %v2163 = vunpack.c.l.b16 %v2015
        %v2164 = vunpack.c.l.b16 %v2016
        %v2165 = vunpack.c.l.b16 %v2017
        %v2166 = vunpack.c.l.b16 %v2018
        %v2167 = vpack.c.b16 %v2160, %v2159
        %v2168 = vpack.c.b16 %v2162, %v2161
        %v2169 = vpack.c.b16 %v2164, %v2163
        %v2170 = vpack.c.b16 %v2166, %v2165
        %2171 = vrot.lane.b32.xlu0 %v2167, 64
        %v2172 = vpop.permute.xlu0 %2171
        %2173 = vrot.lane.b32.xlu0 %v2168, 64
        %v2174 = vpop.permute.xlu0 %2173
        %2175 = vrot.lane.b32.xlu0 %v2169, 64
        %v2176 = vpop.permute.xlu0 %2175
        %2177 = vrot.lane.b32.xlu0 %v2170, 64
        %v2178 = vpop.permute.xlu0 %2177
        %v2187 = vunpack.c.l.b16 %v2027
        %v2188 = vunpack.c.l.b16 %v2028
        %v2189 = vunpack.c.l.b16 %v2029
        %v2190 = vunpack.c.l.b16 %v2030
        %v2191 = vunpack.c.l.b16 %v2031
        %v2192 = vunpack.c.l.b16 %v2032
        %v2193 = vunpack.c.l.b16 %v2033
        %v2194 = vunpack.c.l.b16 %v2034
        %v2195 = vpack.c.b16 %v2188, %v2187
        %v2196 = vpack.c.b16 %v2190, %v2189
        %v2197 = vpack.c.b16 %v2192, %v2191
        %v2198 = vpack.c.b16 %v2194, %v2193
        %v2207 = vunpack.c.l.b16 %v2043
        %v2208 = vunpack.c.l.b16 %v2044
        %v2209 = vunpack.c.l.b16 %v2045
        %v2210 = vunpack.c.l.b16 %v2046
        %v2211 = vunpack.c.l.b16 %v2047
        %v2212 = vunpack.c.l.b16 %v2048
        %v2213 = vunpack.c.l.b16 %v2049
        %v2214 = vunpack.c.l.b16 %v2050
        %v2215 = vpack.c.b16 %v2208, %v2207
        %v2216 = vpack.c.b16 %v2210, %v2209
        %v2217 = vpack.c.b16 %v2212, %v2211
        %v2218 = vpack.c.b16 %v2214, %v2213
        %2219 = vrot.lane.b32.xlu0 %v2215, 64
        %v2220 = vpop.permute.xlu0 %2219
        %2221 = vrot.lane.b32.xlu0 %v2216, 64
        %v2222 = vpop.permute.xlu0 %2221
        %2223 = vrot.lane.b32.xlu0 %v2217, 64
        %v2224 = vpop.permute.xlu0 %2223
        %2225 = vrot.lane.b32.xlu0 %v2218, 64
        %v2226 = vpop.permute.xlu0 %2225
        %v2235 = vunpack.c.l.b16 %v2059
        %v2236 = vunpack.c.l.b16 %v2060
        %v2237 = vunpack.c.l.b16 %v2061
        %v2238 = vunpack.c.l.b16 %v2062
        %v2239 = vunpack.c.l.b16 %v2063
        %v2240 = vunpack.c.l.b16 %v2064
        %v2241 = vunpack.c.l.b16 %v2065
        %v2242 = vunpack.c.l.b16 %v2066
        %v2243 = vpack.c.b16 %v2236, %v2235
        %v2244 = vpack.c.b16 %v2238, %v2237
        %v2245 = vpack.c.b16 %v2240, %v2239
        %v2246 = vpack.c.b16 %v2242, %v2241
        %v2255 = vunpack.c.l.b16 %v2075
        %v2256 = vunpack.c.l.b16 %v2076
        %v2257 = vunpack.c.l.b16 %v2077
        %v2258 = vunpack.c.l.b16 %v2078
        %v2259 = vunpack.c.l.b16 %v2079
        %v2260 = vunpack.c.l.b16 %v2080
        %v2261 = vunpack.c.l.b16 %v2081
        %v2262 = vunpack.c.l.b16 %v2082
        %v2263 = vpack.c.b16 %v2256, %v2255
        %v2264 = vpack.c.b16 %v2258, %v2257
        %v2265 = vpack.c.b16 %v2260, %v2259
        %v2266 = vpack.c.b16 %v2262, %v2261
        %2267 = vrot.lane.b32.xlu0 %v2263, 64
        %v2268 = vpop.permute.xlu0 %2267
        %2269 = vrot.lane.b32.xlu0 %v2264, 64
        %v2270 = vpop.permute.xlu0 %2269
        %2271 = vrot.lane.b32.xlu0 %v2265, 64
        %v2272 = vpop.permute.xlu0 %2271
        %2273 = vrot.lane.b32.xlu0 %v2266, 64
        %v2274 = vpop.permute.xlu0 %2273
        %v2283 = vunpack.c.l.b16 %v2091
        %v2284 = vunpack.c.l.b16 %v2092
        %v2285 = vunpack.c.l.b16 %v2093
        %v2286 = vunpack.c.l.b16 %v2094
        %v2287 = vunpack.c.l.b16 %v2095
        %v2288 = vunpack.c.l.b16 %v2096
        %v2289 = vunpack.c.l.b16 %v2097
        %v2290 = vunpack.c.l.b16 %v2098
        %v2291 = vpack.c.b16 %v2284, %v2283
        %v2292 = vpack.c.b16 %v2286, %v2285
        %v2293 = vpack.c.b16 %v2288, %v2287
        %v2294 = vpack.c.b16 %v2290, %v2289
        %v2303 = vunpack.c.l.b16 %v2107
        %v2304 = vunpack.c.l.b16 %v2108
        %v2305 = vunpack.c.l.b16 %v2109
        %v2306 = vunpack.c.l.b16 %v2110
        %v2307 = vunpack.c.l.b16 %v2111
        %v2308 = vunpack.c.l.b16 %v2112
        %v2309 = vunpack.c.l.b16 %v2113
        %v2310 = vunpack.c.l.b16 %v2114
        %v2311 = vpack.c.b16 %v2304, %v2303
        %v2312 = vpack.c.b16 %v2306, %v2305
        %v2313 = vpack.c.b16 %v2308, %v2307
        %v2314 = vpack.c.b16 %v2310, %v2309
        %2315 = vrot.lane.b32.xlu0 %v2311, 64
        %v2316 = vpop.permute.xlu0 %2315
        %2317 = vrot.lane.b32.xlu0 %v2312, 64
        %v2318 = vpop.permute.xlu0 %2317
        %2319 = vrot.lane.b32.xlu0 %v2313, 64
        %v2320 = vpop.permute.xlu0 %2319
        %2321 = vrot.lane.b32.xlu0 %v2314, 64
        %v2322 = vpop.permute.xlu0 %2321
        %v2331 = vunpack.c.l.b16 %v2123
        %v2332 = vunpack.c.l.b16 %v2124
        %v2333 = vunpack.c.l.b16 %v2125
        %v2334 = vunpack.c.l.b16 %v2126
        %v2335 = vunpack.c.l.b16 %v2127
        %v2336 = vunpack.c.l.b16 %v2128
        %v2337 = vunpack.c.l.b16 %v2129
        %v2338 = vunpack.c.l.b16 %v2130
        %v2339 = vpack.c.b16 %v2332, %v2331
        %v2340 = vpack.c.b16 %v2334, %v2333
        %v2341 = vpack.c.b16 %v2336, %v2335
        %v2342 = vpack.c.b16 %v2338, %v2337
        %v2345 = vsel %vm493, %v2147, %v2172
        %v2349 = vsel %vm493, %v2148, %v2174
        %v2353 = vsel %vm493, %v2149, %v2176
        %v2357 = vsel %vm493, %v2150, %v2178
        %v2361 = vsel %vm493, %v2195, %v2220
        %v2365 = vsel %vm493, %v2196, %v2222
        %v2369 = vsel %vm493, %v2197, %v2224
        %v2373 = vsel %vm493, %v2198, %v2226
        %v2377 = vsel %vm493, %v2243, %v2268
        %v2381 = vsel %vm493, %v2244, %v2270
        %v2385 = vsel %vm493, %v2245, %v2272
        %v2389 = vsel %vm493, %v2246, %v2274
        %v2393 = vsel %vm493, %v2291, %v2316
        %v2397 = vsel %vm493, %v2292, %v2318
        %v2401 = vsel %vm493, %v2293, %v2320
        %v2405 = vsel %vm493, %v2294, %v2322
        %s2407 = scalar_lea.vmem [#allocation8], 288
        %v2408 = vld [vmem:[%s2407] sm:$0xf]
        %v2409 = vld [vmem:[%s2407 + $0x4] sm:$0xf]
        %v2410 = vld [vmem:[%s2407 + $0x8] sm:$0xf]
        %v2411 = vld [vmem:[%s2407 + $0xc] sm:$0xf]
        %v2412 = vld [vmem:[%s2407 + $0x10] sm:$0xf]
        %v2413 = vld [vmem:[%s2407 + $0x14] sm:$0xf]
        %v2414 = vld [vmem:[%s2407 + $0x18] sm:$0xf]
        %v2415 = vld [vmem:[%s2407 + $0x1c] sm:$0xf]
        %v2416 = vld [vmem:[%s2407 + $0x20] sm:$0xf]
        %v2417 = vld [vmem:[%s2407 + $0x24] sm:$0xf]
        %v2418 = vld [vmem:[%s2407 + $0x28] sm:$0xf]
        %v2419 = vld [vmem:[%s2407 + $0x2c] sm:$0xf]
        %v2420 = vld [vmem:[%s2407 + $0x30] sm:$0xf]
        %v2421 = vld [vmem:[%s2407 + $0x34] sm:$0xf]
        %v2422 = vld [vmem:[%s2407 + $0x38] sm:$0xf]
        %v2423 = vld [vmem:[%s2407 + $0x3c] sm:$0xf]
        %v2424 = vld [vmem:[%s2407 + $0x40] sm:$0xf]
        %v2425 = vld [vmem:[%s2407 + $0x44] sm:$0xf]
        %v2426 = vld [vmem:[%s2407 + $0x48] sm:$0xf]
        %v2427 = vld [vmem:[%s2407 + $0x4c] sm:$0xf]
        %v2428 = vld [vmem:[%s2407 + $0x50] sm:$0xf]
        %v2429 = vld [vmem:[%s2407 + $0x54] sm:$0xf]
        %v2430 = vld [vmem:[%s2407 + $0x58] sm:$0xf]
        %v2431 = vld [vmem:[%s2407 + $0x5c] sm:$0xf]
        %v2432 = vld [vmem:[%s2407 + $0x60] sm:$0xf]
        %v2433 = vld [vmem:[%s2407 + $0x64] sm:$0xf]
        %v2434 = vld [vmem:[%s2407 + $0x68] sm:$0xf]
        %v2435 = vld [vmem:[%s2407 + $0x6c] sm:$0xf]
        %v2436 = vld [vmem:[%s2407 + $0x70] sm:$0xf]
        %v2437 = vld [vmem:[%s2407 + $0x74] sm:$0xf]
        %v2438 = vld [vmem:[%s2407 + $0x78] sm:$0xf]
        %v2439 = vld [vmem:[%s2407 + $0x7c] sm:$0xf]
        %v2440 = vld [vmem:[%s2407 + $0x80] sm:$0xf]
        %v2441 = vld [vmem:[%s2407 + $0x84] sm:$0xf]
        %v2442 = vld [vmem:[%s2407 + $0x88] sm:$0xf]
        %v2443 = vld [vmem:[%s2407 + $0x8c] sm:$0xf]
        %v2444 = vld [vmem:[%s2407 + $0x90] sm:$0xf]
        %v2445 = vld [vmem:[%s2407 + $0x94] sm:$0xf]
        %v2446 = vld [vmem:[%s2407 + $0x98] sm:$0xf]
        %v2447 = vld [vmem:[%s2407 + $0x9c] sm:$0xf]
        %v2448 = vld [vmem:[%s2407 + $0xa0] sm:$0xf]
        %v2449 = vld [vmem:[%s2407 + $0xa4] sm:$0xf]
        %v2450 = vld [vmem:[%s2407 + $0xa8] sm:$0xf]
        %v2451 = vld [vmem:[%s2407 + $0xac] sm:$0xf]
        %v2452 = vld [vmem:[%s2407 + $0xb0] sm:$0xf]
        %v2453 = vld [vmem:[%s2407 + $0xb4] sm:$0xf]
        %v2454 = vld [vmem:[%s2407 + $0xb8] sm:$0xf]
        %v2455 = vld [vmem:[%s2407 + $0xbc] sm:$0xf]
        %v2456 = vld [vmem:[%s2407 + $0xc0] sm:$0xf]
        %v2457 = vld [vmem:[%s2407 + $0xc4] sm:$0xf]
        %v2458 = vld [vmem:[%s2407 + $0xc8] sm:$0xf]
        %v2459 = vld [vmem:[%s2407 + $0xcc] sm:$0xf]
        %v2460 = vld [vmem:[%s2407 + $0xd0] sm:$0xf]
        %v2461 = vld [vmem:[%s2407 + $0xd4] sm:$0xf]
        %v2462 = vld [vmem:[%s2407 + $0xd8] sm:$0xf]
        %v2463 = vld [vmem:[%s2407 + $0xdc] sm:$0xf]
        %v2464 = vld [vmem:[%s2407 + $0xe0] sm:$0xf]
        %v2465 = vld [vmem:[%s2407 + $0xe4] sm:$0xf]
        %v2466 = vld [vmem:[%s2407 + $0xe8] sm:$0xf]
        %v2467 = vld [vmem:[%s2407 + $0xec] sm:$0xf]
        %v2468 = vld [vmem:[%s2407 + $0xf0] sm:$0xf]
        %v2469 = vld [vmem:[%s2407 + $0xf4] sm:$0xf]
        %v2470 = vld [vmem:[%s2407 + $0xf8] sm:$0xf]
        %v2471 = vld [vmem:[%s2407 + $0xfc] sm:$0xf]
        %v2472 = vld [vmem:[%s2407 + $0x100] sm:$0xf]
        %v2473 = vld [vmem:[%s2407 + $0x104] sm:$0xf]
        %v2474 = vld [vmem:[%s2407 + $0x108] sm:$0xf]
        %v2475 = vld [vmem:[%s2407 + $0x10c] sm:$0xf]
        %v2476 = vld [vmem:[%s2407 + $0x110] sm:$0xf]
        %v2477 = vld [vmem:[%s2407 + $0x114] sm:$0xf]
        %v2478 = vld [vmem:[%s2407 + $0x118] sm:$0xf]
        %v2479 = vld [vmem:[%s2407 + $0x11c] sm:$0xf]
        %v2552 = vunpack.c.l.b16 %v2408
        %v2553 = vunpack.c.l.b16 %v2409
        %v2554 = vunpack.c.l.b16 %v2410
        %v2555 = vunpack.c.l.b16 %v2411
        %v2556 = vunpack.c.l.b16 %v2412
        %v2557 = vunpack.c.l.b16 %v2413
        %v2558 = vunpack.c.l.b16 %v2414
        %v2559 = vunpack.c.l.b16 %v2415
        %v2560 = vunpack.c.l.b16 %v2416
        %v2561 = vunpack.c.l.b16 %v2417
        %v2562 = vunpack.c.l.b16 %v2418
        %v2563 = vunpack.c.l.b16 %v2419
        %v2564 = vunpack.c.l.b16 %v2420
        %v2565 = vunpack.c.l.b16 %v2421
        %v2566 = vunpack.c.l.b16 %v2422
        %v2567 = vunpack.c.l.b16 %v2423
        %v2568 = vunpack.c.l.b16 %v2424
        %v2569 = vunpack.c.l.b16 %v2425
        %v2570 = vunpack.c.l.b16 %v2426
        %v2571 = vunpack.c.l.b16 %v2427
        %v2572 = vunpack.c.l.b16 %v2428
        %v2573 = vunpack.c.l.b16 %v2429
        %v2574 = vunpack.c.l.b16 %v2430
        %v2575 = vunpack.c.l.b16 %v2431
        %v2576 = vunpack.c.l.b16 %v2432
        %v2577 = vunpack.c.l.b16 %v2433
        %v2578 = vunpack.c.l.b16 %v2434
        %v2579 = vunpack.c.l.b16 %v2435
        %v2580 = vunpack.c.l.b16 %v2436
        %v2581 = vunpack.c.l.b16 %v2437
        %v2582 = vunpack.c.l.b16 %v2438
        %v2583 = vunpack.c.l.b16 %v2439
        %v2584 = vunpack.c.l.b16 %v2440
        %v2585 = vunpack.c.l.b16 %v2441
        %v2586 = vunpack.c.l.b16 %v2442
        %v2587 = vunpack.c.l.b16 %v2443
        %v2588 = vunpack.c.l.b16 %v2444
        %v2589 = vunpack.c.l.b16 %v2445
        %v2590 = vunpack.c.l.b16 %v2446
        %v2591 = vunpack.c.l.b16 %v2447
        %v2592 = vunpack.c.l.b16 %v2448
        %v2593 = vunpack.c.l.b16 %v2449
        %v2594 = vunpack.c.l.b16 %v2450
        %v2595 = vunpack.c.l.b16 %v2451
        %v2596 = vunpack.c.l.b16 %v2452
        %v2597 = vunpack.c.l.b16 %v2453
        %v2598 = vunpack.c.l.b16 %v2454
        %v2599 = vunpack.c.l.b16 %v2455
        %v2600 = vunpack.c.l.b16 %v2456
        %v2601 = vunpack.c.l.b16 %v2457
        %v2602 = vunpack.c.l.b16 %v2458
        %v2603 = vunpack.c.l.b16 %v2459
        %v2604 = vunpack.c.l.b16 %v2460
        %v2605 = vunpack.c.l.b16 %v2461
        %v2606 = vunpack.c.l.b16 %v2462
        %v2607 = vunpack.c.l.b16 %v2463
        %v2608 = vunpack.c.l.b16 %v2464
        %v2609 = vunpack.c.l.b16 %v2465
        %v2610 = vunpack.c.l.b16 %v2466
        %v2611 = vunpack.c.l.b16 %v2467
        %v2612 = vunpack.c.l.b16 %v2468
        %v2613 = vunpack.c.l.b16 %v2469
        %v2614 = vunpack.c.l.b16 %v2470
        %v2615 = vunpack.c.l.b16 %v2471
        %v2616 = vunpack.c.l.b16 %v2472
        %v2617 = vunpack.c.l.b16 %v2473
        %v2618 = vunpack.c.l.b16 %v2474
        %v2619 = vunpack.c.l.b16 %v2475
        %v2620 = vunpack.c.l.b16 %v2476
        %v2621 = vunpack.c.l.b16 %v2477
        %v2622 = vunpack.c.l.b16 %v2478
        %v2623 = vunpack.c.l.b16 %v2479
        %v2624 = vpack.c.b16 %v2553, %v2552
        %v2625 = vpack.c.b16 %v2555, %v2554
        %v2626 = vpack.c.b16 %v2557, %v2556
        %v2627 = vpack.c.b16 %v2559, %v2558
        %v2628 = vpack.c.b16 %v2561, %v2560
        %v2629 = vpack.c.b16 %v2563, %v2562
        %v2630 = vpack.c.b16 %v2565, %v2564
        %v2631 = vpack.c.b16 %v2567, %v2566
        %v2632 = vpack.c.b16 %v2569, %v2568
        %v2633 = vpack.c.b16 %v2571, %v2570
        %v2634 = vpack.c.b16 %v2573, %v2572
        %v2635 = vpack.c.b16 %v2575, %v2574
        %v2636 = vpack.c.b16 %v2577, %v2576
        %v2637 = vpack.c.b16 %v2579, %v2578
        %v2638 = vpack.c.b16 %v2581, %v2580
        %v2639 = vpack.c.b16 %v2583, %v2582
        %v2640 = vpack.c.b16 %v2585, %v2584
        %v2641 = vpack.c.b16 %v2587, %v2586
        %v2642 = vpack.c.b16 %v2589, %v2588
        %v2643 = vpack.c.b16 %v2591, %v2590
        %v2644 = vpack.c.b16 %v2593, %v2592
        %v2645 = vpack.c.b16 %v2595, %v2594
        %v2646 = vpack.c.b16 %v2597, %v2596
        %v2647 = vpack.c.b16 %v2599, %v2598
        %v2648 = vpack.c.b16 %v2601, %v2600
        %v2649 = vpack.c.b16 %v2603, %v2602
        %v2650 = vpack.c.b16 %v2605, %v2604
        %v2651 = vpack.c.b16 %v2607, %v2606
        %v2652 = vpack.c.b16 %v2609, %v2608
        %v2653 = vpack.c.b16 %v2611, %v2610
        %v2654 = vpack.c.b16 %v2613, %v2612
        %v2655 = vpack.c.b16 %v2615, %v2614
        %v2656 = vpack.c.b16 %v2617, %v2616
        %v2657 = vpack.c.b16 %v2619, %v2618
        %v2658 = vpack.c.b16 %v2621, %v2620
        %v2659 = vpack.c.b16 %v2623, %v2622
        %v2697 = vsel %vm493, %v2339, 0
        %v2700 = vsel %vm493, %v2340, 0
        %v2703 = vsel %vm493, %v2341, 0
        %v2706 = vsel %vm493, %v2342, 0
        %2708 = vmatpush.bf16.msra.mxu0 %v2631
        %2709 = vmatpush.bf16.msra.mxu0 %v2630
        %2710 = vmatpush.bf16.msra.mxu0 %v2629
        %2711 = vmatpush.bf16.msra.mxu0 %v2628
        %2712 = vmatpush.bf16.msra.mxu0 %v2627
        %2713 = vmatpush.bf16.msra.mxu0 %v2626
        %2714 = vmatpush.bf16.msra.mxu0 %v2625
        %2715 = vmatpush.bf16.msra.mxu0 %v2624
        %2716 = vmatmul.bf16.gmra.mxu0 %v2345
        %v2717 = vpop.f32.mrf.mxu0
        %v2718 = vadd.f32 0.0, %v2717
        %v2719 = vpop.f32.mrf.mxu0
        %v2720 = vadd.f32 0.0, %v2719
        %2721 = vmatmul.bf16.gmra.mxu0 %v2349
        %v2722 = vpop.f32.mrf.mxu0
        %v2723 = vadd.f32 0.0, %v2722
        %v2724 = vpop.f32.mrf.mxu0
        %v2725 = vadd.f32 0.0, %v2724
        %2726 = vmatmul.bf16.gmra.mxu0 %v2353
        %v2727 = vpop.f32.mrf.mxu0
        %v2728 = vadd.f32 0.0, %v2727
        %v2729 = vpop.f32.mrf.mxu0
        %v2730 = vadd.f32 0.0, %v2729
        %2731 = vmatmul.bf16.gmra.mxu0 %v2357
        %v2732 = vpop.f32.mrf.mxu0
        %v2733 = vadd.f32 0.0, %v2732
        %v2734 = vpop.f32.mrf.mxu0
        %v2735 = vadd.f32 0.0, %v2734
        %2736 = vdwg.mxu0
        %2737 = vmatpush.bf16.msra.mxu0 %v2639
        %2738 = vmatpush.bf16.msra.mxu0 %v2638
        %2739 = vmatpush.bf16.msra.mxu0 %v2637
        %2740 = vmatpush.bf16.msra.mxu0 %v2636
        %2741 = vmatpush.bf16.msra.mxu0 %v2635
        %2742 = vmatpush.bf16.msra.mxu0 %v2634
        %2743 = vmatpush.bf16.msra.mxu0 %v2633
        %2744 = vmatpush.bf16.msra.mxu0 %v2632
        %2745 = vmatmul.bf16.gmra.mxu0 %v2361
        %v2746 = vpop.f32.mrf.mxu0
        %v2747 = vadd.f32 %v2718, %v2746
        %v2748 = vpop.f32.mrf.mxu0
        %v2749 = vadd.f32 %v2720, %v2748
        %2750 = vmatmul.bf16.gmra.mxu0 %v2365
        %v2751 = vpop.f32.mrf.mxu0
        %v2752 = vadd.f32 %v2723, %v2751
        %v2753 = vpop.f32.mrf.mxu0
        %v2754 = vadd.f32 %v2725, %v2753
        %2755 = vmatmul.bf16.gmra.mxu0 %v2369
        %v2756 = vpop.f32.mrf.mxu0
        %v2757 = vadd.f32 %v2728, %v2756
        %v2758 = vpop.f32.mrf.mxu0
        %v2759 = vadd.f32 %v2730, %v2758
        %2760 = vmatmul.bf16.gmra.mxu0 %v2373
        %v2761 = vpop.f32.mrf.mxu0
        %v2762 = vadd.f32 %v2733, %v2761
        %v2763 = vpop.f32.mrf.mxu0
        %v2764 = vadd.f32 %v2735, %v2763
        %2765 = vdwg.mxu0
        %2766 = vmatpush.bf16.msra.mxu0 %v2647
        %2767 = vmatpush.bf16.msra.mxu0 %v2646
        %2768 = vmatpush.bf16.msra.mxu0 %v2645
        %2769 = vmatpush.bf16.msra.mxu0 %v2644
        %2770 = vmatpush.bf16.msra.mxu0 %v2643
        %2771 = vmatpush.bf16.msra.mxu0 %v2642
        %2772 = vmatpush.bf16.msra.mxu0 %v2641
        %2773 = vmatpush.bf16.msra.mxu0 %v2640
        %2774 = vmatmul.bf16.gmra.mxu0 %v2377
        %v2775 = vpop.f32.mrf.mxu0
        %v2776 = vadd.f32 %v2747, %v2775
        %v2777 = vpop.f32.mrf.mxu0
        %v2778 = vadd.f32 %v2749, %v2777
        %2779 = vmatmul.bf16.gmra.mxu0 %v2381
        %v2780 = vpop.f32.mrf.mxu0
        %v2781 = vadd.f32 %v2752, %v2780
        %v2782 = vpop.f32.mrf.mxu0
        %v2783 = vadd.f32 %v2754, %v2782
        %2784 = vmatmul.bf16.gmra.mxu0 %v2385
        %v2785 = vpop.f32.mrf.mxu0
        %v2786 = vadd.f32 %v2757, %v2785
        %v2787 = vpop.f32.mrf.mxu0
        %v2788 = vadd.f32 %v2759, %v2787
        %2789 = vmatmul.bf16.gmra.mxu0 %v2389
        %v2790 = vpop.f32.mrf.mxu0
        %v2791 = vadd.f32 %v2762, %v2790
        %v2792 = vpop.f32.mrf.mxu0
        %v2793 = vadd.f32 %v2764, %v2792
        %2794 = vdwg.mxu0
        %2795 = vmatpush.bf16.msra.mxu0 %v2655
        %2796 = vmatpush.bf16.msra.mxu0 %v2654
        %2797 = vmatpush.bf16.msra.mxu0 %v2653
        %2798 = vmatpush.bf16.msra.mxu0 %v2652
        %2799 = vmatpush.bf16.msra.mxu0 %v2651
        %2800 = vmatpush.bf16.msra.mxu0 %v2650
        %2801 = vmatpush.bf16.msra.mxu0 %v2649
        %2802 = vmatpush.bf16.msra.mxu0 %v2648
        %2803 = vmatmul.bf16.gmra.mxu0 %v2393
        %v2804 = vpop.f32.mrf.mxu0
        %v2805 = vadd.f32 %v2776, %v2804
        %v2806 = vpop.f32.mrf.mxu0
        %v2807 = vadd.f32 %v2778, %v2806
        %2808 = vmatmul.bf16.gmra.mxu0 %v2397
        %v2809 = vpop.f32.mrf.mxu0
        %v2810 = vadd.f32 %v2781, %v2809
        %v2811 = vpop.f32.mrf.mxu0
        %v2812 = vadd.f32 %v2783, %v2811
        %2813 = vmatmul.bf16.gmra.mxu0 %v2401
        %v2814 = vpop.f32.mrf.mxu0
        %v2815 = vadd.f32 %v2786, %v2814
        %v2816 = vpop.f32.mrf.mxu0
        %v2817 = vadd.f32 %v2788, %v2816
        %2818 = vmatmul.bf16.gmra.mxu0 %v2405
        %v2819 = vpop.f32.mrf.mxu0
        %v2820 = vadd.f32 %v2791, %v2819
        %v2821 = vpop.f32.mrf.mxu0
        %v2822 = vadd.f32 %v2793, %v2821
        %2823 = vdwg.mxu0
        %2824 = vmatpush.bf16.msra.mxu0 0
        %2825 = vmatpush.bf16.msra.mxu0 0
        %2826 = vmatpush.bf16.msra.mxu0 0
        %2827 = vmatpush.bf16.msra.mxu0 0
        %2828 = vmatpush.bf16.msra.mxu0 %v2659
        %2829 = vmatpush.bf16.msra.mxu0 %v2658
        %2830 = vmatpush.bf16.msra.mxu0 %v2657
        %2831 = vmatpush.bf16.msra.mxu0 %v2656
        %2832 = vmatmul.bf16.gmra.mxu0 %v2697
        %v2833 = vpop.f32.mrf.mxu0
        %v2834 = vadd.f32 %v2805, %v2833
        %v2835 = vpop.f32.mrf.mxu0
        %v2836 = vadd.f32 %v2807, %v2835
        %2837 = vmatmul.bf16.gmra.mxu0 %v2700
        %v2838 = vpop.f32.mrf.mxu0
        %v2839 = vadd.f32 %v2810, %v2838
        %v2840 = vpop.f32.mrf.mxu0
        %v2841 = vadd.f32 %v2812, %v2840
        %2842 = vmatmul.bf16.gmra.mxu0 %v2703
        %v2843 = vpop.f32.mrf.mxu0
        %v2844 = vadd.f32 %v2815, %v2843
        %v2845 = vpop.f32.mrf.mxu0
        %v2846 = vadd.f32 %v2817, %v2845
        %2847 = vmatmul.bf16.gmra.mxu0 %v2706
        %v2848 = vpop.f32.mrf.mxu0
        %v2849 = vadd.f32 %v2820, %v2848
        %v2850 = vpop.f32.mrf.mxu0
        %v2851 = vadd.f32 %v2822, %v2850
        %2852 = vdwg.mxu0
        %s2853 = scalar_lea.vmem [#allocation10], 1
        %v2854 = vld [vmem:[%s2853] sm:$0x1]
        %v2856 = vperm.slane %v2854, 0
        %v2858 = vadd.f32 %v2834, %v2856
        %v2859 = vadd.f32 %v2836, %v2856
        %v2860 = vadd.f32 %v2839, %v2856
        %v2861 = vadd.f32 %v2841, %v2856
        %v2862 = vadd.f32 %v2844, %v2856
        %v2863 = vadd.f32 %v2846, %v2856
        %v2864 = vadd.f32 %v2849, %v2856
        %v2865 = vadd.f32 %v2851, %v2856
        %v2866 = vmax.f32 %v2858, 0.0
        %v2867 = vmax.f32 %v2859, 0.0
        %v2868 = vmax.f32 %v2860, 0.0
        %v2869 = vmax.f32 %v2861, 0.0
        %v2870 = vmax.f32 %v2862, 0.0
        %v2871 = vmax.f32 %v2863, 0.0
        %v2872 = vmax.f32 %v2864, 0.0
        %v2873 = vmax.f32 %v2865, 0.0
        %s2874 = scalar_lea.vmem [#allocation11], 64
        %v2875 = vld [vmem:[%s2874] sm:$0xff]
        %v2876 = vld [vmem:[%s2874 + $0x8] sm:$0xff]
        %v2877 = vld [vmem:[%s2874 + $0x10] sm:$0xff]
        %v2878 = vld [vmem:[%s2874 + $0x18] sm:$0xff]
        %v2879 = vld [vmem:[%s2874 + $0x20] sm:$0xff]
        %v2880 = vld [vmem:[%s2874 + $0x28] sm:$0xff]
        %v2881 = vld [vmem:[%s2874 + $0x30] sm:$0xff]
        %v2882 = vld [vmem:[%s2874 + $0x38] sm:$0xff]
        %s2883 = scalar_lea.vmem [#allocation13], 2
        %v2884 = vld [vmem:[%s2883] sm:$0x3]
        %v2886 = vperm.slane %v2884, 0
        %v2887 = vperm.slane %v2884, 1
        %v2898 = vunpack.c.l.b16 %v2875
        %v2899 = vunpack.c.h.b16 %v2875
        %v2900 = vunpack.c.l.b16 %v2876
        %v2901 = vunpack.c.h.b16 %v2876
        %v2902 = vunpack.c.l.b16 %v2877
        %v2903 = vunpack.c.h.b16 %v2877
        %v2904 = vunpack.c.l.b16 %v2878
        %v2905 = vunpack.c.h.b16 %v2878
        %v2906 = vunpack.c.l.b16 %v2879
        %v2907 = vunpack.c.h.b16 %v2879
        %v2908 = vunpack.c.l.b16 %v2880
        %v2909 = vunpack.c.h.b16 %v2880
        %v2910 = vunpack.c.l.b16 %v2881
        %v2911 = vunpack.c.h.b16 %v2881
        %v2912 = vunpack.c.l.b16 %v2882
        %v2913 = vunpack.c.h.b16 %v2882
        %v2914 = vpack.c.b16 %v2900, %v2898
        %v2915 = vpack.c.b16 %v2901, %v2899
        %v2916 = vpack.c.b16 %v2904, %v2902
        %v2917 = vpack.c.b16 %v2905, %v2903
        %v2918 = vpack.c.b16 %v2908, %v2906
        %v2919 = vpack.c.b16 %v2909, %v2907
        %v2920 = vpack.c.b16 %v2912, %v2910
        %v2921 = vpack.c.b16 %v2913, %v2911
        %v2930 = vsel %vm493, %v2243, 0
        %v2932 = vsel %vm493, %v2244, 0
        %v2934 = vsel %vm493, %v2245, 0
        %v2936 = vsel %vm493, %v2246, 0
        %2938 = vmatpush.bf16.msra.mxu0 0
        %2939 = vmatpush.bf16.msra.mxu0 0
        %2940 = vmatpush.bf16.msra.mxu0 0
        %2941 = vmatpush.bf16.msra.mxu0 0
        %2942 = vmatpush.bf16.msra.mxu0 %v2920
        %2943 = vmatpush.bf16.msra.mxu0 %v2918
        %2944 = vmatpush.bf16.msra.mxu0 %v2916
        %2945 = vmatpush.bf16.msra.mxu0 %v2914
        %2946 = vmatmul.bf16.gmra.mxu0 %v2930
        %v2947 = vpop.f32.mrf.mxu0
        %v2948 = vadd.f32 %v2886, %v2947
        %v2949 = vpop.f32.mrf.mxu0
        %v2950 = vadd.f32 %v2886, %v2949
        %2951 = vmatmul.bf16.gmra.mxu0 %v2932
        %v2952 = vpop.f32.mrf.mxu0
        %v2953 = vadd.f32 %v2886, %v2952
        %v2954 = vpop.f32.mrf.mxu0
        %v2955 = vadd.f32 %v2886, %v2954
        %2956 = vmatmul.bf16.gmra.mxu0 %v2934
        %v2957 = vpop.f32.mrf.mxu0
        %v2958 = vadd.f32 %v2886, %v2957
        %v2959 = vpop.f32.mrf.mxu0
        %v2960 = vadd.f32 %v2886, %v2959
        %2961 = vmatmul.bf16.gmra.mxu0 %v2936
        %v2962 = vpop.f32.mrf.mxu0
        %v2963 = vadd.f32 %v2886, %v2962
        %v2964 = vpop.f32.mrf.mxu0
        %v2965 = vadd.f32 %v2886, %v2964
        %2966 = vdwg.mxu0
        %2967 = vmatpush.bf16.msra.mxu0 0
        %2968 = vmatpush.bf16.msra.mxu0 0
        %2969 = vmatpush.bf16.msra.mxu0 0
        %2970 = vmatpush.bf16.msra.mxu0 0
        %2971 = vmatpush.bf16.msra.mxu0 %v2921
        %2972 = vmatpush.bf16.msra.mxu0 %v2919
        %2973 = vmatpush.bf16.msra.mxu0 %v2917
        %2974 = vmatpush.bf16.msra.mxu0 %v2915
        %2975 = vmatmul.bf16.gmra.mxu0 %v2930
        %v2976 = vpop.f32.mrf.mxu0
        %v2977 = vadd.f32 %v2887, %v2976
        %v2978 = vpop.f32.mrf.mxu0
        %v2979 = vadd.f32 %v2887, %v2978
        %2980 = vmatmul.bf16.gmra.mxu0 %v2932
        %v2981 = vpop.f32.mrf.mxu0
        %v2982 = vadd.f32 %v2887, %v2981
        %v2983 = vpop.f32.mrf.mxu0
        %v2984 = vadd.f32 %v2887, %v2983
        %2985 = vmatmul.bf16.gmra.mxu0 %v2934
        %v2986 = vpop.f32.mrf.mxu0
        %v2987 = vadd.f32 %v2887, %v2986
        %v2988 = vpop.f32.mrf.mxu0
        %v2989 = vadd.f32 %v2887, %v2988
        %2990 = vmatmul.bf16.gmra.mxu0 %v2936
        %v2991 = vpop.f32.mrf.mxu0
        %v2992 = vadd.f32 %v2887, %v2991
        %v2993 = vpop.f32.mrf.mxu0
        %v2994 = vadd.f32 %v2887, %v2993
        %2995 = vdwg.mxu0
        %v2996 = vpack.c.bf16 %v2948, %v2948
        %v2997 = vpack.c.bf16 %v2950, %v2950
        %v2998 = vpack.c.bf16 %v2953, %v2953
        %v2999 = vpack.c.bf16 %v2955, %v2955
        %v3000 = vpack.c.bf16 %v2958, %v2958
        %v3001 = vpack.c.bf16 %v2960, %v2960
        %v3002 = vpack.c.bf16 %v2963, %v2963
        %v3003 = vpack.c.bf16 %v2965, %v2965
        %v3004 = vpack.c.bf16 %v2977, %v2977
        %v3005 = vpack.c.bf16 %v2979, %v2979
        %v3006 = vpack.c.bf16 %v2982, %v2982
        %v3007 = vpack.c.bf16 %v2984, %v2984
        %v3008 = vpack.c.bf16 %v2987, %v2987
        %v3009 = vpack.c.bf16 %v2989, %v2989
        %v3010 = vpack.c.bf16 %v2992, %v2992
        %v3011 = vpack.c.bf16 %v2994, %v2994
        %v3020 = vunpack.c.l.b16 %v2996
        %v3021 = vunpack.c.l.b16 %v2997
        %v3022 = vunpack.c.l.b16 %v2998
        %v3023 = vunpack.c.l.b16 %v2999
        %v3024 = vunpack.c.l.b16 %v3000
        %v3025 = vunpack.c.l.b16 %v3001
        %v3026 = vunpack.c.l.b16 %v3002
        %v3027 = vunpack.c.l.b16 %v3003
        %v3028 = vpack.c.b16 %v3021, %v3020
        %v3029 = vpack.c.b16 %v3023, %v3022
        %v3030 = vpack.c.b16 %v3025, %v3024
        %v3031 = vpack.c.b16 %v3027, %v3026
        %3032 = vrot.lane.b32.xlu0 %v3028, 64
        %v3033 = vpop.permute.xlu0 %3032
        %3034 = vrot.lane.b32.xlu0 %v3029, 64
        %v3035 = vpop.permute.xlu0 %3034
        %3036 = vrot.lane.b32.xlu0 %v3030, 64
        %v3037 = vpop.permute.xlu0 %3036
        %3038 = vrot.lane.b32.xlu0 %v3031, 64
        %v3039 = vpop.permute.xlu0 %3038
        %v3041 = vsel %vm493, %v3028, 0
        %v3044 = vsel %vm493, %v3029, 0
        %v3047 = vsel %vm493, %v3030, 0
        %v3050 = vsel %vm493, %v3031, 0
        %v3053 = vsel %vm493, %v3033, 0
        %v3056 = vsel %vm493, %v3035, 0
        %v3059 = vsel %vm493, %v3037, 0
        %v3062 = vsel %vm493, %v3039, 0
        %3064 = vmatpush.bf16.xpose.msra.mxu0 0
        %3065 = vmatpush.bf16.xpose.msra.mxu0 0
        %3066 = vmatpush.bf16.xpose.msra.mxu0 0
        %3067 = vmatpush.bf16.xpose.msra.mxu0 0
        %3068 = vmatpush.bf16.xpose.msra.mxu0 %v3062
        %3069 = vmatpush.bf16.xpose.msra.mxu0 %v3059
        %3070 = vmatpush.bf16.xpose.msra.mxu0 %v3056
        %3071 = vmatpush.bf16.xpose.msra.mxu0 %v3053
        %3072 = vmatmul.bf16.gmra.mxu0 %v3041
        %v3073 = vpop.f32.mrf.mxu0
        %v3074 = vadd.f32 0.0, %v3073
        %v3075 = vpop.f32.mrf.mxu0
        %v3076 = vadd.f32 0.0, %v3075
        %3077 = vmatmul.bf16.gmra.mxu0 %v3044
        %v3078 = vpop.f32.mrf.mxu0
        %v3079 = vadd.f32 0.0, %v3078
        %v3080 = vpop.f32.mrf.mxu0
        %v3081 = vadd.f32 0.0, %v3080
        %3082 = vmatmul.bf16.gmra.mxu0 %v3047
        %v3083 = vpop.f32.mrf.mxu0
        %v3084 = vadd.f32 0.0, %v3083
        %v3085 = vpop.f32.mrf.mxu0
        %v3086 = vadd.f32 0.0, %v3085
        %3087 = vmatmul.bf16.gmra.mxu0 %v3050
        %v3088 = vpop.f32.mrf.mxu0
        %v3089 = vadd.f32 0.0, %v3088
        %v3090 = vpop.f32.mrf.mxu0
        %v3091 = vadd.f32 0.0, %v3090
        %3092 = vdwg.mxu0
        %v3093 = vmul.f32 %v3074, 0.125
        %v3094 = vmul.f32 %v3076, 0.125
        %v3095 = vmul.f32 %v3079, 0.125
        %v3096 = vmul.f32 %v3081, 0.125
        %v3097 = vmul.f32 %v3084, 0.125
        %v3098 = vmul.f32 %v3086, 0.125
        %v3099 = vmul.f32 %v3089, 0.125
        %v3100 = vmul.f32 %v3091, 0.125
        %v3101 = vsel %vm493, %v3093, -inf
        %3102 = vmax.xlane.f32.xlu0 %v3101
        %v3103 = vpop.xlane.xlu0 %3102
        %v3104 = vsel %vm493, %v3094, -inf
        %3105 = vmax.xlane.f32.xlu0 %v3104
        %v3106 = vpop.xlane.xlu0 %3105
        %v3107 = vsel %vm493, %v3095, -inf
        %3108 = vmax.xlane.f32.xlu0 %v3107
        %v3109 = vpop.xlane.xlu0 %3108
        %v3110 = vsel %vm493, %v3096, -inf
        %3111 = vmax.xlane.f32.xlu0 %v3110
        %v3112 = vpop.xlane.xlu0 %3111
        %v3113 = vsel %vm493, %v3097, -inf
        %3114 = vmax.xlane.f32.xlu0 %v3113
        %v3115 = vpop.xlane.xlu0 %3114
        %v3116 = vsel %vm493, %v3098, -inf
        %3117 = vmax.xlane.f32.xlu0 %v3116
        %v3118 = vpop.xlane.xlu0 %3117
        %v3119 = vsel %vm493, %v3099, -inf
        %3120 = vmax.xlane.f32.xlu0 %v3119
        %v3121 = vpop.xlane.xlu0 %3120
        %v3122 = vsel %vm493, %v3100, -inf
        %3123 = vmax.xlane.f32.xlu0 %v3122
        %v3124 = vpop.xlane.xlu0 %3123
        %v3125 = vsub.f32 %v3093, %v3103
        %v3126 = vsub.f32 %v3094, %v3106
        %v3127 = vsub.f32 %v3095, %v3109
        %v3128 = vsub.f32 %v3096, %v3112
        %v3129 = vsub.f32 %v3097, %v3115
        %v3130 = vsub.f32 %v3098, %v3118
        %v3131 = vsub.f32 %v3099, %v3121
        %v3132 = vsub.f32 %v3100, %v3124
        %v3133 = vmul.f32 %v3125, 1.442695
        %v3134 = vpow.pop %v3133
        %v3135 = vmul.f32 %v3126, 1.442695
        %v3136 = vpow.pop %v3135
        %v3137 = vmul.f32 %v3127, 1.442695
        %v3138 = vpow.pop %v3137
        %v3139 = vmul.f32 %v3128, 1.442695
        %v3140 = vpow.pop %v3139
        %v3141 = vmul.f32 %v3129, 1.442695
        %v3142 = vpow.pop %v3141
        %v3143 = vmul.f32 %v3130, 1.442695
        %v3144 = vpow.pop %v3143
        %v3145 = vmul.f32 %v3131, 1.442695
        %v3146 = vpow.pop %v3145
        %v3147 = vmul.f32 %v3132, 1.442695
        %v3148 = vpow.pop %v3147
        %v3149 = vsel %vm493, %v3134, 0.0
        %3150 = vadd.xlane.f32.xlu0 %v3149
        %v3151 = vpop.xlane.xlu0 %3150
        %v3152 = vsel %vm493, %v3136, 0.0
        %3153 = vadd.xlane.f32.xlu0 %v3152
        %v3154 = vpop.xlane.xlu0 %3153
        %v3155 = vsel %vm493, %v3138, 0.0
        %3156 = vadd.xlane.f32.xlu0 %v3155
        %v3157 = vpop.xlane.xlu0 %3156
        %v3158 = vsel %vm493, %v3140, 0.0
        %3159 = vadd.xlane.f32.xlu0 %v3158
        %v3160 = vpop.xlane.xlu0 %3159
        %v3161 = vsel %vm493, %v3142, 0.0
        %3162 = vadd.xlane.f32.xlu0 %v3161
        %v3163 = vpop.xlane.xlu0 %3162
        %v3164 = vsel %vm493, %v3144, 0.0
        %3165 = vadd.xlane.f32.xlu0 %v3164
        %v3166 = vpop.xlane.xlu0 %3165
        %v3167 = vsel %vm493, %v3146, 0.0
        %3168 = vadd.xlane.f32.xlu0 %v3167
        %v3169 = vpop.xlane.xlu0 %3168
        %v3170 = vsel %vm493, %v3148, 0.0
        %3171 = vadd.xlane.f32.xlu0 %v3170
        %v3172 = vpop.xlane.xlu0 %3171
        %v3173 = vrcp.pop %v3151
        %v3174 = vrcp.pop %v3154
        %v3175 = vrcp.pop %v3157
        %v3176 = vrcp.pop %v3160
        %v3177 = vrcp.pop %v3163
        %v3178 = vrcp.pop %v3166
        %v3179 = vrcp.pop %v3169
        %v3180 = vrcp.pop %v3172
        %v3181 = vmul.f32 %v3134, %v3173
        %v3182 = vmul.f32 %v3136, %v3174
        %v3183 = vmul.f32 %v3138, %v3175
        %v3184 = vmul.f32 %v3140, %v3176
        %v3185 = vmul.f32 %v3142, %v3177
        %v3186 = vmul.f32 %v3144, %v3178
        %v3187 = vmul.f32 %v3146, %v3179
        %v3188 = vmul.f32 %v3148, %v3180
        %v3189 = vpack.c.bf16 %v3181, %v3181
        %v3190 = vpack.c.bf16 %v3182, %v3182
        %v3191 = vpack.c.bf16 %v3183, %v3183
        %v3192 = vpack.c.bf16 %v3184, %v3184
        %v3193 = vpack.c.bf16 %v3185, %v3185
        %v3194 = vpack.c.bf16 %v3186, %v3186
        %v3195 = vpack.c.bf16 %v3187, %v3187
        %v3196 = vpack.c.bf16 %v3188, %v3188
        %v3205 = vunpack.c.l.b16 %v3189
        %v3206 = vunpack.c.l.b16 %v3190
        %v3207 = vunpack.c.l.b16 %v3191
        %v3208 = vunpack.c.l.b16 %v3192
        %v3209 = vunpack.c.l.b16 %v3193
        %v3210 = vunpack.c.l.b16 %v3194
        %v3211 = vunpack.c.l.b16 %v3195
        %v3212 = vunpack.c.l.b16 %v3196
        %v3213 = vpack.c.b16 %v3206, %v3205
        %v3214 = vpack.c.b16 %v3208, %v3207
        %v3215 = vpack.c.b16 %v3210, %v3209
        %v3216 = vpack.c.b16 %v3212, %v3211
        %v3225 = vunpack.c.l.b16 %v3004
        %v3226 = vunpack.c.l.b16 %v3005
        %v3227 = vunpack.c.l.b16 %v3006
        %v3228 = vunpack.c.l.b16 %v3007
        %v3229 = vunpack.c.l.b16 %v3008
        %v3230 = vunpack.c.l.b16 %v3009
        %v3231 = vunpack.c.l.b16 %v3010
        %v3232 = vunpack.c.l.b16 %v3011
        %v3233 = vpack.c.b16 %v3226, %v3225
        %v3234 = vpack.c.b16 %v3228, %v3227
        %v3235 = vpack.c.b16 %v3230, %v3229
        %v3236 = vpack.c.b16 %v3232, %v3231
        %v3242 = vsel %vm493, %v3213, 0
        %v3245 = vsel %vm493, %v3214, 0
        %v3248 = vsel %vm493, %v3215, 0
        %v3251 = vsel %vm493, %v3216, 0
        %3253 = vmatpush.bf16.msra.mxu0 0
        %3254 = vmatpush.bf16.msra.mxu0 0
        %3255 = vmatpush.bf16.msra.mxu0 0
        %3256 = vmatpush.bf16.msra.mxu0 0
        %3257 = vmatpush.bf16.msra.mxu0 %v3236
        %3258 = vmatpush.bf16.msra.mxu0 %v3235
        %3259 = vmatpush.bf16.msra.mxu0 %v3234
        %3260 = vmatpush.bf16.msra.mxu0 %v3233
        %3261 = vmatmul.bf16.gmra.mxu0 %v3242
        %v3262 = vpop.f32.mrf.mxu0
        %v3263 = vadd.f32 0.0, %v3262
        %v3264 = vpop.f32.mrf.mxu0
        %v3265 = vadd.f32 0.0, %v3264
        %3266 = vmatmul.bf16.gmra.mxu0 %v3245
        %v3267 = vpop.f32.mrf.mxu0
        %v3268 = vadd.f32 0.0, %v3267
        %v3269 = vpop.f32.mrf.mxu0
        %v3270 = vadd.f32 0.0, %v3269
        %3271 = vmatmul.bf16.gmra.mxu0 %v3248
        %v3272 = vpop.f32.mrf.mxu0
        %v3273 = vadd.f32 0.0, %v3272
        %v3274 = vpop.f32.mrf.mxu0
        %v3275 = vadd.f32 0.0, %v3274
        %3276 = vmatmul.bf16.gmra.mxu0 %v3251
        %v3277 = vpop.f32.mrf.mxu0
        %v3278 = vadd.f32 0.0, %v3277
        %v3279 = vpop.f32.mrf.mxu0
        %v3280 = vadd.f32 0.0, %v3279
        %3281 = vdwg.mxu0
        %v3282 = vpack.c.bf16 %v3265, %v3263
        %v3283 = vpack.c.bf16 %v3270, %v3268
        %v3284 = vpack.c.bf16 %v3275, %v3273
        %v3285 = vpack.c.bf16 %v3280, %v3278
        %s3286 = scalar_lea.vmem [#allocation14], 32
        %v3287 = vld [vmem:[%s3286] sm:$0xf]
        %v3288 = vld [vmem:[%s3286 + $0x4] sm:$0xf]
        %v3289 = vld [vmem:[%s3286 + $0x8] sm:$0xf]
        %v3290 = vld [vmem:[%s3286 + $0xc] sm:$0xf]
        %v3291 = vld [vmem:[%s3286 + $0x10] sm:$0xf]
        %v3292 = vld [vmem:[%s3286 + $0x14] sm:$0xf]
        %v3293 = vld [vmem:[%s3286 + $0x18] sm:$0xf]
        %v3294 = vld [vmem:[%s3286 + $0x1c] sm:$0xf]
        %s3295 = scalar_lea.vmem %s7, 1
        %v3296 = vld [vmem:[%s3295] sm:$0x1]
        %v3298 = vperm.slane %v3296, 0
        %v3308 = vunpack.c.l.b16 %v3287
        %v3309 = vunpack.c.l.b16 %v3288
        %v3310 = vunpack.c.l.b16 %v3289
        %v3311 = vunpack.c.l.b16 %v3290
        %v3312 = vunpack.c.l.b16 %v3291
        %v3313 = vunpack.c.l.b16 %v3292
        %v3314 = vunpack.c.l.b16 %v3293
        %v3315 = vunpack.c.l.b16 %v3294
        %v3316 = vpack.c.b16 %v3309, %v3308
        %v3317 = vpack.c.b16 %v3311, %v3310
        %v3318 = vpack.c.b16 %v3313, %v3312
        %v3319 = vpack.c.b16 %v3315, %v3314
        %v3325 = vsel %vm493, %v3282, 0
        %v3328 = vsel %vm493, %v3283, 0
        %v3331 = vsel %vm493, %v3284, 0
        %v3334 = vsel %vm493, %v3285, 0
        %3336 = vmatpush.bf16.msra.mxu0 0
        %3337 = vmatpush.bf16.msra.mxu0 0
        %3338 = vmatpush.bf16.msra.mxu0 0
        %3339 = vmatpush.bf16.msra.mxu0 0
        %3340 = vmatpush.bf16.msra.mxu0 %v3319
        %3341 = vmatpush.bf16.msra.mxu0 %v3318
        %3342 = vmatpush.bf16.msra.mxu0 %v3317
        %3343 = vmatpush.bf16.msra.mxu0 %v3316
        %3344 = vmatmul.bf16.gmra.mxu0 %v3325
        %v3345 = vpop.f32.mrf.mxu0
        %v3346 = vadd.f32 %v3298, %v3345
        %v3347 = vpop.f32.mrf.mxu0
        %v3348 = vadd.f32 %v3298, %v3347
        %3349 = vmatmul.bf16.gmra.mxu0 %v3328
        %v3350 = vpop.f32.mrf.mxu0
        %v3351 = vadd.f32 %v3298, %v3350
        %v3352 = vpop.f32.mrf.mxu0
        %v3353 = vadd.f32 %v3298, %v3352
        %3354 = vmatmul.bf16.gmra.mxu0 %v3331
        %v3355 = vpop.f32.mrf.mxu0
        %v3356 = vadd.f32 %v3298, %v3355
        %v3357 = vpop.f32.mrf.mxu0
        %v3358 = vadd.f32 %v3298, %v3357
        %3359 = vmatmul.bf16.gmra.mxu0 %v3334
        %v3360 = vpop.f32.mrf.mxu0
        %v3361 = vadd.f32 %v3298, %v3360
        %v3362 = vpop.f32.mrf.mxu0
        %v3363 = vadd.f32 %v3298, %v3362
        %3364 = vdwg.mxu0
        %s3365 = sld [smem:[#allocation3 + $0x80]]
        %v3366 = vstv %s3365
        %v3367 = vmul.f32 %v3366, %v2866
        %v3368 = vmul.f32 %v3366, %v2867
        %v3369 = vmul.f32 %v3366, %v2868
        %v3370 = vmul.f32 %v3366, %v2869
        %v3371 = vmul.f32 %v3366, %v2870
        %v3372 = vmul.f32 %v3366, %v2871
        %v3373 = vmul.f32 %v3366, %v2872
        %v3374 = vmul.f32 %v3366, %v2873
        %s3375 = sld [smem:[#allocation3 + $0x81]]
        %v3376 = vstv %s3375
        %v3377 = vmul.f32 %v3376, %v3346
        %v3378 = vmul.f32 %v3376, %v3348
        %v3379 = vmul.f32 %v3376, %v3351
        %v3380 = vmul.f32 %v3376, %v3353
        %v3381 = vmul.f32 %v3376, %v3356
        %v3382 = vmul.f32 %v3376, %v3358
        %v3383 = vmul.f32 %v3376, %v3361
        %v3384 = vmul.f32 %v3376, %v3363
        %v3385 = vadd.f32 %v3367, %v3377
        %v3386 = vadd.f32 %v3368, %v3378
        %v3387 = vadd.f32 %v3369, %v3379
        %v3388 = vadd.f32 %v3370, %v3380
        %v3389 = vadd.f32 %v3371, %v3381
        %v3390 = vadd.f32 %v3372, %v3382
        %v3391 = vadd.f32 %v3373, %v3383
        %v3392 = vadd.f32 %v3374, %v3384
        %3401 = vrot.lane.b32.xlu0 %v2834, 64
        %v3402 = vpop.permute.xlu0 %3401
        %3403 = vrot.lane.b32.xlu0 %v2836, 64
        %v3404 = vpop.permute.xlu0 %3403
        %3405 = vrot.lane.b32.xlu0 %v2839, 64
        %v3406 = vpop.permute.xlu0 %3405
        %3407 = vrot.lane.b32.xlu0 %v2841, 64
        %v3408 = vpop.permute.xlu0 %3407
        %3409 = vrot.lane.b32.xlu0 %v2844, 64
        %v3410 = vpop.permute.xlu0 %3409
        %3411 = vrot.lane.b32.xlu0 %v2846, 64
        %v3412 = vpop.permute.xlu0 %3411
        %3413 = vrot.lane.b32.xlu0 %v2849, 64
        %v3414 = vpop.permute.xlu0 %3413
        %3415 = vrot.lane.b32.xlu0 %v2851, 64
        %v3416 = vpop.permute.xlu0 %3415
        %v3425 = vadd.f32 %v3385, %v3402
        %v3426 = vadd.f32 %v3386, %v3404
        %v3427 = vadd.f32 %v3387, %v3406
        %v3428 = vadd.f32 %v3388, %v3408
        %v3429 = vadd.f32 %v3389, %v3410
        %v3430 = vadd.f32 %v3390, %v3412
        %v3431 = vadd.f32 %v3391, %v3414
        %v3432 = vadd.f32 %v3392, %v3416
        %3433 = vst.msk [vmem:[%s529 + $0x1] sm:$0xff] %vm493, %v3425
        %3434 = vst.msk [vmem:[%s529 + $0x11] sm:$0xff] %vm493, %v3426
        %3435 = vst.msk [vmem:[%s529 + $0x21] sm:$0xff] %vm493, %v3427
        %3436 = vst.msk [vmem:[%s529 + $0x31] sm:$0xff] %vm493, %v3428
        %3437 = vst.msk [vmem:[%s529 + $0x41] sm:$0xff] %vm493, %v3429
        %3438 = vst.msk [vmem:[%s529 + $0x51] sm:$0xff] %vm493, %v3430
        %3439 = vst.msk [vmem:[%s529 + $0x61] sm:$0xff] %vm493, %v3431
        %3440 = vst.msk [vmem:[%s529 + $0x71] sm:$0xff] %vm493, %v3432
        %v3441 = vld [vmem:[#allocation2] sm:$0xff]
        %v3442 = vld [vmem:[#allocation2 + $0x10] sm:$0xff]
        %v3443 = vld [vmem:[#allocation2 + $0x20] sm:$0xff]
        %v3444 = vld [vmem:[#allocation2 + $0x30] sm:$0xff]
        %v3445 = vld [vmem:[#allocation2 + $0x40] sm:$0xff]
        %v3446 = vld [vmem:[#allocation2 + $0x50] sm:$0xff]
        %v3447 = vld [vmem:[#allocation2 + $0x60] sm:$0xff]
        %v3448 = vld [vmem:[#allocation2 + $0x70] sm:$0xff]
        %v3449 = vpack.c.bf16 %v3441, %v3441
        %v3450 = vpack.c.bf16 %v3442, %v3442
        %v3451 = vpack.c.bf16 %v3443, %v3443
        %v3452 = vpack.c.bf16 %v3444, %v3444
        %v3453 = vpack.c.bf16 %v3445, %v3445
        %v3454 = vpack.c.bf16 %v3446, %v3446
        %v3455 = vpack.c.bf16 %v3447, %v3447
        %v3456 = vpack.c.bf16 %v3448, %v3448
        %v3457 = vld [vmem:[#allocation2 + $0x1] sm:$0xff]
        %v3458 = vld [vmem:[#allocation2 + $0x11] sm:$0xff]
        %v3459 = vld [vmem:[#allocation2 + $0x21] sm:$0xff]
        %v3460 = vld [vmem:[#allocation2 + $0x31] sm:$0xff]
        %v3461 = vld [vmem:[#allocation2 + $0x41] sm:$0xff]
        %v3462 = vld [vmem:[#allocation2 + $0x51] sm:$0xff]
        %v3463 = vld [vmem:[#allocation2 + $0x61] sm:$0xff]
        %v3464 = vld [vmem:[#allocation2 + $0x71] sm:$0xff]
        %v3465 = vpack.c.bf16 %v3457, %v3457
        %v3466 = vpack.c.bf16 %v3458, %v3458
        %v3467 = vpack.c.bf16 %v3459, %v3459
        %v3468 = vpack.c.bf16 %v3460, %v3460
        %v3469 = vpack.c.bf16 %v3461, %v3461
        %v3470 = vpack.c.bf16 %v3462, %v3462
        %v3471 = vpack.c.bf16 %v3463, %v3463
        %v3472 = vpack.c.bf16 %v3464, %v3464
        %v3473 = vld [vmem:[#allocation2 + $0x2] sm:$0xff]
        %v3474 = vld [vmem:[#allocation2 + $0x12] sm:$0xff]
        %v3475 = vld [vmem:[#allocation2 + $0x22] sm:$0xff]
        %v3476 = vld [vmem:[#allocation2 + $0x32] sm:$0xff]
        %v3477 = vld [vmem:[#allocation2 + $0x42] sm:$0xff]
        %v3478 = vld [vmem:[#allocation2 + $0x52] sm:$0xff]
        %v3479 = vld [vmem:[#allocation2 + $0x62] sm:$0xff]
        %v3480 = vld [vmem:[#allocation2 + $0x72] sm:$0xff]
        %v3481 = vpack.c.bf16 %v3473, %v3473
        %v3482 = vpack.c.bf16 %v3474, %v3474
        %v3483 = vpack.c.bf16 %v3475, %v3475
        %v3484 = vpack.c.bf16 %v3476, %v3476
        %v3485 = vpack.c.bf16 %v3477, %v3477
        %v3486 = vpack.c.bf16 %v3478, %v3478
        %v3487 = vpack.c.bf16 %v3479, %v3479
        %v3488 = vpack.c.bf16 %v3480, %v3480
        %v3489 = vld [vmem:[%s529] sm:$0xff]
        %v3490 = vld [vmem:[%s529 + $0x10] sm:$0xff]
        %v3491 = vld [vmem:[%s529 + $0x20] sm:$0xff]
        %v3492 = vld [vmem:[%s529 + $0x30] sm:$0xff]
        %v3493 = vld [vmem:[%s529 + $0x40] sm:$0xff]
        %v3494 = vld [vmem:[%s529 + $0x50] sm:$0xff]
        %v3495 = vld [vmem:[%s529 + $0x60] sm:$0xff]
        %v3496 = vld [vmem:[%s529 + $0x70] sm:$0xff]
        %v3497 = vpack.c.bf16 %v3489, %v3489
        %v3498 = vpack.c.bf16 %v3490, %v3490
        %v3499 = vpack.c.bf16 %v3491, %v3491
        %v3500 = vpack.c.bf16 %v3492, %v3492
        %v3501 = vpack.c.bf16 %v3493, %v3493
        %v3502 = vpack.c.bf16 %v3494, %v3494
        %v3503 = vpack.c.bf16 %v3495, %v3495
        %v3504 = vpack.c.bf16 %v3496, %v3496
        %v3505 = vld [vmem:[%s529 + $0x1] sm:$0xff]
        %v3506 = vld [vmem:[%s529 + $0x11] sm:$0xff]
        %v3507 = vld [vmem:[%s529 + $0x21] sm:$0xff]
        %v3508 = vld [vmem:[%s529 + $0x31] sm:$0xff]
        %v3509 = vld [vmem:[%s529 + $0x41] sm:$0xff]
        %v3510 = vld [vmem:[%s529 + $0x51] sm:$0xff]
        %v3511 = vld [vmem:[%s529 + $0x61] sm:$0xff]
        %v3512 = vld [vmem:[%s529 + $0x71] sm:$0xff]
        %v3513 = vpack.c.bf16 %v3505, %v3505
        %v3514 = vpack.c.bf16 %v3506, %v3506
        %v3515 = vpack.c.bf16 %v3507, %v3507
        %v3516 = vpack.c.bf16 %v3508, %v3508
        %v3517 = vpack.c.bf16 %v3509, %v3509
        %v3518 = vpack.c.bf16 %v3510, %v3510
        %v3519 = vpack.c.bf16 %v3511, %v3511
        %v3520 = vpack.c.bf16 %v3512, %v3512
        %v3521 = vld [vmem:[%s529 + $0x2] sm:$0xff]
        %v3522 = vld [vmem:[%s529 + $0x12] sm:$0xff]
        %v3523 = vld [vmem:[%s529 + $0x22] sm:$0xff]
        %v3524 = vld [vmem:[%s529 + $0x32] sm:$0xff]
        %v3525 = vld [vmem:[%s529 + $0x42] sm:$0xff]
        %v3526 = vld [vmem:[%s529 + $0x52] sm:$0xff]
        %v3527 = vld [vmem:[%s529 + $0x62] sm:$0xff]
        %v3528 = vld [vmem:[%s529 + $0x72] sm:$0xff]
        %v3529 = vpack.c.bf16 %v3521, %v3521
        %v3530 = vpack.c.bf16 %v3522, %v3522
        %v3531 = vpack.c.bf16 %v3523, %v3523
        %v3532 = vpack.c.bf16 %v3524, %v3524
        %v3533 = vpack.c.bf16 %v3525, %v3525
        %v3534 = vpack.c.bf16 %v3526, %v3526
        %v3535 = vpack.c.bf16 %v3527, %v3527
        %v3536 = vpack.c.bf16 %v3528, %v3528
        %v3537 = vld [vmem:[%s634] sm:$0xff]
        %v3538 = vld [vmem:[%s634 + $0x10] sm:$0xff]
        %v3539 = vld [vmem:[%s634 + $0x20] sm:$0xff]
        %v3540 = vld [vmem:[%s634 + $0x30] sm:$0xff]
        %v3541 = vld [vmem:[%s634 + $0x40] sm:$0xff]
        %v3542 = vld [vmem:[%s634 + $0x50] sm:$0xff]
        %v3543 = vld [vmem:[%s634 + $0x60] sm:$0xff]
        %v3544 = vld [vmem:[%s634 + $0x70] sm:$0xff]
        %v3545 = vpack.c.bf16 %v3537, %v3537
        %v3546 = vpack.c.bf16 %v3538, %v3538
        %v3547 = vpack.c.bf16 %v3539, %v3539
        %v3548 = vpack.c.bf16 %v3540, %v3540
        %v3549 = vpack.c.bf16 %v3541, %v3541
        %v3550 = vpack.c.bf16 %v3542, %v3542
        %v3551 = vpack.c.bf16 %v3543, %v3543
        %v3552 = vpack.c.bf16 %v3544, %v3544
        %v3553 = vld [vmem:[%s634 + $0x1] sm:$0xff]
        %v3554 = vld [vmem:[%s634 + $0x11] sm:$0xff]
        %v3555 = vld [vmem:[%s634 + $0x21] sm:$0xff]
        %v3556 = vld [vmem:[%s634 + $0x31] sm:$0xff]
        %v3557 = vld [vmem:[%s634 + $0x41] sm:$0xff]
        %v3558 = vld [vmem:[%s634 + $0x51] sm:$0xff]
        %v3559 = vld [vmem:[%s634 + $0x61] sm:$0xff]
        %v3560 = vld [vmem:[%s634 + $0x71] sm:$0xff]
        %v3561 = vpack.c.bf16 %v3553, %v3553
        %v3562 = vpack.c.bf16 %v3554, %v3554
        %v3563 = vpack.c.bf16 %v3555, %v3555
        %v3564 = vpack.c.bf16 %v3556, %v3556
        %v3565 = vpack.c.bf16 %v3557, %v3557
        %v3566 = vpack.c.bf16 %v3558, %v3558
        %v3567 = vpack.c.bf16 %v3559, %v3559
        %v3568 = vpack.c.bf16 %v3560, %v3560
        %v3569 = vld [vmem:[%s634 + $0x2] sm:$0xff]
        %v3570 = vld [vmem:[%s634 + $0x12] sm:$0xff]
        %v3571 = vld [vmem:[%s634 + $0x22] sm:$0xff]
        %v3572 = vld [vmem:[%s634 + $0x32] sm:$0xff]
        %v3573 = vld [vmem:[%s634 + $0x42] sm:$0xff]
        %v3574 = vld [vmem:[%s634 + $0x52] sm:$0xff]
        %v3575 = vld [vmem:[%s634 + $0x62] sm:$0xff]
        %v3576 = vld [vmem:[%s634 + $0x72] sm:$0xff]
        %v3577 = vpack.c.bf16 %v3569, %v3569
        %v3578 = vpack.c.bf16 %v3570, %v3570
        %v3579 = vpack.c.bf16 %v3571, %v3571
        %v3580 = vpack.c.bf16 %v3572, %v3572
        %v3581 = vpack.c.bf16 %v3573, %v3573
        %v3582 = vpack.c.bf16 %v3574, %v3574
        %v3583 = vpack.c.bf16 %v3575, %v3575
        %v3584 = vpack.c.bf16 %v3576, %v3576
        %v3593 = vunpack.c.l.b16 %v3449
        %v3594 = vunpack.c.l.b16 %v3450
        %v3595 = vunpack.c.l.b16 %v3451
        %v3596 = vunpack.c.l.b16 %v3452
        %v3597 = vunpack.c.l.b16 %v3453
        %v3598 = vunpack.c.l.b16 %v3454
        %v3599 = vunpack.c.l.b16 %v3455
        %v3600 = vunpack.c.l.b16 %v3456
        %v3601 = vpack.c.b16 %v3594, %v3593
        %v3602 = vpack.c.b16 %v3596, %v3595
        %v3603 = vpack.c.b16 %v3598, %v3597
        %v3604 = vpack.c.b16 %v3600, %v3599
        %v3613 = vunpack.c.l.b16 %v3465
        %v3614 = vunpack.c.l.b16 %v3466
        %v3615 = vunpack.c.l.b16 %v3467
        %v3616 = vunpack.c.l.b16 %v3468
        %v3617 = vunpack.c.l.b16 %v3469
        %v3618 = vunpack.c.l.b16 %v3470
        %v3619 = vunpack.c.l.b16 %v3471
        %v3620 = vunpack.c.l.b16 %v3472
        %v3621 = vpack.c.b16 %v3614, %v3613
        %v3622 = vpack.c.b16 %v3616, %v3615
        %v3623 = vpack.c.b16 %v3618, %v3617
        %v3624 = vpack.c.b16 %v3620, %v3619
        %3625 = vrot.lane.b32.xlu0 %v3621, 64
        %v3626 = vpop.permute.xlu0 %3625
        %3627 = vrot.lane.b32.xlu0 %v3622, 64
        %v3628 = vpop.permute.xlu0 %3627
        %3629 = vrot.lane.b32.xlu0 %v3623, 64
        %v3630 = vpop.permute.xlu0 %3629
        %3631 = vrot.lane.b32.xlu0 %v3624, 64
        %v3632 = vpop.permute.xlu0 %3631
        %v3641 = vunpack.c.l.b16 %v3481
        %v3642 = vunpack.c.l.b16 %v3482
        %v3643 = vunpack.c.l.b16 %v3483
        %v3644 = vunpack.c.l.b16 %v3484
        %v3645 = vunpack.c.l.b16 %v3485
        %v3646 = vunpack.c.l.b16 %v3486
        %v3647 = vunpack.c.l.b16 %v3487
        %v3648 = vunpack.c.l.b16 %v3488
        %v3649 = vpack.c.b16 %v3642, %v3641
        %v3650 = vpack.c.b16 %v3644, %v3643
        %v3651 = vpack.c.b16 %v3646, %v3645
        %v3652 = vpack.c.b16 %v3648, %v3647
        %v3661 = vunpack.c.l.b16 %v3497
        %v3662 = vunpack.c.l.b16 %v3498
        %v3663 = vunpack.c.l.b16 %v3499
        %v3664 = vunpack.c.l.b16 %v3500
        %v3665 = vunpack.c.l.b16 %v3501
        %v3666 = vunpack.c.l.b16 %v3502
        %v3667 = vunpack.c.l.b16 %v3503
        %v3668 = vunpack.c.l.b16 %v3504
        %v3669 = vpack.c.b16 %v3662, %v3661
        %v3670 = vpack.c.b16 %v3664, %v3663
        %v3671 = vpack.c.b16 %v3666, %v3665
        %v3672 = vpack.c.b16 %v3668, %v3667
        %3673 = vrot.lane.b32.xlu0 %v3669, 64
        %v3674 = vpop.permute.xlu0 %3673
        %3675 = vrot.lane.b32.xlu0 %v3670, 64
        %v3676 = vpop.permute.xlu0 %3675
        %3677 = vrot.lane.b32.xlu0 %v3671, 64
        %v3678 = vpop.permute.xlu0 %3677
        %3679 = vrot.lane.b32.xlu0 %v3672, 64
        %v3680 = vpop.permute.xlu0 %3679
        %v3689 = vunpack.c.l.b16 %v3513
        %v3690 = vunpack.c.l.b16 %v3514
        %v3691 = vunpack.c.l.b16 %v3515
        %v3692 = vunpack.c.l.b16 %v3516
        %v3693 = vunpack.c.l.b16 %v3517
        %v3694 = vunpack.c.l.b16 %v3518
        %v3695 = vunpack.c.l.b16 %v3519
        %v3696 = vunpack.c.l.b16 %v3520
        %v3697 = vpack.c.b16 %v3690, %v3689
        %v3698 = vpack.c.b16 %v3692, %v3691
        %v3699 = vpack.c.b16 %v3694, %v3693
        %v3700 = vpack.c.b16 %v3696, %v3695
        %v3709 = vunpack.c.l.b16 %v3529
        %v3710 = vunpack.c.l.b16 %v3530
        %v3711 = vunpack.c.l.b16 %v3531
        %v3712 = vunpack.c.l.b16 %v3532
        %v3713 = vunpack.c.l.b16 %v3533
        %v3714 = vunpack.c.l.b16 %v3534
        %v3715 = vunpack.c.l.b16 %v3535
        %v3716 = vunpack.c.l.b16 %v3536
        %v3717 = vpack.c.b16 %v3710, %v3709
        %v3718 = vpack.c.b16 %v3712, %v3711
        %v3719 = vpack.c.b16 %v3714, %v3713
        %v3720 = vpack.c.b16 %v3716, %v3715
        %3721 = vrot.lane.b32.xlu0 %v3717, 64
        %v3722 = vpop.permute.xlu0 %3721
        %3723 = vrot.lane.b32.xlu0 %v3718, 64
        %v3724 = vpop.permute.xlu0 %3723
        %3725 = vrot.lane.b32.xlu0 %v3719, 64
        %v3726 = vpop.permute.xlu0 %3725
        %3727 = vrot.lane.b32.xlu0 %v3720, 64
        %v3728 = vpop.permute.xlu0 %3727
        %v3737 = vunpack.c.l.b16 %v3545
        %v3738 = vunpack.c.l.b16 %v3546
        %v3739 = vunpack.c.l.b16 %v3547
        %v3740 = vunpack.c.l.b16 %v3548
        %v3741 = vunpack.c.l.b16 %v3549
        %v3742 = vunpack.c.l.b16 %v3550
        %v3743 = vunpack.c.l.b16 %v3551
        %v3744 = vunpack.c.l.b16 %v3552
        %v3745 = vpack.c.b16 %v3738, %v3737
        %v3746 = vpack.c.b16 %v3740, %v3739
        %v3747 = vpack.c.b16 %v3742, %v3741
        %v3748 = vpack.c.b16 %v3744, %v3743
        %v3757 = vunpack.c.l.b16 %v3561
        %v3758 = vunpack.c.l.b16 %v3562
        %v3759 = vunpack.c.l.b16 %v3563
        %v3760 = vunpack.c.l.b16 %v3564
        %v3761 = vunpack.c.l.b16 %v3565
        %v3762 = vunpack.c.l.b16 %v3566
        %v3763 = vunpack.c.l.b16 %v3567
        %v3764 = vunpack.c.l.b16 %v3568
        %v3765 = vpack.c.b16 %v3758, %v3757
        %v3766 = vpack.c.b16 %v3760, %v3759
        %v3767 = vpack.c.b16 %v3762, %v3761
        %v3768 = vpack.c.b16 %v3764, %v3763
        %3769 = vrot.lane.b32.xlu0 %v3765, 64
        %v3770 = vpop.permute.xlu0 %3769
        %3771 = vrot.lane.b32.xlu0 %v3766, 64
        %v3772 = vpop.permute.xlu0 %3771
        %3773 = vrot.lane.b32.xlu0 %v3767, 64
        %v3774 = vpop.permute.xlu0 %3773
        %3775 = vrot.lane.b32.xlu0 %v3768, 64
        %v3776 = vpop.permute.xlu0 %3775
        %v3785 = vunpack.c.l.b16 %v3577
        %v3786 = vunpack.c.l.b16 %v3578
        %v3787 = vunpack.c.l.b16 %v3579
        %v3788 = vunpack.c.l.b16 %v3580
        %v3789 = vunpack.c.l.b16 %v3581
        %v3790 = vunpack.c.l.b16 %v3582
        %v3791 = vunpack.c.l.b16 %v3583
        %v3792 = vunpack.c.l.b16 %v3584
        %v3793 = vpack.c.b16 %v3786, %v3785
        %v3794 = vpack.c.b16 %v3788, %v3787
        %v3795 = vpack.c.b16 %v3790, %v3789
        %v3796 = vpack.c.b16 %v3792, %v3791
        %v3799 = vsel %vm493, %v3601, %v3626
        %v3803 = vsel %vm493, %v3602, %v3628
        %v3807 = vsel %vm493, %v3603, %v3630
        %v3811 = vsel %vm493, %v3604, %v3632
        %v3815 = vsel %vm493, %v3649, %v3674
        %v3819 = vsel %vm493, %v3650, %v3676
        %v3823 = vsel %vm493, %v3651, %v3678
        %v3827 = vsel %vm493, %v3652, %v3680
        %v3831 = vsel %vm493, %v3697, %v3722
        %v3835 = vsel %vm493, %v3698, %v3724
        %v3839 = vsel %vm493, %v3699, %v3726
        %v3843 = vsel %vm493, %v3700, %v3728
        %v3847 = vsel %vm493, %v3745, %v3770
        %v3851 = vsel %vm493, %v3746, %v3772
        %v3855 = vsel %vm493, %v3747, %v3774
        %v3859 = vsel %vm493, %v3748, %v3776
        %s3861 = scalar_lea.vmem [#allocation8], 576
        %v3862 = vld [vmem:[%s3861] sm:$0xf]
        %v3863 = vld [vmem:[%s3861 + $0x4] sm:$0xf]
        %v3864 = vld [vmem:[%s3861 + $0x8] sm:$0xf]
        %v3865 = vld [vmem:[%s3861 + $0xc] sm:$0xf]
        %v3866 = vld [vmem:[%s3861 + $0x10] sm:$0xf]
        %v3867 = vld [vmem:[%s3861 + $0x14] sm:$0xf]
        %v3868 = vld [vmem:[%s3861 + $0x18] sm:$0xf]
        %v3869 = vld [vmem:[%s3861 + $0x1c] sm:$0xf]
        %v3870 = vld [vmem:[%s3861 + $0x20] sm:$0xf]
        %v3871 = vld [vmem:[%s3861 + $0x24] sm:$0xf]
        %v3872 = vld [vmem:[%s3861 + $0x28] sm:$0xf]
        %v3873 = vld [vmem:[%s3861 + $0x2c] sm:$0xf]
        %v3874 = vld [vmem:[%s3861 + $0x30] sm:$0xf]
        %v3875 = vld [vmem:[%s3861 + $0x34] sm:$0xf]
        %v3876 = vld [vmem:[%s3861 + $0x38] sm:$0xf]
        %v3877 = vld [vmem:[%s3861 + $0x3c] sm:$0xf]
        %v3878 = vld [vmem:[%s3861 + $0x40] sm:$0xf]
        %v3879 = vld [vmem:[%s3861 + $0x44] sm:$0xf]
        %v3880 = vld [vmem:[%s3861 + $0x48] sm:$0xf]
        %v3881 = vld [vmem:[%s3861 + $0x4c] sm:$0xf]
        %v3882 = vld [vmem:[%s3861 + $0x50] sm:$0xf]
        %v3883 = vld [vmem:[%s3861 + $0x54] sm:$0xf]
        %v3884 = vld [vmem:[%s3861 + $0x58] sm:$0xf]
        %v3885 = vld [vmem:[%s3861 + $0x5c] sm:$0xf]
        %v3886 = vld [vmem:[%s3861 + $0x60] sm:$0xf]
        %v3887 = vld [vmem:[%s3861 + $0x64] sm:$0xf]
        %v3888 = vld [vmem:[%s3861 + $0x68] sm:$0xf]
        %v3889 = vld [vmem:[%s3861 + $0x6c] sm:$0xf]
        %v3890 = vld [vmem:[%s3861 + $0x70] sm:$0xf]
        %v3891 = vld [vmem:[%s3861 + $0x74] sm:$0xf]
        %v3892 = vld [vmem:[%s3861 + $0x78] sm:$0xf]
        %v3893 = vld [vmem:[%s3861 + $0x7c] sm:$0xf]
        %v3894 = vld [vmem:[%s3861 + $0x80] sm:$0xf]
        %v3895 = vld [vmem:[%s3861 + $0x84] sm:$0xf]
        %v3896 = vld [vmem:[%s3861 + $0x88] sm:$0xf]
        %v3897 = vld [vmem:[%s3861 + $0x8c] sm:$0xf]
        %v3898 = vld [vmem:[%s3861 + $0x90] sm:$0xf]
        %v3899 = vld [vmem:[%s3861 + $0x94] sm:$0xf]
        %v3900 = vld [vmem:[%s3861 + $0x98] sm:$0xf]
        %v3901 = vld [vmem:[%s3861 + $0x9c] sm:$0xf]
        %v3902 = vld [vmem:[%s3861 + $0xa0] sm:$0xf]
        %v3903 = vld [vmem:[%s3861 + $0xa4] sm:$0xf]
        %v3904 = vld [vmem:[%s3861 + $0xa8] sm:$0xf]
        %v3905 = vld [vmem:[%s3861 + $0xac] sm:$0xf]
        %v3906 = vld [vmem:[%s3861 + $0xb0] sm:$0xf]
        %v3907 = vld [vmem:[%s3861 + $0xb4] sm:$0xf]
        %v3908 = vld [vmem:[%s3861 + $0xb8] sm:$0xf]
        %v3909 = vld [vmem:[%s3861 + $0xbc] sm:$0xf]
        %v3910 = vld [vmem:[%s3861 + $0xc0] sm:$0xf]
        %v3911 = vld [vmem:[%s3861 + $0xc4] sm:$0xf]
        %v3912 = vld [vmem:[%s3861 + $0xc8] sm:$0xf]
        %v3913 = vld [vmem:[%s3861 + $0xcc] sm:$0xf]
        %v3914 = vld [vmem:[%s3861 + $0xd0] sm:$0xf]
        %v3915 = vld [vmem:[%s3861 + $0xd4] sm:$0xf]
        %v3916 = vld [vmem:[%s3861 + $0xd8] sm:$0xf]
        %v3917 = vld [vmem:[%s3861 + $0xdc] sm:$0xf]
        %v3918 = vld [vmem:[%s3861 + $0xe0] sm:$0xf]
        %v3919 = vld [vmem:[%s3861 + $0xe4] sm:$0xf]
        %v3920 = vld [vmem:[%s3861 + $0xe8] sm:$0xf]
        %v3921 = vld [vmem:[%s3861 + $0xec] sm:$0xf]
        %v3922 = vld [vmem:[%s3861 + $0xf0] sm:$0xf]
        %v3923 = vld [vmem:[%s3861 + $0xf4] sm:$0xf]
        %v3924 = vld [vmem:[%s3861 + $0xf8] sm:$0xf]
        %v3925 = vld [vmem:[%s3861 + $0xfc] sm:$0xf]
        %v3926 = vld [vmem:[%s3861 + $0x100] sm:$0xf]
        %v3927 = vld [vmem:[%s3861 + $0x104] sm:$0xf]
        %v3928 = vld [vmem:[%s3861 + $0x108] sm:$0xf]
        %v3929 = vld [vmem:[%s3861 + $0x10c] sm:$0xf]
        %v3930 = vld [vmem:[%s3861 + $0x110] sm:$0xf]
        %v3931 = vld [vmem:[%s3861 + $0x114] sm:$0xf]
        %v3932 = vld [vmem:[%s3861 + $0x118] sm:$0xf]
        %v3933 = vld [vmem:[%s3861 + $0x11c] sm:$0xf]
        %v4006 = vunpack.c.l.b16 %v3862
        %v4007 = vunpack.c.l.b16 %v3863
        %v4008 = vunpack.c.l.b16 %v3864
        %v4009 = vunpack.c.l.b16 %v3865
        %v4010 = vunpack.c.l.b16 %v3866
        %v4011 = vunpack.c.l.b16 %v3867
        %v4012 = vunpack.c.l.b16 %v3868
        %v4013 = vunpack.c.l.b16 %v3869
        %v4014 = vunpack.c.l.b16 %v3870
        %v4015 = vunpack.c.l.b16 %v3871
        %v4016 = vunpack.c.l.b16 %v3872
        %v4017 = vunpack.c.l.b16 %v3873
        %v4018 = vunpack.c.l.b16 %v3874
        %v4019 = vunpack.c.l.b16 %v3875
        %v4020 = vunpack.c.l.b16 %v3876
        %v4021 = vunpack.c.l.b16 %v3877
        %v4022 = vunpack.c.l.b16 %v3878
        %v4023 = vunpack.c.l.b16 %v3879
        %v4024 = vunpack.c.l.b16 %v3880
        %v4025 = vunpack.c.l.b16 %v3881
        %v4026 = vunpack.c.l.b16 %v3882
        %v4027 = vunpack.c.l.b16 %v3883
        %v4028 = vunpack.c.l.b16 %v3884
        %v4029 = vunpack.c.l.b16 %v3885
        %v4030 = vunpack.c.l.b16 %v3886
        %v4031 = vunpack.c.l.b16 %v3887
        %v4032 = vunpack.c.l.b16 %v3888
        %v4033 = vunpack.c.l.b16 %v3889
        %v4034 = vunpack.c.l.b16 %v3890
        %v4035 = vunpack.c.l.b16 %v3891
        %v4036 = vunpack.c.l.b16 %v3892
        %v4037 = vunpack.c.l.b16 %v3893
        %v4038 = vunpack.c.l.b16 %v3894
        %v4039 = vunpack.c.l.b16 %v3895
        %v4040 = vunpack.c.l.b16 %v3896
        %v4041 = vunpack.c.l.b16 %v3897
        %v4042 = vunpack.c.l.b16 %v3898
        %v4043 = vunpack.c.l.b16 %v3899
        %v4044 = vunpack.c.l.b16 %v3900
        %v4045 = vunpack.c.l.b16 %v3901
        %v4046 = vunpack.c.l.b16 %v3902
        %v4047 = vunpack.c.l.b16 %v3903
        %v4048 = vunpack.c.l.b16 %v3904
        %v4049 = vunpack.c.l.b16 %v3905
        %v4050 = vunpack.c.l.b16 %v3906
        %v4051 = vunpack.c.l.b16 %v3907
        %v4052 = vunpack.c.l.b16 %v3908
        %v4053 = vunpack.c.l.b16 %v3909
        %v4054 = vunpack.c.l.b16 %v3910
        %v4055 = vunpack.c.l.b16 %v3911
        %v4056 = vunpack.c.l.b16 %v3912
        %v4057 = vunpack.c.l.b16 %v3913
        %v4058 = vunpack.c.l.b16 %v3914
        %v4059 = vunpack.c.l.b16 %v3915
        %v4060 = vunpack.c.l.b16 %v3916
        %v4061 = vunpack.c.l.b16 %v3917
        %v4062 = vunpack.c.l.b16 %v3918
        %v4063 = vunpack.c.l.b16 %v3919
        %v4064 = vunpack.c.l.b16 %v3920
        %v4065 = vunpack.c.l.b16 %v3921
        %v4066 = vunpack.c.l.b16 %v3922
        %v4067 = vunpack.c.l.b16 %v3923
        %v4068 = vunpack.c.l.b16 %v3924
        %v4069 = vunpack.c.l.b16 %v3925
        %v4070 = vunpack.c.l.b16 %v3926
        %v4071 = vunpack.c.l.b16 %v3927
        %v4072 = vunpack.c.l.b16 %v3928
        %v4073 = vunpack.c.l.b16 %v3929
        %v4074 = vunpack.c.l.b16 %v3930
        %v4075 = vunpack.c.l.b16 %v3931
        %v4076 = vunpack.c.l.b16 %v3932
        %v4077 = vunpack.c.l.b16 %v3933
        %v4078 = vpack.c.b16 %v4007, %v4006
        %v4079 = vpack.c.b16 %v4009, %v4008
        %v4080 = vpack.c.b16 %v4011, %v4010
        %v4081 = vpack.c.b16 %v4013, %v4012
        %v4082 = vpack.c.b16 %v4015, %v4014
        %v4083 = vpack.c.b16 %v4017, %v4016
        %v4084 = vpack.c.b16 %v4019, %v4018
        %v4085 = vpack.c.b16 %v4021, %v4020
        %v4086 = vpack.c.b16 %v4023, %v4022
        %v4087 = vpack.c.b16 %v4025, %v4024
        %v4088 = vpack.c.b16 %v4027, %v4026
        %v4089 = vpack.c.b16 %v4029, %v4028
        %v4090 = vpack.c.b16 %v4031, %v4030
        %v4091 = vpack.c.b16 %v4033, %v4032
        %v4092 = vpack.c.b16 %v4035, %v4034
        %v4093 = vpack.c.b16 %v4037, %v4036
        %v4094 = vpack.c.b16 %v4039, %v4038
        %v4095 = vpack.c.b16 %v4041, %v4040
        %v4096 = vpack.c.b16 %v4043, %v4042
        %v4097 = vpack.c.b16 %v4045, %v4044
        %v4098 = vpack.c.b16 %v4047, %v4046
        %v4099 = vpack.c.b16 %v4049, %v4048
        %v4100 = vpack.c.b16 %v4051, %v4050
        %v4101 = vpack.c.b16 %v4053, %v4052
        %v4102 = vpack.c.b16 %v4055, %v4054
        %v4103 = vpack.c.b16 %v4057, %v4056
        %v4104 = vpack.c.b16 %v4059, %v4058
        %v4105 = vpack.c.b16 %v4061, %v4060
        %v4106 = vpack.c.b16 %v4063, %v4062
        %v4107 = vpack.c.b16 %v4065, %v4064
        %v4108 = vpack.c.b16 %v4067, %v4066
        %v4109 = vpack.c.b16 %v4069, %v4068
        %v4110 = vpack.c.b16 %v4071, %v4070
        %v4111 = vpack.c.b16 %v4073, %v4072
        %v4112 = vpack.c.b16 %v4075, %v4074
        %v4113 = vpack.c.b16 %v4077, %v4076
        %v4151 = vsel %vm493, %v3793, 0
        %v4154 = vsel %vm493, %v3794, 0
        %v4157 = vsel %vm493, %v3795, 0
        %v4160 = vsel %vm493, %v3796, 0
        %4162 = vmatpush.bf16.msra.mxu0 %v4085
        %4163 = vmatpush.bf16.msra.mxu0 %v4084
        %4164 = vmatpush.bf16.msra.mxu0 %v4083
        %4165 = vmatpush.bf16.msra.mxu0 %v4082
        %4166 = vmatpush.bf16.msra.mxu0 %v4081
        %4167 = vmatpush.bf16.msra.mxu0 %v4080
        %4168 = vmatpush.bf16.msra.mxu0 %v4079
        %4169 = vmatpush.bf16.msra.mxu0 %v4078
        %4170 = vmatmul.bf16.gmra.mxu0 %v3799
        %v4171 = vpop.f32.mrf.mxu0
        %v4172 = vadd.f32 0.0, %v4171
        %v4173 = vpop.f32.mrf.mxu0
        %v4174 = vadd.f32 0.0, %v4173
        %4175 = vmatmul.bf16.gmra.mxu0 %v3803
        %v4176 = vpop.f32.mrf.mxu0
        %v4177 = vadd.f32 0.0, %v4176
        %v4178 = vpop.f32.mrf.mxu0
        %v4179 = vadd.f32 0.0, %v4178
        %4180 = vmatmul.bf16.gmra.mxu0 %v3807
        %v4181 = vpop.f32.mrf.mxu0
        %v4182 = vadd.f32 0.0, %v4181
        %v4183 = vpop.f32.mrf.mxu0
        %v4184 = vadd.f32 0.0, %v4183
        %4185 = vmatmul.bf16.gmra.mxu0 %v3811
        %v4186 = vpop.f32.mrf.mxu0
        %v4187 = vadd.f32 0.0, %v4186
        %v4188 = vpop.f32.mrf.mxu0
        %v4189 = vadd.f32 0.0, %v4188
        %4190 = vdwg.mxu0
        %4191 = vmatpush.bf16.msra.mxu0 %v4093
        %4192 = vmatpush.bf16.msra.mxu0 %v4092
        %4193 = vmatpush.bf16.msra.mxu0 %v4091
        %4194 = vmatpush.bf16.msra.mxu0 %v4090
        %4195 = vmatpush.bf16.msra.mxu0 %v4089
        %4196 = vmatpush.bf16.msra.mxu0 %v4088
        %4197 = vmatpush.bf16.msra.mxu0 %v4087
        %4198 = vmatpush.bf16.msra.mxu0 %v4086
        %4199 = vmatmul.bf16.gmra.mxu0 %v3815
        %v4200 = vpop.f32.mrf.mxu0
        %v4201 = vadd.f32 %v4172, %v4200
        %v4202 = vpop.f32.mrf.mxu0
        %v4203 = vadd.f32 %v4174, %v4202
        %4204 = vmatmul.bf16.gmra.mxu0 %v3819
        %v4205 = vpop.f32.mrf.mxu0
        %v4206 = vadd.f32 %v4177, %v4205
        %v4207 = vpop.f32.mrf.mxu0
        %v4208 = vadd.f32 %v4179, %v4207
        %4209 = vmatmul.bf16.gmra.mxu0 %v3823
        %v4210 = vpop.f32.mrf.mxu0
        %v4211 = vadd.f32 %v4182, %v4210
        %v4212 = vpop.f32.mrf.mxu0
        %v4213 = vadd.f32 %v4184, %v4212
        %4214 = vmatmul.bf16.gmra.mxu0 %v3827
        %v4215 = vpop.f32.mrf.mxu0
        %v4216 = vadd.f32 %v4187, %v4215
        %v4217 = vpop.f32.mrf.mxu0
        %v4218 = vadd.f32 %v4189, %v4217
        %4219 = vdwg.mxu0
        %4220 = vmatpush.bf16.msra.mxu0 %v4101
        %4221 = vmatpush.bf16.msra.mxu0 %v4100
        %4222 = vmatpush.bf16.msra.mxu0 %v4099
        %4223 = vmatpush.bf16.msra.mxu0 %v4098
        %4224 = vmatpush.bf16.msra.mxu0 %v4097
        %4225 = vmatpush.bf16.msra.mxu0 %v4096
        %4226 = vmatpush.bf16.msra.mxu0 %v4095
        %4227 = vmatpush.bf16.msra.mxu0 %v4094
        %4228 = vmatmul.bf16.gmra.mxu0 %v3831
        %v4229 = vpop.f32.mrf.mxu0
        %v4230 = vadd.f32 %v4201, %v4229
        %v4231 = vpop.f32.mrf.mxu0
        %v4232 = vadd.f32 %v4203, %v4231
        %4233 = vmatmul.bf16.gmra.mxu0 %v3835
        %v4234 = vpop.f32.mrf.mxu0
        %v4235 = vadd.f32 %v4206, %v4234
        %v4236 = vpop.f32.mrf.mxu0
        %v4237 = vadd.f32 %v4208, %v4236
        %4238 = vmatmul.bf16.gmra.mxu0 %v3839
        %v4239 = vpop.f32.mrf.mxu0
        %v4240 = vadd.f32 %v4211, %v4239
        %v4241 = vpop.f32.mrf.mxu0
        %v4242 = vadd.f32 %v4213, %v4241
        %4243 = vmatmul.bf16.gmra.mxu0 %v3843
        %v4244 = vpop.f32.mrf.mxu0
        %v4245 = vadd.f32 %v4216, %v4244
        %v4246 = vpop.f32.mrf.mxu0
        %v4247 = vadd.f32 %v4218, %v4246
        %4248 = vdwg.mxu0
        %4249 = vmatpush.bf16.msra.mxu0 %v4109
        %4250 = vmatpush.bf16.msra.mxu0 %v4108
        %4251 = vmatpush.bf16.msra.mxu0 %v4107
        %4252 = vmatpush.bf16.msra.mxu0 %v4106
        %4253 = vmatpush.bf16.msra.mxu0 %v4105
        %4254 = vmatpush.bf16.msra.mxu0 %v4104
        %4255 = vmatpush.bf16.msra.mxu0 %v4103
        %4256 = vmatpush.bf16.msra.mxu0 %v4102
        %4257 = vmatmul.bf16.gmra.mxu0 %v3847
        %v4258 = vpop.f32.mrf.mxu0
        %v4259 = vadd.f32 %v4230, %v4258
        %v4260 = vpop.f32.mrf.mxu0
        %v4261 = vadd.f32 %v4232, %v4260
        %4262 = vmatmul.bf16.gmra.mxu0 %v3851
        %v4263 = vpop.f32.mrf.mxu0
        %v4264 = vadd.f32 %v4235, %v4263
        %v4265 = vpop.f32.mrf.mxu0
        %v4266 = vadd.f32 %v4237, %v4265
        %4267 = vmatmul.bf16.gmra.mxu0 %v3855
        %v4268 = vpop.f32.mrf.mxu0
        %v4269 = vadd.f32 %v4240, %v4268
        %v4270 = vpop.f32.mrf.mxu0
        %v4271 = vadd.f32 %v4242, %v4270
        %4272 = vmatmul.bf16.gmra.mxu0 %v3859
        %v4273 = vpop.f32.mrf.mxu0
        %v4274 = vadd.f32 %v4245, %v4273
        %v4275 = vpop.f32.mrf.mxu0
        %v4276 = vadd.f32 %v4247, %v4275
        %4277 = vdwg.mxu0
        %4278 = vmatpush.bf16.msra.mxu0 0
        %4279 = vmatpush.bf16.msra.mxu0 0
        %4280 = vmatpush.bf16.msra.mxu0 0
        %4281 = vmatpush.bf16.msra.mxu0 0
        %4282 = vmatpush.bf16.msra.mxu0 %v4113
        %4283 = vmatpush.bf16.msra.mxu0 %v4112
        %4284 = vmatpush.bf16.msra.mxu0 %v4111
        %4285 = vmatpush.bf16.msra.mxu0 %v4110
        %4286 = vmatmul.bf16.gmra.mxu0 %v4151
        %v4287 = vpop.f32.mrf.mxu0
        %v4288 = vadd.f32 %v4259, %v4287
        %v4289 = vpop.f32.mrf.mxu0
        %v4290 = vadd.f32 %v4261, %v4289
        %4291 = vmatmul.bf16.gmra.mxu0 %v4154
        %v4292 = vpop.f32.mrf.mxu0
        %v4293 = vadd.f32 %v4264, %v4292
        %v4294 = vpop.f32.mrf.mxu0
        %v4295 = vadd.f32 %v4266, %v4294
        %4296 = vmatmul.bf16.gmra.mxu0 %v4157
        %v4297 = vpop.f32.mrf.mxu0
        %v4298 = vadd.f32 %v4269, %v4297
        %v4299 = vpop.f32.mrf.mxu0
        %v4300 = vadd.f32 %v4271, %v4299
        %4301 = vmatmul.bf16.gmra.mxu0 %v4160
        %v4302 = vpop.f32.mrf.mxu0
        %v4303 = vadd.f32 %v4274, %v4302
        %v4304 = vpop.f32.mrf.mxu0
        %v4305 = vadd.f32 %v4276, %v4304
        %4306 = vdwg.mxu0
        %s4307 = scalar_lea.vmem [#allocation10], 2
        %v4308 = vld [vmem:[%s4307] sm:$0x1]
        %v4310 = vperm.slane %v4308, 0
        %v4312 = vadd.f32 %v4288, %v4310
        %v4313 = vadd.f32 %v4290, %v4310
        %v4314 = vadd.f32 %v4293, %v4310
        %v4315 = vadd.f32 %v4295, %v4310
        %v4316 = vadd.f32 %v4298, %v4310
        %v4317 = vadd.f32 %v4300, %v4310
        %v4318 = vadd.f32 %v4303, %v4310
        %v4319 = vadd.f32 %v4305, %v4310
        %v4320 = vmax.f32 %v4312, 0.0
        %v4321 = vmax.f32 %v4313, 0.0
        %v4322 = vmax.f32 %v4314, 0.0
        %v4323 = vmax.f32 %v4315, 0.0
        %v4324 = vmax.f32 %v4316, 0.0
        %v4325 = vmax.f32 %v4317, 0.0
        %v4326 = vmax.f32 %v4318, 0.0
        %v4327 = vmax.f32 %v4319, 0.0
        %s4328 = scalar_lea.vmem [#allocation11], 128
        %v4329 = vld [vmem:[%s4328] sm:$0xff]
        %v4330 = vld [vmem:[%s4328 + $0x8] sm:$0xff]
        %v4331 = vld [vmem:[%s4328 + $0x10] sm:$0xff]
        %v4332 = vld [vmem:[%s4328 + $0x18] sm:$0xff]
        %v4333 = vld [vmem:[%s4328 + $0x20] sm:$0xff]
        %v4334 = vld [vmem:[%s4328 + $0x28] sm:$0xff]
        %v4335 = vld [vmem:[%s4328 + $0x30] sm:$0xff]
        %v4336 = vld [vmem:[%s4328 + $0x38] sm:$0xff]
        %s4337 = scalar_lea.vmem [#allocation13], 4
        %v4338 = vld [vmem:[%s4337] sm:$0x3]
        %v4340 = vperm.slane %v4338, 0
        %v4341 = vperm.slane %v4338, 1
        %v4352 = vunpack.c.l.b16 %v4329
        %v4353 = vunpack.c.h.b16 %v4329
        %v4354 = vunpack.c.l.b16 %v4330
        %v4355 = vunpack.c.h.b16 %v4330
        %v4356 = vunpack.c.l.b16 %v4331
        %v4357 = vunpack.c.h.b16 %v4331
        %v4358 = vunpack.c.l.b16 %v4332
        %v4359 = vunpack.c.h.b16 %v4332
        %v4360 = vunpack.c.l.b16 %v4333
        %v4361 = vunpack.c.h.b16 %v4333
        %v4362 = vunpack.c.l.b16 %v4334
        %v4363 = vunpack.c.h.b16 %v4334
        %v4364 = vunpack.c.l.b16 %v4335
        %v4365 = vunpack.c.h.b16 %v4335
        %v4366 = vunpack.c.l.b16 %v4336
        %v4367 = vunpack.c.h.b16 %v4336
        %v4368 = vpack.c.b16 %v4354, %v4352
        %v4369 = vpack.c.b16 %v4355, %v4353
        %v4370 = vpack.c.b16 %v4358, %v4356
        %v4371 = vpack.c.b16 %v4359, %v4357
        %v4372 = vpack.c.b16 %v4362, %v4360
        %v4373 = vpack.c.b16 %v4363, %v4361
        %v4374 = vpack.c.b16 %v4366, %v4364
        %v4375 = vpack.c.b16 %v4367, %v4365
        %v4384 = vsel %vm493, %v3697, 0
        %v4386 = vsel %vm493, %v3698, 0
        %v4388 = vsel %vm493, %v3699, 0
        %v4390 = vsel %vm493, %v3700, 0
        %4392 = vmatpush.bf16.msra.mxu0 0
        %4393 = vmatpush.bf16.msra.mxu0 0
        %4394 = vmatpush.bf16.msra.mxu0 0
        %4395 = vmatpush.bf16.msra.mxu0 0
        %4396 = vmatpush.bf16.msra.mxu0 %v4374
        %4397 = vmatpush.bf16.msra.mxu0 %v4372
        %4398 = vmatpush.bf16.msra.mxu0 %v4370
        %4399 = vmatpush.bf16.msra.mxu0 %v4368
        %4400 = vmatmul.bf16.gmra.mxu0 %v4384
        %v4401 = vpop.f32.mrf.mxu0
        %v4402 = vadd.f32 %v4340, %v4401
        %v4403 = vpop.f32.mrf.mxu0
        %v4404 = vadd.f32 %v4340, %v4403
        %4405 = vmatmul.bf16.gmra.mxu0 %v4386
        %v4406 = vpop.f32.mrf.mxu0
        %v4407 = vadd.f32 %v4340, %v4406
        %v4408 = vpop.f32.mrf.mxu0
        %v4409 = vadd.f32 %v4340, %v4408
        %4410 = vmatmul.bf16.gmra.mxu0 %v4388
        %v4411 = vpop.f32.mrf.mxu0
        %v4412 = vadd.f32 %v4340, %v4411
        %v4413 = vpop.f32.mrf.mxu0
        %v4414 = vadd.f32 %v4340, %v4413
        %4415 = vmatmul.bf16.gmra.mxu0 %v4390
        %v4416 = vpop.f32.mrf.mxu0
        %v4417 = vadd.f32 %v4340, %v4416
        %v4418 = vpop.f32.mrf.mxu0
        %v4419 = vadd.f32 %v4340, %v4418
        %4420 = vdwg.mxu0
        %4421 = vmatpush.bf16.msra.mxu0 0
        %4422 = vmatpush.bf16.msra.mxu0 0
        %4423 = vmatpush.bf16.msra.mxu0 0
        %4424 = vmatpush.bf16.msra.mxu0 0
        %4425 = vmatpush.bf16.msra.mxu0 %v4375
        %4426 = vmatpush.bf16.msra.mxu0 %v4373
        %4427 = vmatpush.bf16.msra.mxu0 %v4371
        %4428 = vmatpush.bf16.msra.mxu0 %v4369
        %4429 = vmatmul.bf16.gmra.mxu0 %v4384
        %v4430 = vpop.f32.mrf.mxu0
        %v4431 = vadd.f32 %v4341, %v4430
        %v4432 = vpop.f32.mrf.mxu0
        %v4433 = vadd.f32 %v4341, %v4432
        %4434 = vmatmul.bf16.gmra.mxu0 %v4386
        %v4435 = vpop.f32.mrf.mxu0
        %v4436 = vadd.f32 %v4341, %v4435
        %v4437 = vpop.f32.mrf.mxu0
        %v4438 = vadd.f32 %v4341, %v4437
        %4439 = vmatmul.bf16.gmra.mxu0 %v4388
        %v4440 = vpop.f32.mrf.mxu0
        %v4441 = vadd.f32 %v4341, %v4440
        %v4442 = vpop.f32.mrf.mxu0
        %v4443 = vadd.f32 %v4341, %v4442
        %4444 = vmatmul.bf16.gmra.mxu0 %v4390
        %v4445 = vpop.f32.mrf.mxu0
        %v4446 = vadd.f32 %v4341, %v4445
        %v4447 = vpop.f32.mrf.mxu0
        %v4448 = vadd.f32 %v4341, %v4447
        %4449 = vdwg.mxu0
        %v4450 = vpack.c.bf16 %v4402, %v4402
        %v4451 = vpack.c.bf16 %v4404, %v4404
        %v4452 = vpack.c.bf16 %v4407, %v4407
        %v4453 = vpack.c.bf16 %v4409, %v4409
        %v4454 = vpack.c.bf16 %v4412, %v4412
        %v4455 = vpack.c.bf16 %v4414, %v4414
        %v4456 = vpack.c.bf16 %v4417, %v4417
        %v4457 = vpack.c.bf16 %v4419, %v4419
        %v4458 = vpack.c.bf16 %v4431, %v4431
        %v4459 = vpack.c.bf16 %v4433, %v4433
        %v4460 = vpack.c.bf16 %v4436, %v4436
        %v4461 = vpack.c.bf16 %v4438, %v4438
        %v4462 = vpack.c.bf16 %v4441, %v4441
        %v4463 = vpack.c.bf16 %v4443, %v4443
        %v4464 = vpack.c.bf16 %v4446, %v4446
        %v4465 = vpack.c.bf16 %v4448, %v4448
        %v4474 = vunpack.c.l.b16 %v4450
        %v4475 = vunpack.c.l.b16 %v4451
        %v4476 = vunpack.c.l.b16 %v4452
        %v4477 = vunpack.c.l.b16 %v4453
        %v4478 = vunpack.c.l.b16 %v4454
        %v4479 = vunpack.c.l.b16 %v4455
        %v4480 = vunpack.c.l.b16 %v4456
        %v4481 = vunpack.c.l.b16 %v4457
        %v4482 = vpack.c.b16 %v4475, %v4474
        %v4483 = vpack.c.b16 %v4477, %v4476
        %v4484 = vpack.c.b16 %v4479, %v4478
        %v4485 = vpack.c.b16 %v4481, %v4480
        %4486 = vrot.lane.b32.xlu0 %v4482, 64
        %v4487 = vpop.permute.xlu0 %4486
        %4488 = vrot.lane.b32.xlu0 %v4483, 64
        %v4489 = vpop.permute.xlu0 %4488
        %4490 = vrot.lane.b32.xlu0 %v4484, 64
        %v4491 = vpop.permute.xlu0 %4490
        %4492 = vrot.lane.b32.xlu0 %v4485, 64
        %v4493 = vpop.permute.xlu0 %4492
        %v4495 = vsel %vm493, %v4482, 0
        %v4498 = vsel %vm493, %v4483, 0
        %v4501 = vsel %vm493, %v4484, 0
        %v4504 = vsel %vm493, %v4485, 0
        %v4507 = vsel %vm493, %v4487, 0
        %v4510 = vsel %vm493, %v4489, 0
        %v4513 = vsel %vm493, %v4491, 0
        %v4516 = vsel %vm493, %v4493, 0
        %4518 = vmatpush.bf16.xpose.msra.mxu0 0
        %4519 = vmatpush.bf16.xpose.msra.mxu0 0
        %4520 = vmatpush.bf16.xpose.msra.mxu0 0
        %4521 = vmatpush.bf16.xpose.msra.mxu0 0
        %4522 = vmatpush.bf16.xpose.msra.mxu0 %v4516
        %4523 = vmatpush.bf16.xpose.msra.mxu0 %v4513
        %4524 = vmatpush.bf16.xpose.msra.mxu0 %v4510
        %4525 = vmatpush.bf16.xpose.msra.mxu0 %v4507
        %4526 = vmatmul.bf16.gmra.mxu0 %v4495
        %v4527 = vpop.f32.mrf.mxu0
        %v4528 = vadd.f32 0.0, %v4527
        %v4529 = vpop.f32.mrf.mxu0
        %v4530 = vadd.f32 0.0, %v4529
        %4531 = vmatmul.bf16.gmra.mxu0 %v4498
        %v4532 = vpop.f32.mrf.mxu0
        %v4533 = vadd.f32 0.0, %v4532
        %v4534 = vpop.f32.mrf.mxu0
        %v4535 = vadd.f32 0.0, %v4534
        %4536 = vmatmul.bf16.gmra.mxu0 %v4501
        %v4537 = vpop.f32.mrf.mxu0
        %v4538 = vadd.f32 0.0, %v4537
        %v4539 = vpop.f32.mrf.mxu0
        %v4540 = vadd.f32 0.0, %v4539
        %4541 = vmatmul.bf16.gmra.mxu0 %v4504
        %v4542 = vpop.f32.mrf.mxu0
        %v4543 = vadd.f32 0.0, %v4542
        %v4544 = vpop.f32.mrf.mxu0
        %v4545 = vadd.f32 0.0, %v4544
        %4546 = vdwg.mxu0
        %v4547 = vmul.f32 %v4528, 0.125
        %v4548 = vmul.f32 %v4530, 0.125
        %v4549 = vmul.f32 %v4533, 0.125
        %v4550 = vmul.f32 %v4535, 0.125
        %v4551 = vmul.f32 %v4538, 0.125
        %v4552 = vmul.f32 %v4540, 0.125
        %v4553 = vmul.f32 %v4543, 0.125
        %v4554 = vmul.f32 %v4545, 0.125
        %v4555 = vsel %vm493, %v4547, -inf
        %4556 = vmax.xlane.f32.xlu0 %v4555
        %v4557 = vpop.xlane.xlu0 %4556
        %v4558 = vsel %vm493, %v4548, -inf
        %4559 = vmax.xlane.f32.xlu0 %v4558
        %v4560 = vpop.xlane.xlu0 %4559
        %v4561 = vsel %vm493, %v4549, -inf
        %4562 = vmax.xlane.f32.xlu0 %v4561
        %v4563 = vpop.xlane.xlu0 %4562
        %v4564 = vsel %vm493, %v4550, -inf
        %4565 = vmax.xlane.f32.xlu0 %v4564
        %v4566 = vpop.xlane.xlu0 %4565
        %v4567 = vsel %vm493, %v4551, -inf
        %4568 = vmax.xlane.f32.xlu0 %v4567
        %v4569 = vpop.xlane.xlu0 %4568
        %v4570 = vsel %vm493, %v4552, -inf
        %4571 = vmax.xlane.f32.xlu0 %v4570
        %v4572 = vpop.xlane.xlu0 %4571
        %v4573 = vsel %vm493, %v4553, -inf
        %4574 = vmax.xlane.f32.xlu0 %v4573
        %v4575 = vpop.xlane.xlu0 %4574
        %v4576 = vsel %vm493, %v4554, -inf
        %4577 = vmax.xlane.f32.xlu0 %v4576
        %v4578 = vpop.xlane.xlu0 %4577
        %v4579 = vsub.f32 %v4547, %v4557
        %v4580 = vsub.f32 %v4548, %v4560
        %v4581 = vsub.f32 %v4549, %v4563
        %v4582 = vsub.f32 %v4550, %v4566
        %v4583 = vsub.f32 %v4551, %v4569
        %v4584 = vsub.f32 %v4552, %v4572
        %v4585 = vsub.f32 %v4553, %v4575
        %v4586 = vsub.f32 %v4554, %v4578
        %v4587 = vmul.f32 %v4579, 1.442695
        %v4588 = vpow.pop %v4587
        %v4589 = vmul.f32 %v4580, 1.442695
        %v4590 = vpow.pop %v4589
        %v4591 = vmul.f32 %v4581, 1.442695
        %v4592 = vpow.pop %v4591
        %v4593 = vmul.f32 %v4582, 1.442695
        %v4594 = vpow.pop %v4593
        %v4595 = vmul.f32 %v4583, 1.442695
        %v4596 = vpow.pop %v4595
        %v4597 = vmul.f32 %v4584, 1.442695
        %v4598 = vpow.pop %v4597
        %v4599 = vmul.f32 %v4585, 1.442695
        %v4600 = vpow.pop %v4599
        %v4601 = vmul.f32 %v4586, 1.442695
        %v4602 = vpow.pop %v4601
        %v4603 = vsel %vm493, %v4588, 0.0
        %4604 = vadd.xlane.f32.xlu0 %v4603
        %v4605 = vpop.xlane.xlu0 %4604
        %v4606 = vsel %vm493, %v4590, 0.0
        %4607 = vadd.xlane.f32.xlu0 %v4606
        %v4608 = vpop.xlane.xlu0 %4607
        %v4609 = vsel %vm493, %v4592, 0.0
        %4610 = vadd.xlane.f32.xlu0 %v4609
        %v4611 = vpop.xlane.xlu0 %4610
        %v4612 = vsel %vm493, %v4594, 0.0
        %4613 = vadd.xlane.f32.xlu0 %v4612
        %v4614 = vpop.xlane.xlu0 %4613
        %v4615 = vsel %vm493, %v4596, 0.0
        %4616 = vadd.xlane.f32.xlu0 %v4615
        %v4617 = vpop.xlane.xlu0 %4616
        %v4618 = vsel %vm493, %v4598, 0.0
        %4619 = vadd.xlane.f32.xlu0 %v4618
        %v4620 = vpop.xlane.xlu0 %4619
        %v4621 = vsel %vm493, %v4600, 0.0
        %4622 = vadd.xlane.f32.xlu0 %v4621
        %v4623 = vpop.xlane.xlu0 %4622
        %v4624 = vsel %vm493, %v4602, 0.0
        %4625 = vadd.xlane.f32.xlu0 %v4624
        %v4626 = vpop.xlane.xlu0 %4625
        %v4627 = vrcp.pop %v4605
        %v4628 = vrcp.pop %v4608
        %v4629 = vrcp.pop %v4611
        %v4630 = vrcp.pop %v4614
        %v4631 = vrcp.pop %v4617
        %v4632 = vrcp.pop %v4620
        %v4633 = vrcp.pop %v4623
        %v4634 = vrcp.pop %v4626
        %v4635 = vmul.f32 %v4588, %v4627
        %v4636 = vmul.f32 %v4590, %v4628
        %v4637 = vmul.f32 %v4592, %v4629
        %v4638 = vmul.f32 %v4594, %v4630
        %v4639 = vmul.f32 %v4596, %v4631
        %v4640 = vmul.f32 %v4598, %v4632
        %v4641 = vmul.f32 %v4600, %v4633
        %v4642 = vmul.f32 %v4602, %v4634
        %v4643 = vpack.c.bf16 %v4635, %v4635
        %v4644 = vpack.c.bf16 %v4636, %v4636
        %v4645 = vpack.c.bf16 %v4637, %v4637
        %v4646 = vpack.c.bf16 %v4638, %v4638
        %v4647 = vpack.c.bf16 %v4639, %v4639
        %v4648 = vpack.c.bf16 %v4640, %v4640
        %v4649 = vpack.c.bf16 %v4641, %v4641
        %v4650 = vpack.c.bf16 %v4642, %v4642
        %v4659 = vunpack.c.l.b16 %v4643
        %v4660 = vunpack.c.l.b16 %v4644
        %v4661 = vunpack.c.l.b16 %v4645
        %v4662 = vunpack.c.l.b16 %v4646
        %v4663 = vunpack.c.l.b16 %v4647
        %v4664 = vunpack.c.l.b16 %v4648
        %v4665 = vunpack.c.l.b16 %v4649
        %v4666 = vunpack.c.l.b16 %v4650
        %v4667 = vpack.c.b16 %v4660, %v4659
        %v4668 = vpack.c.b16 %v4662, %v4661
        %v4669 = vpack.c.b16 %v4664, %v4663
        %v4670 = vpack.c.b16 %v4666, %v4665
        %v4679 = vunpack.c.l.b16 %v4458
        %v4680 = vunpack.c.l.b16 %v4459
        %v4681 = vunpack.c.l.b16 %v4460
        %v4682 = vunpack.c.l.b16 %v4461
        %v4683 = vunpack.c.l.b16 %v4462
        %v4684 = vunpack.c.l.b16 %v4463
        %v4685 = vunpack.c.l.b16 %v4464
        %v4686 = vunpack.c.l.b16 %v4465
        %v4687 = vpack.c.b16 %v4680, %v4679
        %v4688 = vpack.c.b16 %v4682, %v4681
        %v4689 = vpack.c.b16 %v4684, %v4683
        %v4690 = vpack.c.b16 %v4686, %v4685
        %v4696 = vsel %vm493, %v4667, 0
        %v4699 = vsel %vm493, %v4668, 0
        %v4702 = vsel %vm493, %v4669, 0
        %v4705 = vsel %vm493, %v4670, 0
        %4707 = vmatpush.bf16.msra.mxu0 0
        %4708 = vmatpush.bf16.msra.mxu0 0
        %4709 = vmatpush.bf16.msra.mxu0 0
        %4710 = vmatpush.bf16.msra.mxu0 0
        %4711 = vmatpush.bf16.msra.mxu0 %v4690
        %4712 = vmatpush.bf16.msra.mxu0 %v4689
        %4713 = vmatpush.bf16.msra.mxu0 %v4688
        %4714 = vmatpush.bf16.msra.mxu0 %v4687
        %4715 = vmatmul.bf16.gmra.mxu0 %v4696
        %v4716 = vpop.f32.mrf.mxu0
        %v4717 = vadd.f32 0.0, %v4716
        %v4718 = vpop.f32.mrf.mxu0
        %v4719 = vadd.f32 0.0, %v4718
        %4720 = vmatmul.bf16.gmra.mxu0 %v4699
        %v4721 = vpop.f32.mrf.mxu0
        %v4722 = vadd.f32 0.0, %v4721
        %v4723 = vpop.f32.mrf.mxu0
        %v4724 = vadd.f32 0.0, %v4723
        %4725 = vmatmul.bf16.gmra.mxu0 %v4702
        %v4726 = vpop.f32.mrf.mxu0
        %v4727 = vadd.f32 0.0, %v4726
        %v4728 = vpop.f32.mrf.mxu0
        %v4729 = vadd.f32 0.0, %v4728
        %4730 = vmatmul.bf16.gmra.mxu0 %v4705
        %v4731 = vpop.f32.mrf.mxu0
        %v4732 = vadd.f32 0.0, %v4731
        %v4733 = vpop.f32.mrf.mxu0
        %v4734 = vadd.f32 0.0, %v4733
        %4735 = vdwg.mxu0
        %v4736 = vpack.c.bf16 %v4719, %v4717
        %v4737 = vpack.c.bf16 %v4724, %v4722
        %v4738 = vpack.c.bf16 %v4729, %v4727
        %v4739 = vpack.c.bf16 %v4734, %v4732
        %s4740 = scalar_lea.vmem [#allocation14], 64
        %v4741 = vld [vmem:[%s4740] sm:$0xf]
        %v4742 = vld [vmem:[%s4740 + $0x4] sm:$0xf]
        %v4743 = vld [vmem:[%s4740 + $0x8] sm:$0xf]
        %v4744 = vld [vmem:[%s4740 + $0xc] sm:$0xf]
        %v4745 = vld [vmem:[%s4740 + $0x10] sm:$0xf]
        %v4746 = vld [vmem:[%s4740 + $0x14] sm:$0xf]
        %v4747 = vld [vmem:[%s4740 + $0x18] sm:$0xf]
        %v4748 = vld [vmem:[%s4740 + $0x1c] sm:$0xf]
        %s4749 = scalar_lea.vmem %s7, 2
        %v4750 = vld [vmem:[%s4749] sm:$0x1]
        %v4752 = vperm.slane %v4750, 0
        %v4762 = vunpack.c.l.b16 %v4741
        %v4763 = vunpack.c.l.b16 %v4742
        %v4764 = vunpack.c.l.b16 %v4743
        %v4765 = vunpack.c.l.b16 %v4744
        %v4766 = vunpack.c.l.b16 %v4745
        %v4767 = vunpack.c.l.b16 %v4746
        %v4768 = vunpack.c.l.b16 %v4747
        %v4769 = vunpack.c.l.b16 %v4748
        %v4770 = vpack.c.b16 %v4763, %v4762
        %v4771 = vpack.c.b16 %v4765, %v4764
        %v4772 = vpack.c.b16 %v4767, %v4766
        %v4773 = vpack.c.b16 %v4769, %v4768
        %v4779 = vsel %vm493, %v4736, 0
        %v4782 = vsel %vm493, %v4737, 0
        %v4785 = vsel %vm493, %v4738, 0
        %v4788 = vsel %vm493, %v4739, 0
        %4790 = vmatpush.bf16.msra.mxu0 0
        %4791 = vmatpush.bf16.msra.mxu0 0
        %4792 = vmatpush.bf16.msra.mxu0 0
        %4793 = vmatpush.bf16.msra.mxu0 0
        %4794 = vmatpush.bf16.msra.mxu0 %v4773
        %4795 = vmatpush.bf16.msra.mxu0 %v4772
        %4796 = vmatpush.bf16.msra.mxu0 %v4771
        %4797 = vmatpush.bf16.msra.mxu0 %v4770
        %4798 = vmatmul.bf16.gmra.mxu0 %v4779
        %v4799 = vpop.f32.mrf.mxu0
        %v4800 = vadd.f32 %v4752, %v4799
        %v4801 = vpop.f32.mrf.mxu0
        %v4802 = vadd.f32 %v4752, %v4801
        %4803 = vmatmul.bf16.gmra.mxu0 %v4782
        %v4804 = vpop.f32.mrf.mxu0
        %v4805 = vadd.f32 %v4752, %v4804
        %v4806 = vpop.f32.mrf.mxu0
        %v4807 = vadd.f32 %v4752, %v4806
        %4808 = vmatmul.bf16.gmra.mxu0 %v4785
        %v4809 = vpop.f32.mrf.mxu0
        %v4810 = vadd.f32 %v4752, %v4809
        %v4811 = vpop.f32.mrf.mxu0
        %v4812 = vadd.f32 %v4752, %v4811
        %4813 = vmatmul.bf16.gmra.mxu0 %v4788
        %v4814 = vpop.f32.mrf.mxu0
        %v4815 = vadd.f32 %v4752, %v4814
        %v4816 = vpop.f32.mrf.mxu0
        %v4817 = vadd.f32 %v4752, %v4816
        %4818 = vdwg.mxu0
        %s4819 = sld [smem:[#allocation3 + $0x100]]
        %v4820 = vstv %s4819
        %v4821 = vmul.f32 %v4820, %v4320
        %v4822 = vmul.f32 %v4820, %v4321
        %v4823 = vmul.f32 %v4820, %v4322
        %v4824 = vmul.f32 %v4820, %v4323
        %v4825 = vmul.f32 %v4820, %v4324
        %v4826 = vmul.f32 %v4820, %v4325
        %v4827 = vmul.f32 %v4820, %v4326
        %v4828 = vmul.f32 %v4820, %v4327
        %s4829 = sld [smem:[#allocation3 + $0x101]]
        %v4830 = vstv %s4829
        %v4831 = vmul.f32 %v4830, %v4800
        %v4832 = vmul.f32 %v4830, %v4802
        %v4833 = vmul.f32 %v4830, %v4805
        %v4834 = vmul.f32 %v4830, %v4807
        %v4835 = vmul.f32 %v4830, %v4810
        %v4836 = vmul.f32 %v4830, %v4812
        %v4837 = vmul.f32 %v4830, %v4815
        %v4838 = vmul.f32 %v4830, %v4817
        %v4839 = vadd.f32 %v4821, %v4831
        %v4840 = vadd.f32 %v4822, %v4832
        %v4841 = vadd.f32 %v4823, %v4833
        %v4842 = vadd.f32 %v4824, %v4834
        %v4843 = vadd.f32 %v4825, %v4835
        %v4844 = vadd.f32 %v4826, %v4836
        %v4845 = vadd.f32 %v4827, %v4837
        %v4846 = vadd.f32 %v4828, %v4838
        %4855 = vrot.lane.b32.xlu0 %v4288, 64
        %v4856 = vpop.permute.xlu0 %4855
        %4857 = vrot.lane.b32.xlu0 %v4290, 64
        %v4858 = vpop.permute.xlu0 %4857
        %4859 = vrot.lane.b32.xlu0 %v4293, 64
        %v4860 = vpop.permute.xlu0 %4859
        %4861 = vrot.lane.b32.xlu0 %v4295, 64
        %v4862 = vpop.permute.xlu0 %4861
        %4863 = vrot.lane.b32.xlu0 %v4298, 64
        %v4864 = vpop.permute.xlu0 %4863
        %4865 = vrot.lane.b32.xlu0 %v4300, 64
        %v4866 = vpop.permute.xlu0 %4865
        %4867 = vrot.lane.b32.xlu0 %v4303, 64
        %v4868 = vpop.permute.xlu0 %4867
        %4869 = vrot.lane.b32.xlu0 %v4305, 64
        %v4870 = vpop.permute.xlu0 %4869
        %v4879 = vadd.f32 %v4839, %v4856
        %v4880 = vadd.f32 %v4840, %v4858
        %v4881 = vadd.f32 %v4841, %v4860
        %v4882 = vadd.f32 %v4842, %v4862
        %v4883 = vadd.f32 %v4843, %v4864
        %v4884 = vadd.f32 %v4844, %v4866
        %v4885 = vadd.f32 %v4845, %v4868
        %v4886 = vadd.f32 %v4846, %v4870
        %v4887 = vsel %vm493, %v4879, 0.0
        %v4888 = vsel %vm493, %v4880, 0.0
        %v4889 = vadd.f32 %v4887, %v4888
        %v4890 = vsel %vm493, %v4881, 0.0
        %v4891 = vadd.f32 %v4889, %v4890
        %v4892 = vsel %vm493, %v4882, 0.0
        %v4893 = vadd.f32 %v4891, %v4892
        %v4894 = vsel %vm493, %v4883, 0.0
        %v4895 = vadd.f32 %v4893, %v4894
        %v4896 = vsel %vm493, %v4884, 0.0
        %v4897 = vadd.f32 %v4895, %v4896
        %v4898 = vsel %vm493, %v4885, 0.0
        %v4899 = vadd.f32 %v4897, %v4898
        %v4900 = vsel %vm493, %v4886, 0.0
        %v4901 = vadd.f32 %v4899, %v4900
        %v4902 = vrot.slane %v4901, 4
        %v4903 = vadd.f32 %v4901, %v4902
        %v4904 = vrot.slane %v4903, 2
        %v4905 = vadd.f32 %v4903, %v4904
        %v4906 = vrot.slane %v4905, 1
        %v4907 = vadd.f32 %v4905, %v4906
        %v4908 = vrcp.pop 64.0
        %v4909 = vmul.f32 64.0, %v4908
        %v4910 = vsub.f32 1.0, %v4909
        %v4911 = vmul.f32 %v4908, %v4910
        %v4912 = vadd.f32 %v4908, %v4911
        %vm4913 = vweird.f32 %v4908
        %v4914 = vsel %vm4913, %v4908, %v4912
        %v4915 = vmul.f32 %v4907, %v4914
        %v4916 = vpack.c.bf16 %v4915, %v4915
        %v4917 = vld [vmem:[#allocation16] sm:$0xf]
        %v4918 = vld [vmem:[#allocation16 + $0x4] sm:$0xf]
        %v4919 = vld [vmem:[#allocation16 + $0x8] sm:$0xf]
        %v4920 = vld [vmem:[#allocation16 + $0xc] sm:$0xf]
        %v4921 = vld [vmem:[#allocation16 + $0x10] sm:$0xf]
        %v4922 = vld [vmem:[#allocation16 + $0x14] sm:$0xf]
        %v4923 = vld [vmem:[#allocation16 + $0x18] sm:$0xf]
        %v4924 = vld [vmem:[#allocation16 + $0x1c] sm:$0xf]
        %v4925 = vld [vmem:[%s9] sm:$0x1]
        %v4934 = vunpack.c.l.b16 %v4917
        %v4935 = vunpack.c.l.b16 %v4918
        %v4936 = vunpack.c.l.b16 %v4919
        %v4937 = vunpack.c.l.b16 %v4920
        %v4938 = vunpack.c.l.b16 %v4921
        %v4939 = vunpack.c.l.b16 %v4922
        %v4940 = vunpack.c.l.b16 %v4923
        %v4941 = vunpack.c.l.b16 %v4924
        %v4942 = vpack.c.b16 %v4935, %v4934
        %v4943 = vpack.c.b16 %v4937, %v4936
        %v4944 = vpack.c.b16 %v4939, %v4938
        %v4945 = vpack.c.b16 %v4941, %v4940
        %v4951 = vsel %vm493, %v4916, 0
        %4953 = vmatpush.bf16.msra.mxu0 0
        %4954 = vmatpush.bf16.msra.mxu0 0
        %4955 = vmatpush.bf16.msra.mxu0 0
        %4956 = vmatpush.bf16.msra.mxu0 0
        %4957 = vmatpush.bf16.msra.mxu0 %v4945
        %4958 = vmatpush.bf16.msra.mxu0 %v4944
        %4959 = vmatpush.bf16.msra.mxu0 %v4943
        %4960 = vmatpush.bf16.msra.mxu0 %v4942
        %4961 = vmatmul.bf16.gmra.mxu0 %v4951
        %v4962 = vpop.f32.mrf.mxu0
        %v4963 = vadd.f32 %v4925, %v4962
        %v4964 = vpop.f32.mrf.mxu0
        %4965 = vdwg.mxu0
        %4966 = vst [vmem:[%s491] sm:$0x1] %v4963
        %s4967 = sand.u32 %s254, 1
        %s4968 = scalar_lea.sflag [#allocation5], %s4967
        %s4969 = sand.u32 %s254, 1
        %s4970 = scalar_lea.vmem [#allocation17], %s4969
        // Predicated region
        $region93: #{tpu_custom_call.1} parent=59 // pred_check
          %p4971 = pneg %p264
        $region94: #{tpu_custom_call.1} parent=59 // pred_check_branch
          %4973 = sbr.rel (%p4971) target = $region96
        $region95: #{tpu_custom_call.1} parent=59 // pred_region
          %4975 = vsyncadd %s4968, 0
          %s4976 = scalar_lea.hbm %s10, %s31
          %s4978 = sshll.u32 %s4970, 4
          %s4979 = int_to_ptr.vmem [resolvable:$true] %s4978
          %s4980 = sshll.u32 %s4976, 4
          %s4981 = int_to_ptr.hbm [resolvable:$true] %s4980
          %4983 = dma.vmem_to_hbm [thread:$0]  %s4979, 16, %s4981, %s4968
        $region96: #{tpu_custom_call.1} parent=59 // pred_fallthru
          _
      $region60: #{tpu_custom_call.1} parent=5 // pred_fallthru
        _
      %p4984 = scmp.le.s32.totalorder 2, %s26
      // Predicated region
      $region97: #{tpu_custom_call.1} parent=5 // pred_check
        %p4985 = pneg %p4984
      $region98: #{tpu_custom_call.1} parent=5 // pred_check_branch
        %4987 = sbr.rel (%p4985) target = $region100
      $region99: #{tpu_custom_call.1} parent=5 // pred_region
        %s4988 = ssub.s32 %s26, 2
        // Predicated region
        $region101: #{tpu_custom_call.1} parent=99 // pred_check
          %p4989 = pneg %p270
        $region102: #{tpu_custom_call.1} parent=99 // pred_check_branch
          %4991 = sbr.rel (%p4989) target = $region104
        $region103: #{tpu_custom_call.1} parent=99 // pred_region
          %s4992 = sand.u32 %s255, 1
          %s4993 = scalar_lea.sflag [#allocation5], %s4992
          %s4994 = sand.u32 %s255, 1
          %s4995 = scalar_lea.vmem [#allocation17], %s4994
          %4997 = dma.done %s4993, 16
        $region104: #{tpu_custom_call.1} parent=99 // pred_fallthru
          _
      $region100: #{tpu_custom_call.1} parent=5 // pred_fallthru
        _
    $region6: #{tpu_custom_call.1} parent=1 // loop_footer
      %s30 = sadd.s32 1, %s26
    $region7: #{tpu_custom_call.1} parent=1 // loop_footer_branch
      %25 = sbr.rel target = $region3
    $region8: #{tpu_custom_call.1} parent=1 // loop_exit
      _
    %4998 = vsyncpa [#allocation4], 1
    %s4999 = scalar_lea.sflag [#allocation4], 1
    %5000 = vsyncpa %s4999, 1
    %5001 = vsyncpa [#allocation9], 1
    %5002 = vsyncpa [#allocation12], 1
    %5003 = vsyncpa [#allocation15], 1
    %5004 = vsyncpa [#allocation5], 1
    %s5005 = scalar_lea.sflag [#allocation5], 1
    %5006 = vsyncpa %s5005, 1
    %5007 = vsyncpa [#allocation6], 1
    %s5008 = scalar_lea.sflag [#allocation6], 1
    %5009 = vsyncpa %s5008, 1

</llo_original>
